<compile_context>
chip_gen: v7x
topology: tpu7x:2x2x1
jax: 0.10.0
libtpu: 0.0.40
codegen_flags: <defaults>
</compile_context>

<pallas_src>
import functools

import jax
import jax.numpy as jnp
from jax.experimental import pallas as pl
from jax.experimental.pallas import tpu as pltpu


# --------------------------------------------------------------------------
# Fused Pallas kernel
# --------------------------------------------------------------------------
def _fused_transformer_kernel(
    gates_ref,                                            # SMEM (3, 2) f32
    xq1_ref, xq2_ref, xk1_ref, xk2_ref, xv1_ref, xv2_ref,  # (N, E) batch-major rows
    w1_ref, b1_ref, w2_ref, b2_ref,                        # (3,E,H), (3,1,H)
    win_ref, bin_ref, wout_ref, bout_ref,                  # (3,H,H), (3,1,H), (H,H), (1,H)
    ln1g_ref, ln1b_ref,
    fcw_ref, fcb_ref, fc1w_ref, fc1b_ref, fc2w_ref, fc2b_ref,
    ln2g_ref, ln2b_ref,
    o_ref,                                                 # (N, H) output
    qkv_s, attn_s,                                         # VMEM scratch (3,N,H), (N,H)
    *, L, B, num_heads):
    f32 = jnp.float32
    H = o_ref.shape[-1]
    D = H // num_heads

    def layernorm(x, g, b):
        mu = jnp.mean(x, axis=-1, keepdims=True)
        var = jnp.mean((x - mu) ** 2, axis=-1, keepdims=True)
        return (x - mu) * jax.lax.rsqrt(var + 1e-5) * g + b

    def dual_proj(xa_ref, xb_ref, idx):
        # g0*(xa @ W1 + b1) + g1*(xb @ W2 + b2); gates read from SMEM scalars.
        g0 = gates_ref[idx, 0]
        g1 = gates_ref[idx, 1]
        ya = jnp.dot(xa_ref[...], w1_ref[idx, :, :],
                     preferred_element_type=f32) + b1_ref[idx, :, :]
        yb = jnp.dot(xb_ref[...], w2_ref[idx, :, :],
                     preferred_element_type=f32) + b2_ref[idx, :, :]
        return g0 * ya + g1 * yb

    # --- gated dual projections (q, k, v stay in registers / VMEM) ---------
    q = dual_proj(xq1_ref, xq2_ref, 0)
    k = dual_proj(xk1_ref, xk2_ref, 1)
    v = dual_proj(xv1_ref, xv2_ref, 2)

    # --- MHA in-projection; results parked in VMEM scratch -----------------
    qkv_s[0, :, :] = jnp.dot(q, win_ref[0, :, :], preferred_element_type=f32) + bin_ref[0, :, :]
    qkv_s[1, :, :] = jnp.dot(k, win_ref[1, :, :], preferred_element_type=f32) + bin_ref[1, :, :]
    qkv_s[2, :, :] = jnp.dot(v, win_ref[2, :, :], preferred_element_type=f32) + bin_ref[2, :, :]

    # --- attention: unrolled over (batch, head); each tile is a contiguous
    #     (L, D) window of the batch-major (N, H) scratch ---------------------
    scale = 1.0 / float(D) ** 0.5
    for b in range(B):
        r0 = b * L
        for hd in range(num_heads):
            c0 = hd * D
            qb = qkv_s[0, r0:r0 + L, c0:c0 + D]
            kb = qkv_s[1, r0:r0 + L, c0:c0 + D]
            vb = qkv_s[2, r0:r0 + L, c0:c0 + D]
            s = jnp.dot(qb, kb.T, preferred_element_type=f32) * scale
            m = jnp.max(s, axis=-1, keepdims=True)
            p = jnp.exp(s - m)
            # exact reciprocal keeps the tight fp32 tolerance; approx=True is
            # a free EUP-slot optimization once outputs are bf16 / larger.
            p = p * pl.reciprocal(jnp.sum(p, axis=-1, keepdims=True), approx=False)
            attn_s[r0:r0 + L, c0:c0 + D] = jnp.dot(p, vb, preferred_element_type=f32)

    # --- out-projection + residual + LayerNorm ------------------------------
    attn = jnp.dot(attn_s[...], wout_ref[...], preferred_element_type=f32) + bout_ref[...]
    x = layernorm(q + attn, ln1g_ref[...], ln1b_ref[...])

    # --- FFN block: o1 = fc(x); out = LN2(o1 + fc2(leaky_relu(fc1(o1)))) ----
    o1 = jnp.dot(x, fcw_ref[...], preferred_element_type=f32) + fcb_ref[...]
    h1 = jnp.dot(o1, fc1w_ref[...], preferred_element_type=f32) + fc1b_ref[...]
    h1 = jnp.where(h1 >= 0, h1, 0.01 * h1)           # LeakyReLU(0.01)
    h2 = jnp.dot(h1, fc2w_ref[...], preferred_element_type=f32) + fc2b_ref[...]
    o_ref[...] = layernorm(o1 + h2, ln2g_ref[...], ln2b_ref[...])


# --------------------------------------------------------------------------
# Wrapper: one pallas_call, whole-array VMEM blocks (working set << VMEM)
# --------------------------------------------------------------------------
def pallas_forward(params, num_heads, q1, q2, k1, k2, v1, v2):
    L, B, E = q1.shape
    H = params["w1"].shape[-1]
    N = B * L

    # stateless equivalent of the module's in-place .data softmax re-assignment
    gates = jnp.stack([
        jax.nn.softmax(jnp.stack([params["a_q"], params["b_q"]])),
        jax.nn.softmax(jnp.stack([params["a_k"], params["b_k"]])),
        jax.nn.softmax(jnp.stack([params["a_v"], params["b_v"]])),
    ]).astype(jnp.float32)                                  # (3, 2)

    def bm(x):  # (L, B, E) -> (B*L, E): batch-major rows for contiguous head tiles
        return jnp.transpose(x, (1, 0, 2)).reshape(N, E)

    args = (gates, bm(q1), bm(q2), bm(k1), bm(k2), bm(v1), bm(v2),
            params["w1"], params["b1"], params["w2"], params["b2"],
            params["w_in"], params["b_in"], params["w_out"], params["b_out"],
            params["ln1_g"], params["ln1_b"],
            params["fc_w"], params["fc_b"], params["fc1_w"], params["fc1_b"],
            params["fc2_w"], params["fc2_b"], params["ln2_g"], params["ln2_b"])

    smem_spec = pl.BlockSpec(memory_space=pltpu.MemorySpace.SMEM)
    vmem_spec = pl.BlockSpec(memory_space=pltpu.MemorySpace.VMEM)

    out = pl.pallas_call(
        functools.partial(_fused_transformer_kernel, L=L, B=B, num_heads=num_heads),
        out_shape=jax.ShapeDtypeStruct((N, H), jnp.float32),
        in_specs=[smem_spec] + [vmem_spec] * (len(args) - 1),
        out_specs=vmem_spec,
        scratch_shapes=[pltpu.VMEM((3, N, H), jnp.float32),   # qi / ki / vi
                        pltpu.VMEM((N, H), jnp.float32)],     # attention output
    )(*args)

    # back to PyTorch's sequence-first (L, B, H) layout
    return jnp.transpose(out.reshape(B, L, H), (1, 0, 2))


# --------------------------------------------------------------------------
# Parameter setup (deterministic, mirrors the module's shapes / inits)
# --------------------------------------------------------------------------
def init_params(key, E, H):
    ks = iter(jax.random.split(key, 40))
    leaky_gain = (2.0 / (1.0 + 0.01 ** 2)) ** 0.5

    def lin(k, fin, fout, gain=1.0):
        kw, kb = jax.random.split(k)
        std = gain * (2.0 / (fin + fout)) ** 0.5
        w = std * jax.random.normal(kw, (fin, fout), jnp.float32)   # stored (in, out)
        bound = 1.0 / (fin ** 0.5)
        b = jax.random.uniform(kb, (1, fout), jnp.float32, -bound, bound)
        return w, b

    p = {}
    # gated projections q1/k1/v1 and q2/k2/v2, stored stacked (3, E, H)
    ws, bs = zip(*[lin(next(ks), E, H) for _ in range(3)])
    p["w1"], p["b1"] = jnp.stack(ws), jnp.stack(bs)
    ws, bs = zip(*[lin(next(ks), E, H) for _ in range(3)])
    p["w2"], p["b2"] = jnp.stack(ws), jnp.stack(bs)
    for name in ("a_q", "b_q", "a_k", "b_k", "a_v", "b_v"):
        p[name] = jax.random.uniform(next(ks), (), jnp.float32)
    # nn.MultiheadAttention: in_proj split into q/k/v (zero bias), out_proj (zero bias)
    ws = [lin(next(ks), H, H)[0] for _ in range(3)]
    p["w_in"] = jnp.stack(ws)                        # (3, H, H)
    p["b_in"] = jnp.zeros((3, 1, H), jnp.float32)
    p["w_out"], _ = lin(next(ks), H, H)
    p["b_out"] = jnp.zeros((1, H), jnp.float32)
    for name in ("fc", "fc1", "fc2"):
        w, b = lin(next(ks), H, H, leaky_gain)
        p[f"{name}_w"], p[f"{name}_b"] = w, b
    p["ln1_g"] = jnp.ones((1, H), jnp.float32)
    p["ln1_b"] = jnp.zeros((1, H), jnp.float32)
    p["ln2_g"] = jnp.ones((1, H), jnp.float32)
    p["ln2_b"] = jnp.zeros((1, H), jnp.float32)
    return p


# --------------------------------------------------------------------------
# Pure-JAX reference (mirrors the PyTorch forward, eval mode)
# --------------------------------------------------------------------------
def reference_forward(params, num_heads, q1, q2, k1, k2, v1, v2):
    L, B, E = q1.shape
    H = params["w1"].shape[-1]
    D = H // num_heads

    def ln(x, g, b):
        mu = jnp.mean(x, -1, keepdims=True)
        var = jnp.mean((x - mu) ** 2, -1, keepdims=True)
        return (x - mu) / jnp.sqrt(var + 1e-5) * g + b

    gq = jax.nn.softmax(jnp.stack([params["a_q"], params["b_q"]]))
    gk = jax.nn.softmax(jnp.stack([params["a_k"], params["b_k"]]))
    gv = jax.nn.softmax(jnp.stack([params["a_v"], params["b_v"]]))

    q = gq[0] * (q1 @ params["w1"][0] + params["b1"][0]) + gq[1] * (q2 @ params["w2"][0] + params["b2"][0])
    k = gk[0] * (k1 @ params["w1"][1] + params["b1"][1]) + gk[1] * (k2 @ params["w2"][1] + params["b2"][1])
    v = gv[0] * (v1 @ params["w1"][2] + params["b1"][2]) + gv[1] * (v2 @ params["w2"][2] + params["b2"][2])

    qi = q @ params["w_in"][0] + params["b_in"][0]
    ki = k @ params["w_in"][1] + params["b_in"][1]
    vi = v @ params["w_in"][2] + params["b_in"][2]

    def split(x):  # (L,B,H) -> (B,nh,L,D)
        return jnp.transpose(x.reshape(L, B, num_heads, D), (1, 2, 0, 3))

    qh, kh, vh = split(qi), split(ki), split(vi)
    s = jnp.einsum("bhld,bhmd->bhlm", qh, kh) / (D ** 0.5)
    p_attn = jax.nn.softmax(s, axis=-1)
    oh = jnp.einsum("bhlm,bhmd->bhld", p_attn, vh)
    o = jnp.transpose(oh, (2, 0, 1, 3)).reshape(L, B, H)
    o = o @ params["w_out"] + params["b_out"]

    x = ln(q + o, params["ln1_g"], params["ln1_b"])
    o1 = x @ params["fc_w"] + params["fc_b"]
    h1 = o1 @ params["fc1_w"] + params["fc1_b"]
    h1 = jnp.where(h1 >= 0, h1, 0.01 * h1)
    h2 = h1 @ params["fc2_w"] + params["fc2_b"]
    return ln(o1 + h2, params["ln2_g"], params["ln2_b"])


# --------------------------------------------------------------------------
if __name__ == "__main__":
    # Small shapes consistent with the module (embedding_dim -> hidden_dim, MHA heads)
    L, B, E, H, NH = 8, 2, 64, 32, 4

    root = jax.random.PRNGKey(0)
    kp, kq1, kq2, kk1, kk2, kv1, kv2 = jax.random.split(root, 7)
    params = init_params(kp, E, H)

    querys1 = jax.random.normal(kq1, (L, B, E), jnp.float32)
    querys2 = jax.random.normal(kq2, (L, B, E), jnp.float32)
    keys1 = jax.random.normal(kk1, (L, B, E), jnp.float32)
    keys2 = jax.random.normal(kk2, (L, B, E), jnp.float32)
    values1 = jax.random.normal(kv1, (L, B, E), jnp.float32)
    values2 = jax.random.normal(kv2, (L, B, E), jnp.float32)

    fwd = jax.jit(pallas_forward, static_argnums=(1,))
    out = jax.block_until_ready(
        fwd(params, NH, querys1, querys2, keys1, keys2, values1, values2))

    ref = reference_forward(params, NH, querys1, querys2, keys1, keys2, values1, values2)
    assert out.shape == (L, B, H)
    assert jnp.allclose(out, ref, atol=1e-4, rtol=1e-4), "mismatch vs pure-JAX reference"

    print("KERNEL_OK")
</pallas_src>

<mosaic_0001>
module attributes {stable_mosaic.version = 11 : i64} {
  func.func @_fused_transformer_kernel(%arg0: memref<3x2xf32, #tpu.memory_space<smem>>, %arg1: memref<16x64xf32, #tpu.memory_space<vmem>>, %arg2: memref<16x64xf32, #tpu.memory_space<vmem>>, %arg3: memref<16x64xf32, #tpu.memory_space<vmem>>, %arg4: memref<16x64xf32, #tpu.memory_space<vmem>>, %arg5: memref<16x64xf32, #tpu.memory_space<vmem>>, %arg6: memref<16x64xf32, #tpu.memory_space<vmem>>, %arg7: memref<3x64x32xf32, #tpu.memory_space<vmem>>, %arg8: memref<3x1x32xf32, #tpu.memory_space<vmem>>, %arg9: memref<3x64x32xf32, #tpu.memory_space<vmem>>, %arg10: memref<3x1x32xf32, #tpu.memory_space<vmem>>, %arg11: memref<3x32x32xf32, #tpu.memory_space<vmem>>, %arg12: memref<3x1x32xf32, #tpu.memory_space<vmem>>, %arg13: memref<32x32xf32, #tpu.memory_space<vmem>>, %arg14: memref<1x32xf32, #tpu.memory_space<vmem>>, %arg15: memref<1x32xf32, #tpu.memory_space<vmem>>, %arg16: memref<1x32xf32, #tpu.memory_space<vmem>>, %arg17: memref<32x32xf32, #tpu.memory_space<vmem>>, %arg18: memref<1x32xf32, #tpu.memory_space<vmem>>, %arg19: memref<32x32xf32, #tpu.memory_space<vmem>>, %arg20: memref<1x32xf32, #tpu.memory_space<vmem>>, %arg21: memref<32x32xf32, #tpu.memory_space<vmem>>, %arg22: memref<1x32xf32, #tpu.memory_space<vmem>>, %arg23: memref<1x32xf32, #tpu.memory_space<vmem>>, %arg24: memref<1x32xf32, #tpu.memory_space<vmem>>, %arg25: memref<16x32xf32, #tpu.memory_space<vmem>>, %arg26: memref<3x16x32xf32, #tpu.memory_space<vmem>>, %arg27: memref<16x32xf32, #tpu.memory_space<vmem>>) attributes {dimension_semantics = [], scalar_prefetch = 0 : i64, scratch_operands = 2 : i64, tpu.core_type = #tpu.core_type<tc>} {
    %c0 = arith.constant 0 : index
    %c0_0 = arith.constant 0 : index
    %0 = memref.load %arg0[%c0, %c0_0] : memref<3x2xf32, #tpu.memory_space<smem>>
    %c0_1 = arith.constant 0 : index
    %c1 = arith.constant 1 : index
    %1 = memref.load %arg0[%c0_1, %c1] : memref<3x2xf32, #tpu.memory_space<smem>>
    %c0_2 = arith.constant 0 : index
    %c0_3 = arith.constant 0 : index
    %2 = vector.load %arg1[%c0_2, %c0_3] : memref<16x64xf32, #tpu.memory_space<vmem>>, vector<16x64xf32>
    %c0_4 = arith.constant 0 : index
    %c0_5 = arith.constant 0 : index
    %c0_6 = arith.constant 0 : index
    %3 = vector.load %arg7[%c0_4, %c0_5, %c0_6] : memref<3x64x32xf32, #tpu.memory_space<vmem>>, vector<1x64x32xf32>
    %4 = vector.shape_cast %3 : vector<1x64x32xf32> to vector<64x32xf32>
    %cst = arith.constant dense<0.000000e+00> : vector<16x32xf32>
    %5 = tpu.matmul %2, %4, %cst {dimension_numbers = #tpu.dot_dimension_numbers<[1], [0], [0], [1], [0, 0, 1, 1], [], []>} : vector<16x64xf32>, vector<64x32xf32>, vector<16x32xf32> -> vector<16x32xf32>
    %c0_7 = arith.constant 0 : index
    %c0_8 = arith.constant 0 : index
    %c0_9 = arith.constant 0 : index
    %6 = vector.load %arg8[%c0_7, %c0_8, %c0_9] : memref<3x1x32xf32, #tpu.memory_space<vmem>>, vector<1x1x32xf32>
    %7 = vector.shape_cast %6 : vector<1x1x32xf32> to vector<1x32xf32>
    %8 = vector.broadcast %7 : vector<1x32xf32> to vector<16x32xf32>
    %9 = arith.addf %5, %8 : vector<16x32xf32>
    %c0_10 = arith.constant 0 : index
    %c0_11 = arith.constant 0 : index
    %10 = vector.load %arg2[%c0_10, %c0_11] : memref<16x64xf32, #tpu.memory_space<vmem>>, vector<16x64xf32>
    %c0_12 = arith.constant 0 : index
    %c0_13 = arith.constant 0 : index
    %c0_14 = arith.constant 0 : index
    %11 = vector.load %arg9[%c0_12, %c0_13, %c0_14] : memref<3x64x32xf32, #tpu.memory_space<vmem>>, vector<1x64x32xf32>
    %12 = vector.shape_cast %11 : vector<1x64x32xf32> to vector<64x32xf32>
    %cst_15 = arith.constant dense<0.000000e+00> : vector<16x32xf32>
    %13 = tpu.matmul %10, %12, %cst_15 {dimension_numbers = #tpu.dot_dimension_numbers<[1], [0], [0], [1], [0, 0, 1, 1], [], []>} : vector<16x64xf32>, vector<64x32xf32>, vector<16x32xf32> -> vector<16x32xf32>
    %c0_16 = arith.constant 0 : index
    %c0_17 = arith.constant 0 : index
    %c0_18 = arith.constant 0 : index
    %14 = vector.load %arg10[%c0_16, %c0_17, %c0_18] : memref<3x1x32xf32, #tpu.memory_space<vmem>>, vector<1x1x32xf32>
    %15 = vector.shape_cast %14 : vector<1x1x32xf32> to vector<1x32xf32>
    %16 = vector.broadcast %15 : vector<1x32xf32> to vector<16x32xf32>
    %17 = arith.addf %13, %16 : vector<16x32xf32>
    %18 = vector.broadcast %0 : f32 to vector<16x32xf32>
    %19 = arith.mulf %18, %9 : vector<16x32xf32>
    %20 = vector.broadcast %1 : f32 to vector<16x32xf32>
    %21 = arith.mulf %20, %17 : vector<16x32xf32>
    %22 = arith.addf %19, %21 : vector<16x32xf32>
    %c1_19 = arith.constant 1 : index
    %c0_20 = arith.constant 0 : index
    %23 = memref.load %arg0[%c1_19, %c0_20] : memref<3x2xf32, #tpu.memory_space<smem>>
    %c1_21 = arith.constant 1 : index
    %c1_22 = arith.constant 1 : index
    %24 = memref.load %arg0[%c1_21, %c1_22] : memref<3x2xf32, #tpu.memory_space<smem>>
    %c0_23 = arith.constant 0 : index
    %c0_24 = arith.constant 0 : index
    %25 = vector.load %arg3[%c0_23, %c0_24] : memref<16x64xf32, #tpu.memory_space<vmem>>, vector<16x64xf32>
    %c1_25 = arith.constant 1 : index
    %c0_26 = arith.constant 0 : index
    %c0_27 = arith.constant 0 : index
    %26 = vector.load %arg7[%c1_25, %c0_26, %c0_27] : memref<3x64x32xf32, #tpu.memory_space<vmem>>, vector<1x64x32xf32>
    %27 = vector.shape_cast %26 : vector<1x64x32xf32> to vector<64x32xf32>
    %cst_28 = arith.constant dense<0.000000e+00> : vector<16x32xf32>
    %28 = tpu.matmul %25, %27, %cst_28 {dimension_numbers = #tpu.dot_dimension_numbers<[1], [0], [0], [1], [0, 0, 1, 1], [], []>} : vector<16x64xf32>, vector<64x32xf32>, vector<16x32xf32> -> vector<16x32xf32>
    %c1_29 = arith.constant 1 : index
    %c0_30 = arith.constant 0 : index
    %c0_31 = arith.constant 0 : index
    %29 = vector.load %arg8[%c1_29, %c0_30, %c0_31] : memref<3x1x32xf32, #tpu.memory_space<vmem>>, vector<1x1x32xf32>
    %30 = vector.shape_cast %29 : vector<1x1x32xf32> to vector<1x32xf32>
    %31 = vector.broadcast %30 : vector<1x32xf32> to vector<16x32xf32>
    %32 = arith.addf %28, %31 : vector<16x32xf32>
    %c0_32 = arith.constant 0 : index
    %c0_33 = arith.constant 0 : index
    %33 = vector.load %arg4[%c0_32, %c0_33] : memref<16x64xf32, #tpu.memory_space<vmem>>, vector<16x64xf32>
    %c1_34 = arith.constant 1 : index
    %c0_35 = arith.constant 0 : index
    %c0_36 = arith.constant 0 : index
    %34 = vector.load %arg9[%c1_34, %c0_35, %c0_36] : memref<3x64x32xf32, #tpu.memory_space<vmem>>, vector<1x64x32xf32>
    %35 = vector.shape_cast %34 : vector<1x64x32xf32> to vector<64x32xf32>
    %cst_37 = arith.constant dense<0.000000e+00> : vector<16x32xf32>
    %36 = tpu.matmul %33, %35, %cst_37 {dimension_numbers = #tpu.dot_dimension_numbers<[1], [0], [0], [1], [0, 0, 1, 1], [], []>} : vector<16x64xf32>, vector<64x32xf32>, vector<16x32xf32> -> vector<16x32xf32>
    %c1_38 = arith.constant 1 : index
    %c0_39 = arith.constant 0 : index
    %c0_40 = arith.constant 0 : index
    %37 = vector.load %arg10[%c1_38, %c0_39, %c0_40] : memref<3x1x32xf32, #tpu.memory_space<vmem>>, vector<1x1x32xf32>
    %38 = vector.shape_cast %37 : vector<1x1x32xf32> to vector<1x32xf32>
    %39 = vector.broadcast %38 : vector<1x32xf32> to vector<16x32xf32>
    %40 = arith.addf %36, %39 : vector<16x32xf32>
    %41 = vector.broadcast %23 : f32 to vector<16x32xf32>
    %42 = arith.mulf %41, %32 : vector<16x32xf32>
    %43 = vector.broadcast %24 : f32 to vector<16x32xf32>
    %44 = arith.mulf %43, %40 : vector<16x32xf32>
    %45 = arith.addf %42, %44 : vector<16x32xf32>
    %c2 = arith.constant 2 : index
    %c0_41 = arith.constant 0 : index
    %46 = memref.load %arg0[%c2, %c0_41] : memref<3x2xf32, #tpu.memory_space<smem>>
    %c2_42 = arith.constant 2 : index
    %c1_43 = arith.constant 1 : index
    %47 = memref.load %arg0[%c2_42, %c1_43] : memref<3x2xf32, #tpu.memory_space<smem>>
    %c0_44 = arith.constant 0 : index
    %c0_45 = arith.constant 0 : index
    %48 = vector.load %arg5[%c0_44, %c0_45] : memref<16x64xf32, #tpu.memory_space<vmem>>, vector<16x64xf32>
    %c2_46 = arith.constant 2 : index
    %c0_47 = arith.constant 0 : index
    %c0_48 = arith.constant 0 : index
    %49 = vector.load %arg7[%c2_46, %c0_47, %c0_48] : memref<3x64x32xf32, #tpu.memory_space<vmem>>, vector<1x64x32xf32>
    %50 = vector.shape_cast %49 : vector<1x64x32xf32> to vector<64x32xf32>
    %cst_49 = arith.constant dense<0.000000e+00> : vector<16x32xf32>
    %51 = tpu.matmul %48, %50, %cst_49 {dimension_numbers = #tpu.dot_dimension_numbers<[1], [0], [0], [1], [0, 0, 1, 1], [], []>} : vector<16x64xf32>, vector<64x32xf32>, vector<16x32xf32> -> vector<16x32xf32>
    %c2_50 = arith.constant 2 : index
    %c0_51 = arith.constant 0 : index
    %c0_52 = arith.constant 0 : index
    %52 = vector.load %arg8[%c2_50, %c0_51, %c0_52] : memref<3x1x32xf32, #tpu.memory_space<vmem>>, vector<1x1x32xf32>
    %53 = vector.shape_cast %52 : vector<1x1x32xf32> to vector<1x32xf32>
    %54 = vector.broadcast %53 : vector<1x32xf32> to vector<16x32xf32>
    %55 = arith.addf %51, %54 : vector<16x32xf32>
    %c0_53 = arith.constant 0 : index
    %c0_54 = arith.constant 0 : index
    %56 = vector.load %arg6[%c0_53, %c0_54] : memref<16x64xf32, #tpu.memory_space<vmem>>, vector<16x64xf32>
    %c2_55 = arith.constant 2 : index
    %c0_56 = arith.constant 0 : index
    %c0_57 = arith.constant 0 : index
    %57 = vector.load %arg9[%c2_55, %c0_56, %c0_57] : memref<3x64x32xf32, #tpu.memory_space<vmem>>, vector<1x64x32xf32>
    %58 = vector.shape_cast %57 : vector<1x64x32xf32> to vector<64x32xf32>
    %cst_58 = arith.constant dense<0.000000e+00> : vector<16x32xf32>
    %59 = tpu.matmul %56, %58, %cst_58 {dimension_numbers = #tpu.dot_dimension_numbers<[1], [0], [0], [1], [0, 0, 1, 1], [], []>} : vector<16x64xf32>, vector<64x32xf32>, vector<16x32xf32> -> vector<16x32xf32>
    %c2_59 = arith.constant 2 : index
    %c0_60 = arith.constant 0 : index
    %c0_61 = arith.constant 0 : index
    %60 = vector.load %arg10[%c2_59, %c0_60, %c0_61] : memref<3x1x32xf32, #tpu.memory_space<vmem>>, vector<1x1x32xf32>
    %61 = vector.shape_cast %60 : vector<1x1x32xf32> to vector<1x32xf32>
    %62 = vector.broadcast %61 : vector<1x32xf32> to vector<16x32xf32>
    %63 = arith.addf %59, %62 : vector<16x32xf32>
    %64 = vector.broadcast %46 : f32 to vector<16x32xf32>
    %65 = arith.mulf %64, %55 : vector<16x32xf32>
    %66 = vector.broadcast %47 : f32 to vector<16x32xf32>
    %67 = arith.mulf %66, %63 : vector<16x32xf32>
    %68 = arith.addf %65, %67 : vector<16x32xf32>
    %c0_62 = arith.constant 0 : index
    %c0_63 = arith.constant 0 : index
    %c0_64 = arith.constant 0 : index
    %69 = vector.load %arg11[%c0_62, %c0_63, %c0_64] : memref<3x32x32xf32, #tpu.memory_space<vmem>>, vector<1x32x32xf32>
    %70 = vector.shape_cast %69 : vector<1x32x32xf32> to vector<32x32xf32>
    %cst_65 = arith.constant dense<0.000000e+00> : vector<16x32xf32>
    %71 = tpu.matmul %22, %70, %cst_65 {dimension_numbers = #tpu.dot_dimension_numbers<[1], [0], [0], [1], [0, 0, 1, 1], [], []>} : vector<16x32xf32>, vector<32x32xf32>, vector<16x32xf32> -> vector<16x32xf32>
    %c0_66 = arith.constant 0 : index
    %c0_67 = arith.constant 0 : index
    %c0_68 = arith.constant 0 : index
    %72 = vector.load %arg12[%c0_66, %c0_67, %c0_68] : memref<3x1x32xf32, #tpu.memory_space<vmem>>, vector<1x1x32xf32>
    %73 = vector.shape_cast %72 : vector<1x1x32xf32> to vector<1x32xf32>
    %74 = vector.broadcast %73 : vector<1x32xf32> to vector<16x32xf32>
    %75 = arith.addf %71, %74 : vector<16x32xf32>
    %c0_69 = arith.constant 0 : index
    %c0_70 = arith.constant 0 : index
    %c0_71 = arith.constant 0 : index
    %76 = vector.load %arg26[%c0_69, %c0_70, %c0_71] : memref<3x16x32xf32, #tpu.memory_space<vmem>>, vector<1x16x32xf32>
    %77 = vector.shape_cast %76 : vector<1x16x32xf32> to vector<16x32xf32>
    %78 = vector.shape_cast %75 : vector<16x32xf32> to vector<1x16x32xf32>
    tpu.vector_store %arg26[%c0_69, %c0_70, %c0_71], %78 {strides = array<i32>} : memref<3x16x32xf32, #tpu.memory_space<vmem>>, vector<1x16x32xf32>,
    %c1_72 = arith.constant 1 : index
    %c0_73 = arith.constant 0 : index
    %c0_74 = arith.constant 0 : index
    %79 = vector.load %arg11[%c1_72, %c0_73, %c0_74] : memref<3x32x32xf32, #tpu.memory_space<vmem>>, vector<1x32x32xf32>
    %80 = vector.shape_cast %79 : vector<1x32x32xf32> to vector<32x32xf32>
    %cst_75 = arith.constant dense<0.000000e+00> : vector<16x32xf32>
    %81 = tpu.matmul %45, %80, %cst_75 {dimension_numbers = #tpu.dot_dimension_numbers<[1], [0], [0], [1], [0, 0, 1, 1], [], []>} : vector<16x32xf32>, vector<32x32xf32>, vector<16x32xf32> -> vector<16x32xf32>
    %c1_76 = arith.constant 1 : index
    %c0_77 = arith.constant 0 : index
    %c0_78 = arith.constant 0 : index
    %82 = vector.load %arg12[%c1_76, %c0_77, %c0_78] : memref<3x1x32xf32, #tpu.memory_space<vmem>>, vector<1x1x32xf32>
    %83 = vector.shape_cast %82 : vector<1x1x32xf32> to vector<1x32xf32>
    %84 = vector.broadcast %83 : vector<1x32xf32> to vector<16x32xf32>
    %85 = arith.addf %81, %84 : vector<16x32xf32>
    %c1_79 = arith.constant 1 : index
    %c0_80 = arith.constant 0 : index
    %c0_81 = arith.constant 0 : index
    %86 = vector.load %arg26[%c1_79, %c0_80, %c0_81] : memref<3x16x32xf32, #tpu.memory_space<vmem>>, vector<1x16x32xf32>
    %87 = vector.shape_cast %86 : vector<1x16x32xf32> to vector<16x32xf32>
    %88 = vector.shape_cast %85 : vector<16x32xf32> to vector<1x16x32xf32>
    tpu.vector_store %arg26[%c1_79, %c0_80, %c0_81], %88 {strides = array<i32>} : memref<3x16x32xf32, #tpu.memory_space<vmem>>, vector<1x16x32xf32>,
    %c2_82 = arith.constant 2 : index
    %c0_83 = arith.constant 0 : index
    %c0_84 = arith.constant 0 : index
    %89 = vector.load %arg11[%c2_82, %c0_83, %c0_84] : memref<3x32x32xf32, #tpu.memory_space<vmem>>, vector<1x32x32xf32>
    %90 = vector.shape_cast %89 : vector<1x32x32xf32> to vector<32x32xf32>
    %cst_85 = arith.constant dense<0.000000e+00> : vector<16x32xf32>
    %91 = tpu.matmul %68, %90, %cst_85 {dimension_numbers = #tpu.dot_dimension_numbers<[1], [0], [0], [1], [0, 0, 1, 1], [], []>} : vector<16x32xf32>, vector<32x32xf32>, vector<16x32xf32> -> vector<16x32xf32>
    %c2_86 = arith.constant 2 : index
    %c0_87 = arith.constant 0 : index
    %c0_88 = arith.constant 0 : index
    %92 = vector.load %arg12[%c2_86, %c0_87, %c0_88] : memref<3x1x32xf32, #tpu.memory_space<vmem>>, vector<1x1x32xf32>
    %93 = vector.shape_cast %92 : vector<1x1x32xf32> to vector<1x32xf32>
    %94 = vector.broadcast %93 : vector<1x32xf32> to vector<16x32xf32>
    %95 = arith.addf %91, %94 : vector<16x32xf32>
    %c2_89 = arith.constant 2 : index
    %c0_90 = arith.constant 0 : index
    %c0_91 = arith.constant 0 : index
    %96 = vector.load %arg26[%c2_89, %c0_90, %c0_91] : memref<3x16x32xf32, #tpu.memory_space<vmem>>, vector<1x16x32xf32>
    %97 = vector.shape_cast %96 : vector<1x16x32xf32> to vector<16x32xf32>
    %98 = vector.shape_cast %95 : vector<16x32xf32> to vector<1x16x32xf32>
    tpu.vector_store %arg26[%c2_89, %c0_90, %c0_91], %98 {strides = array<i32>} : memref<3x16x32xf32, #tpu.memory_space<vmem>>, vector<1x16x32xf32>,
    %c0_92 = arith.constant 0 : index
    %c0_93 = arith.constant 0 : index
    %c0_94 = arith.constant 0 : index
    %99 = vector.load %arg26[%c0_92, %c0_93, %c0_94] : memref<3x16x32xf32, #tpu.memory_space<vmem>>, vector<1x8x8xf32>
    %100 = vector.shape_cast %99 : vector<1x8x8xf32> to vector<8x8xf32>
    %c1_95 = arith.constant 1 : index
    %c0_96 = arith.constant 0 : index
    %c0_97 = arith.constant 0 : index
    %101 = vector.load %arg26[%c1_95, %c0_96, %c0_97] : memref<3x16x32xf32, #tpu.memory_space<vmem>>, vector<1x8x8xf32>
    %102 = vector.shape_cast %101 : vector<1x8x8xf32> to vector<8x8xf32>
    %c2_98 = arith.constant 2 : index
    %c0_99 = arith.constant 0 : index
    %c0_100 = arith.constant 0 : index
    %103 = vector.load %arg26[%c2_98, %c0_99, %c0_100] : memref<3x16x32xf32, #tpu.memory_space<vmem>>, vector<1x8x8xf32>
    %104 = vector.shape_cast %103 : vector<1x8x8xf32> to vector<8x8xf32>
    %105 = tpu.transpose %102, [1, 0] : vector<8x8xf32> -> vector<8x8xf32>
    %cst_101 = arith.constant dense<0.000000e+00> : vector<8x8xf32>
    %106 = tpu.matmul %100, %105, %cst_101 {dimension_numbers = #tpu.dot_dimension_numbers<[1], [0], [0], [1], [0, 0, 1, 1], [], []>} : vector<8x8xf32>, vector<8x8xf32>, vector<8x8xf32> -> vector<8x8xf32>
    %cst_102 = arith.constant 0.353553385 : f32
    %107 = vector.broadcast %cst_102 : f32 to vector<8x8xf32>
    %108 = arith.mulf %106, %107 : vector<8x8xf32>
    %cst_103 = arith.constant dense<0xFF800000> : vector<8xf32>
    %109 = vector.multi_reduction <maximumf>, %108, %cst_103 [1] : vector<8x8xf32> to vector<8xf32>
    %110 = vector.shape_cast %109 : vector<8xf32> to vector<8x1xf32>
    %111 = vector.broadcast %110 : vector<8x1xf32> to vector<8x8xf32>
    %112 = arith.subf %108, %111 : vector<8x8xf32>
    %113 = math.exp %112 : vector<8x8xf32>
    %cst_104 = arith.constant dense<0.000000e+00> : vector<8xf32>
    %114 = vector.multi_reduction <add>, %113, %cst_104 [1] : vector<8x8xf32> to vector<8xf32>
    %115 = vector.shape_cast %114 : vector<8xf32> to vector<8x1xf32>
    %116 = tpu.reciprocal %115 : vector<8x1xf32> -> vector<8x1xf32>
    %117 = vector.broadcast %116 : vector<8x1xf32> to vector<8x8xf32>
    %118 = arith.mulf %113, %117 : vector<8x8xf32>
    %cst_105 = arith.constant dense<0.000000e+00> : vector<8x8xf32>
    %119 = tpu.matmul %118, %104, %cst_105 {dimension_numbers = #tpu.dot_dimension_numbers<[1], [0], [0], [1], [0, 0, 1, 1], [], []>} : vector<8x8xf32>, vector<8x8xf32>, vector<8x8xf32> -> vector<8x8xf32>
    %c0_106 = arith.constant 0 : index
    %c0_107 = arith.constant 0 : index
    %120 = vector.load %arg27[%c0_106, %c0_107] : memref<16x32xf32, #tpu.memory_space<vmem>>, vector<8x8xf32>
    tpu.vector_store %arg27[%c0_106, %c0_107], %119 {strides = array<i32>} : memref<16x32xf32, #tpu.memory_space<vmem>>, vector<8x8xf32>,
    %c0_108 = arith.constant 0 : index
    %c0_109 = arith.constant 0 : index
    %c8 = arith.constant 8 : index
    %121 = vector.load %arg26[%c0_108, %c0_109, %c8] : memref<3x16x32xf32, #tpu.memory_space<vmem>>, vector<1x8x8xf32>
    %122 = vector.shape_cast %121 : vector<1x8x8xf32> to vector<8x8xf32>
    %c1_110 = arith.constant 1 : index
    %c0_111 = arith.constant 0 : index
    %c8_112 = arith.constant 8 : index
    %123 = vector.load %arg26[%c1_110, %c0_111, %c8_112] : memref<3x16x32xf32, #tpu.memory_space<vmem>>, vector<1x8x8xf32>
    %124 = vector.shape_cast %123 : vector<1x8x8xf32> to vector<8x8xf32>
    %c2_113 = arith.constant 2 : index
    %c0_114 = arith.constant 0 : index
    %c8_115 = arith.constant 8 : index
    %125 = vector.load %arg26[%c2_113, %c0_114, %c8_115] : memref<3x16x32xf32, #tpu.memory_space<vmem>>, vector<1x8x8xf32>
    %126 = vector.shape_cast %125 : vector<1x8x8xf32> to vector<8x8xf32>
    %127 = tpu.transpose %124, [1, 0] : vector<8x8xf32> -> vector<8x8xf32>
    %cst_116 = arith.constant dense<0.000000e+00> : vector<8x8xf32>
    %128 = tpu.matmul %122, %127, %cst_116 {dimension_numbers = #tpu.dot_dimension_numbers<[1], [0], [0], [1], [0, 0, 1, 1], [], []>} : vector<8x8xf32>, vector<8x8xf32>, vector<8x8xf32> -> vector<8x8xf32>
    %cst_117 = arith.constant 0.353553385 : f32
    %129 = vector.broadcast %cst_117 : f32 to vector<8x8xf32>
    %130 = arith.mulf %128, %129 : vector<8x8xf32>
    %cst_118 = arith.constant dense<0xFF800000> : vector<8xf32>
    %131 = vector.multi_reduction <maximumf>, %130, %cst_118 [1] : vector<8x8xf32> to vector<8xf32>
    %132 = vector.shape_cast %131 : vector<8xf32> to vector<8x1xf32>
    %133 = vector.broadcast %132 : vector<8x1xf32> to vector<8x8xf32>
    %134 = arith.subf %130, %133 : vector<8x8xf32>
    %135 = math.exp %134 : vector<8x8xf32>
    %cst_119 = arith.constant dense<0.000000e+00> : vector<8xf32>
    %136 = vector.multi_reduction <add>, %135, %cst_119 [1] : vector<8x8xf32> to vector<8xf32>
    %137 = vector.shape_cast %136 : vector<8xf32> to vector<8x1xf32>
    %138 = tpu.reciprocal %137 : vector<8x1xf32> -> vector<8x1xf32>
    %139 = vector.broadcast %138 : vector<8x1xf32> to vector<8x8xf32>
    %140 = arith.mulf %135, %139 : vector<8x8xf32>
    %cst_120 = arith.constant dense<0.000000e+00> : vector<8x8xf32>
    %141 = tpu.matmul %140, %126, %cst_120 {dimension_numbers = #tpu.dot_dimension_numbers<[1], [0], [0], [1], [0, 0, 1, 1], [], []>} : vector<8x8xf32>, vector<8x8xf32>, vector<8x8xf32> -> vector<8x8xf32>
    %c0_121 = arith.constant 0 : index
    %c8_122 = arith.constant 8 : index
    %142 = vector.load %arg27[%c0_121, %c8_122] : memref<16x32xf32, #tpu.memory_space<vmem>>, vector<8x8xf32>
    tpu.vector_store %arg27[%c0_121, %c8_122], %141 {strides = array<i32>} : memref<16x32xf32, #tpu.memory_space<vmem>>, vector<8x8xf32>,
    %c0_123 = arith.constant 0 : index
    %c0_124 = arith.constant 0 : index
    %c16 = arith.constant 16 : index
    %143 = vector.load %arg26[%c0_123, %c0_124, %c16] : memref<3x16x32xf32, #tpu.memory_space<vmem>>, vector<1x8x8xf32>
    %144 = vector.shape_cast %143 : vector<1x8x8xf32> to vector<8x8xf32>
    %c1_125 = arith.constant 1 : index
    %c0_126 = arith.constant 0 : index
    %c16_127 = arith.constant 16 : index
    %145 = vector.load %arg26[%c1_125, %c0_126, %c16_127] : memref<3x16x32xf32, #tpu.memory_space<vmem>>, vector<1x8x8xf32>
    %146 = vector.shape_cast %145 : vector<1x8x8xf32> to vector<8x8xf32>
    %c2_128 = arith.constant 2 : index
    %c0_129 = arith.constant 0 : index
    %c16_130 = arith.constant 16 : index
    %147 = vector.load %arg26[%c2_128, %c0_129, %c16_130] : memref<3x16x32xf32, #tpu.memory_space<vmem>>, vector<1x8x8xf32>
    %148 = vector.shape_cast %147 : vector<1x8x8xf32> to vector<8x8xf32>
    %149 = tpu.transpose %146, [1, 0] : vector<8x8xf32> -> vector<8x8xf32>
    %cst_131 = arith.constant dense<0.000000e+00> : vector<8x8xf32>
    %150 = tpu.matmul %144, %149, %cst_131 {dimension_numbers = #tpu.dot_dimension_numbers<[1], [0], [0], [1], [0, 0, 1, 1], [], []>} : vector<8x8xf32>, vector<8x8xf32>, vector<8x8xf32> -> vector<8x8xf32>
    %cst_132 = arith.constant 0.353553385 : f32
    %151 = vector.broadcast %cst_132 : f32 to vector<8x8xf32>
    %152 = arith.mulf %150, %151 : vector<8x8xf32>
    %cst_133 = arith.constant dense<0xFF800000> : vector<8xf32>
    %153 = vector.multi_reduction <maximumf>, %152, %cst_133 [1] : vector<8x8xf32> to vector<8xf32>
    %154 = vector.shape_cast %153 : vector<8xf32> to vector<8x1xf32>
    %155 = vector.broadcast %154 : vector<8x1xf32> to vector<8x8xf32>
    %156 = arith.subf %152, %155 : vector<8x8xf32>
    %157 = math.exp %156 : vector<8x8xf32>
    %cst_134 = arith.constant dense<0.000000e+00> : vector<8xf32>
    %158 = vector.multi_reduction <add>, %157, %cst_134 [1] : vector<8x8xf32> to vector<8xf32>
    %159 = vector.shape_cast %158 : vector<8xf32> to vector<8x1xf32>
    %160 = tpu.reciprocal %159 : vector<8x1xf32> -> vector<8x1xf32>
    %161 = vector.broadcast %160 : vector<8x1xf32> to vector<8x8xf32>
    %162 = arith.mulf %157, %161 : vector<8x8xf32>
    %cst_135 = arith.constant dense<0.000000e+00> : vector<8x8xf32>
    %163 = tpu.matmul %162, %148, %cst_135 {dimension_numbers = #tpu.dot_dimension_numbers<[1], [0], [0], [1], [0, 0, 1, 1], [], []>} : vector<8x8xf32>, vector<8x8xf32>, vector<8x8xf32> -> vector<8x8xf32>
    %c0_136 = arith.constant 0 : index
    %c16_137 = arith.constant 16 : index
    %164 = vector.load %arg27[%c0_136, %c16_137] : memref<16x32xf32, #tpu.memory_space<vmem>>, vector<8x8xf32>
    tpu.vector_store %arg27[%c0_136, %c16_137], %163 {strides = array<i32>} : memref<16x32xf32, #tpu.memory_space<vmem>>, vector<8x8xf32>,
    %c0_138 = arith.constant 0 : index
    %c0_139 = arith.constant 0 : index
    %c24 = arith.constant 24 : index
    %165 = vector.load %arg26[%c0_138, %c0_139, %c24] : memref<3x16x32xf32, #tpu.memory_space<vmem>>, vector<1x8x8xf32>
    %166 = vector.shape_cast %165 : vector<1x8x8xf32> to vector<8x8xf32>
    %c1_140 = arith.constant 1 : index
    %c0_141 = arith.constant 0 : index
    %c24_142 = arith.constant 24 : index
    %167 = vector.load %arg26[%c1_140, %c0_141, %c24_142] : memref<3x16x32xf32, #tpu.memory_space<vmem>>, vector<1x8x8xf32>
    %168 = vector.shape_cast %167 : vector<1x8x8xf32> to vector<8x8xf32>
    %c2_143 = arith.constant 2 : index
    %c0_144 = arith.constant 0 : index
    %c24_145 = arith.constant 24 : index
    %169 = vector.load %arg26[%c2_143, %c0_144, %c24_145] : memref<3x16x32xf32, #tpu.memory_space<vmem>>, vector<1x8x8xf32>
    %170 = vector.shape_cast %169 : vector<1x8x8xf32> to vector<8x8xf32>
    %171 = tpu.transpose %168, [1, 0] : vector<8x8xf32> -> vector<8x8xf32>
    %cst_146 = arith.constant dense<0.000000e+00> : vector<8x8xf32>
    %172 = tpu.matmul %166, %171, %cst_146 {dimension_numbers = #tpu.dot_dimension_numbers<[1], [0], [0], [1], [0, 0, 1, 1], [], []>} : vector<8x8xf32>, vector<8x8xf32>, vector<8x8xf32> -> vector<8x8xf32>
    %cst_147 = arith.constant 0.353553385 : f32
    %173 = vector.broadcast %cst_147 : f32 to vector<8x8xf32>
    %174 = arith.mulf %172, %173 : vector<8x8xf32>
    %cst_148 = arith.constant dense<0xFF800000> : vector<8xf32>
    %175 = vector.multi_reduction <maximumf>, %174, %cst_148 [1] : vector<8x8xf32> to vector<8xf32>
    %176 = vector.shape_cast %175 : vector<8xf32> to vector<8x1xf32>
    %177 = vector.broadcast %176 : vector<8x1xf32> to vector<8x8xf32>
    %178 = arith.subf %174, %177 : vector<8x8xf32>
    %179 = math.exp %178 : vector<8x8xf32>
    %cst_149 = arith.constant dense<0.000000e+00> : vector<8xf32>
    %180 = vector.multi_reduction <add>, %179, %cst_149 [1] : vector<8x8xf32> to vector<8xf32>
    %181 = vector.shape_cast %180 : vector<8xf32> to vector<8x1xf32>
    %182 = tpu.reciprocal %181 : vector<8x1xf32> -> vector<8x1xf32>
    %183 = vector.broadcast %182 : vector<8x1xf32> to vector<8x8xf32>
    %184 = arith.mulf %179, %183 : vector<8x8xf32>
    %cst_150 = arith.constant dense<0.000000e+00> : vector<8x8xf32>
    %185 = tpu.matmul %184, %170, %cst_150 {dimension_numbers = #tpu.dot_dimension_numbers<[1], [0], [0], [1], [0, 0, 1, 1], [], []>} : vector<8x8xf32>, vector<8x8xf32>, vector<8x8xf32> -> vector<8x8xf32>
    %c0_151 = arith.constant 0 : index
    %c24_152 = arith.constant 24 : index
    %186 = vector.load %arg27[%c0_151, %c24_152] : memref<16x32xf32, #tpu.memory_space<vmem>>, vector<8x8xf32>
    tpu.vector_store %arg27[%c0_151, %c24_152], %185 {strides = array<i32>} : memref<16x32xf32, #tpu.memory_space<vmem>>, vector<8x8xf32>,
    %c0_153 = arith.constant 0 : index
    %c8_154 = arith.constant 8 : index
    %c0_155 = arith.constant 0 : index
    %187 = vector.load %arg26[%c0_153, %c8_154, %c0_155] : memref<3x16x32xf32, #tpu.memory_space<vmem>>, vector<1x8x8xf32>
    %188 = vector.shape_cast %187 : vector<1x8x8xf32> to vector<8x8xf32>
    %c1_156 = arith.constant 1 : index
    %c8_157 = arith.constant 8 : index
    %c0_158 = arith.constant 0 : index
    %189 = vector.load %arg26[%c1_156, %c8_157, %c0_158] : memref<3x16x32xf32, #tpu.memory_space<vmem>>, vector<1x8x8xf32>
    %190 = vector.shape_cast %189 : vector<1x8x8xf32> to vector<8x8xf32>
    %c2_159 = arith.constant 2 : index
    %c8_160 = arith.constant 8 : index
    %c0_161 = arith.constant 0 : index
    %191 = vector.load %arg26[%c2_159, %c8_160, %c0_161] : memref<3x16x32xf32, #tpu.memory_space<vmem>>, vector<1x8x8xf32>
    %192 = vector.shape_cast %191 : vector<1x8x8xf32> to vector<8x8xf32>
    %193 = tpu.transpose %190, [1, 0] : vector<8x8xf32> -> vector<8x8xf32>
    %cst_162 = arith.constant dense<0.000000e+00> : vector<8x8xf32>
    %194 = tpu.matmul %188, %193, %cst_162 {dimension_numbers = #tpu.dot_dimension_numbers<[1], [0], [0], [1], [0, 0, 1, 1], [], []>} : vector<8x8xf32>, vector<8x8xf32>, vector<8x8xf32> -> vector<8x8xf32>
    %cst_163 = arith.constant 0.353553385 : f32
    %195 = vector.broadcast %cst_163 : f32 to vector<8x8xf32>
    %196 = arith.mulf %194, %195 : vector<8x8xf32>
    %cst_164 = arith.constant dense<0xFF800000> : vector<8xf32>
    %197 = vector.multi_reduction <maximumf>, %196, %cst_164 [1] : vector<8x8xf32> to vector<8xf32>
    %198 = vector.shape_cast %197 : vector<8xf32> to vector<8x1xf32>
    %199 = vector.broadcast %198 : vector<8x1xf32> to vector<8x8xf32>
    %200 = arith.subf %196, %199 : vector<8x8xf32>
    %201 = math.exp %200 : vector<8x8xf32>
    %cst_165 = arith.constant dense<0.000000e+00> : vector<8xf32>
    %202 = vector.multi_reduction <add>, %201, %cst_165 [1] : vector<8x8xf32> to vector<8xf32>
    %203 = vector.shape_cast %202 : vector<8xf32> to vector<8x1xf32>
    %204 = tpu.reciprocal %203 : vector<8x1xf32> -> vector<8x1xf32>
    %205 = vector.broadcast %204 : vector<8x1xf32> to vector<8x8xf32>
    %206 = arith.mulf %201, %205 : vector<8x8xf32>
    %cst_166 = arith.constant dense<0.000000e+00> : vector<8x8xf32>
    %207 = tpu.matmul %206, %192, %cst_166 {dimension_numbers = #tpu.dot_dimension_numbers<[1], [0], [0], [1], [0, 0, 1, 1], [], []>} : vector<8x8xf32>, vector<8x8xf32>, vector<8x8xf32> -> vector<8x8xf32>
    %c8_167 = arith.constant 8 : index
    %c0_168 = arith.constant 0 : index
    %208 = vector.load %arg27[%c8_167, %c0_168] : memref<16x32xf32, #tpu.memory_space<vmem>>, vector<8x8xf32>
    tpu.vector_store %arg27[%c8_167, %c0_168], %207 {strides = array<i32>} : memref<16x32xf32, #tpu.memory_space<vmem>>, vector<8x8xf32>,
    %c0_169 = arith.constant 0 : index
    %c8_170 = arith.constant 8 : index
    %c8_171 = arith.constant 8 : index
    %209 = vector.load %arg26[%c0_169, %c8_170, %c8_171] : memref<3x16x32xf32, #tpu.memory_space<vmem>>, vector<1x8x8xf32>
    %210 = vector.shape_cast %209 : vector<1x8x8xf32> to vector<8x8xf32>
    %c1_172 = arith.constant 1 : index
    %c8_173 = arith.constant 8 : index
    %c8_174 = arith.constant 8 : index
    %211 = vector.load %arg26[%c1_172, %c8_173, %c8_174] : memref<3x16x32xf32, #tpu.memory_space<vmem>>, vector<1x8x8xf32>
    %212 = vector.shape_cast %211 : vector<1x8x8xf32> to vector<8x8xf32>
    %c2_175 = arith.constant 2 : index
    %c8_176 = arith.constant 8 : index
    %c8_177 = arith.constant 8 : index
    %213 = vector.load %arg26[%c2_175, %c8_176, %c8_177] : memref<3x16x32xf32, #tpu.memory_space<vmem>>, vector<1x8x8xf32>
    %214 = vector.shape_cast %213 : vector<1x8x8xf32> to vector<8x8xf32>
    %215 = tpu.transpose %212, [1, 0] : vector<8x8xf32> -> vector<8x8xf32>
    %cst_178 = arith.constant dense<0.000000e+00> : vector<8x8xf32>
    %216 = tpu.matmul %210, %215, %cst_178 {dimension_numbers = #tpu.dot_dimension_numbers<[1], [0], [0], [1], [0, 0, 1, 1], [], []>} : vector<8x8xf32>, vector<8x8xf32>, vector<8x8xf32> -> vector<8x8xf32>
    %cst_179 = arith.constant 0.353553385 : f32
    %217 = vector.broadcast %cst_179 : f32 to vector<8x8xf32>
    %218 = arith.mulf %216, %217 : vector<8x8xf32>
    %cst_180 = arith.constant dense<0xFF800000> : vector<8xf32>
    %219 = vector.multi_reduction <maximumf>, %218, %cst_180 [1] : vector<8x8xf32> to vector<8xf32>
    %220 = vector.shape_cast %219 : vector<8xf32> to vector<8x1xf32>
    %221 = vector.broadcast %220 : vector<8x1xf32> to vector<8x8xf32>
    %222 = arith.subf %218, %221 : vector<8x8xf32>
    %223 = math.exp %222 : vector<8x8xf32>
    %cst_181 = arith.constant dense<0.000000e+00> : vector<8xf32>
    %224 = vector.multi_reduction <add>, %223, %cst_181 [1] : vector<8x8xf32> to vector<8xf32>
    %225 = vector.shape_cast %224 : vector<8xf32> to vector<8x1xf32>
    %226 = tpu.reciprocal %225 : vector<8x1xf32> -> vector<8x1xf32>
    %227 = vector.broadcast %226 : vector<8x1xf32> to vector<8x8xf32>
    %228 = arith.mulf %223, %227 : vector<8x8xf32>
    %cst_182 = arith.constant dense<0.000000e+00> : vector<8x8xf32>
    %229 = tpu.matmul %228, %214, %cst_182 {dimension_numbers = #tpu.dot_dimension_numbers<[1], [0], [0], [1], [0, 0, 1, 1], [], []>} : vector<8x8xf32>, vector<8x8xf32>, vector<8x8xf32> -> vector<8x8xf32>
    %c8_183 = arith.constant 8 : index
    %c8_184 = arith.constant 8 : index
    %230 = vector.load %arg27[%c8_183, %c8_184] : memref<16x32xf32, #tpu.memory_space<vmem>>, vector<8x8xf32>
    tpu.vector_store %arg27[%c8_183, %c8_184], %229 {strides = array<i32>} : memref<16x32xf32, #tpu.memory_space<vmem>>, vector<8x8xf32>,
    %c0_185 = arith.constant 0 : index
    %c8_186 = arith.constant 8 : index
    %c16_187 = arith.constant 16 : index
    %231 = vector.load %arg26[%c0_185, %c8_186, %c16_187] : memref<3x16x32xf32, #tpu.memory_space<vmem>>, vector<1x8x8xf32>
    %232 = vector.shape_cast %231 : vector<1x8x8xf32> to vector<8x8xf32>
    %c1_188 = arith.constant 1 : index
    %c8_189 = arith.constant 8 : index
    %c16_190 = arith.constant 16 : index
    %233 = vector.load %arg26[%c1_188, %c8_189, %c16_190] : memref<3x16x32xf32, #tpu.memory_space<vmem>>, vector<1x8x8xf32>
    %234 = vector.shape_cast %233 : vector<1x8x8xf32> to vector<8x8xf32>
    %c2_191 = arith.constant 2 : index
    %c8_192 = arith.constant 8 : index
    %c16_193 = arith.constant 16 : index
    %235 = vector.load %arg26[%c2_191, %c8_192, %c16_193] : memref<3x16x32xf32, #tpu.memory_space<vmem>>, vector<1x8x8xf32>
    %236 = vector.shape_cast %235 : vector<1x8x8xf32> to vector<8x8xf32>
    %237 = tpu.transpose %234, [1, 0] : vector<8x8xf32> -> vector<8x8xf32>
    %cst_194 = arith.constant dense<0.000000e+00> : vector<8x8xf32>
    %238 = tpu.matmul %232, %237, %cst_194 {dimension_numbers = #tpu.dot_dimension_numbers<[1], [0], [0], [1], [0, 0, 1, 1], [], []>} : vector<8x8xf32>, vector<8x8xf32>, vector<8x8xf32> -> vector<8x8xf32>
    %cst_195 = arith.constant 0.353553385 : f32
    %239 = vector.broadcast %cst_195 : f32 to vector<8x8xf32>
    %240 = arith.mulf %238, %239 : vector<8x8xf32>
    %cst_196 = arith.constant dense<0xFF800000> : vector<8xf32>
    %241 = vector.multi_reduction <maximumf>, %240, %cst_196 [1] : vector<8x8xf32> to vector<8xf32>
    %242 = vector.shape_cast %241 : vector<8xf32> to vector<8x1xf32>
    %243 = vector.broadcast %242 : vector<8x1xf32> to vector<8x8xf32>
    %244 = arith.subf %240, %243 : vector<8x8xf32>
    %245 = math.exp %244 : vector<8x8xf32>
    %cst_197 = arith.constant dense<0.000000e+00> : vector<8xf32>
    %246 = vector.multi_reduction <add>, %245, %cst_197 [1] : vector<8x8xf32> to vector<8xf32>
    %247 = vector.shape_cast %246 : vector<8xf32> to vector<8x1xf32>
    %248 = tpu.reciprocal %247 : vector<8x1xf32> -> vector<8x1xf32>
    %249 = vector.broadcast %248 : vector<8x1xf32> to vector<8x8xf32>
    %250 = arith.mulf %245, %249 : vector<8x8xf32>
    %cst_198 = arith.constant dense<0.000000e+00> : vector<8x8xf32>
    %251 = tpu.matmul %250, %236, %cst_198 {dimension_numbers = #tpu.dot_dimension_numbers<[1], [0], [0], [1], [0, 0, 1, 1], [], []>} : vector<8x8xf32>, vector<8x8xf32>, vector<8x8xf32> -> vector<8x8xf32>
    %c8_199 = arith.constant 8 : index
    %c16_200 = arith.constant 16 : index
    %252 = vector.load %arg27[%c8_199, %c16_200] : memref<16x32xf32, #tpu.memory_space<vmem>>, vector<8x8xf32>
    tpu.vector_store %arg27[%c8_199, %c16_200], %251 {strides = array<i32>} : memref<16x32xf32, #tpu.memory_space<vmem>>, vector<8x8xf32>,
    %c0_201 = arith.constant 0 : index
    %c8_202 = arith.constant 8 : index
    %c24_203 = arith.constant 24 : index
    %253 = vector.load %arg26[%c0_201, %c8_202, %c24_203] : memref<3x16x32xf32, #tpu.memory_space<vmem>>, vector<1x8x8xf32>
    %254 = vector.shape_cast %253 : vector<1x8x8xf32> to vector<8x8xf32>
    %c1_204 = arith.constant 1 : index
    %c8_205 = arith.constant 8 : index
    %c24_206 = arith.constant 24 : index
    %255 = vector.load %arg26[%c1_204, %c8_205, %c24_206] : memref<3x16x32xf32, #tpu.memory_space<vmem>>, vector<1x8x8xf32>
    %256 = vector.shape_cast %255 : vector<1x8x8xf32> to vector<8x8xf32>
    %c2_207 = arith.constant 2 : index
    %c8_208 = arith.constant 8 : index
    %c24_209 = arith.constant 24 : index
    %257 = vector.load %arg26[%c2_207, %c8_208, %c24_209] : memref<3x16x32xf32, #tpu.memory_space<vmem>>, vector<1x8x8xf32>
    %258 = vector.shape_cast %257 : vector<1x8x8xf32> to vector<8x8xf32>
    %259 = tpu.transpose %256, [1, 0] : vector<8x8xf32> -> vector<8x8xf32>
    %cst_210 = arith.constant dense<0.000000e+00> : vector<8x8xf32>
    %260 = tpu.matmul %254, %259, %cst_210 {dimension_numbers = #tpu.dot_dimension_numbers<[1], [0], [0], [1], [0, 0, 1, 1], [], []>} : vector<8x8xf32>, vector<8x8xf32>, vector<8x8xf32> -> vector<8x8xf32>
    %cst_211 = arith.constant 0.353553385 : f32
    %261 = vector.broadcast %cst_211 : f32 to vector<8x8xf32>
    %262 = arith.mulf %260, %261 : vector<8x8xf32>
    %cst_212 = arith.constant dense<0xFF800000> : vector<8xf32>
    %263 = vector.multi_reduction <maximumf>, %262, %cst_212 [1] : vector<8x8xf32> to vector<8xf32>
    %264 = vector.shape_cast %263 : vector<8xf32> to vector<8x1xf32>
    %265 = vector.broadcast %264 : vector<8x1xf32> to vector<8x8xf32>
    %266 = arith.subf %262, %265 : vector<8x8xf32>
    %267 = math.exp %266 : vector<8x8xf32>
    %cst_213 = arith.constant dense<0.000000e+00> : vector<8xf32>
    %268 = vector.multi_reduction <add>, %267, %cst_213 [1] : vector<8x8xf32> to vector<8xf32>
    %269 = vector.shape_cast %268 : vector<8xf32> to vector<8x1xf32>
    %270 = tpu.reciprocal %269 : vector<8x1xf32> -> vector<8x1xf32>
    %271 = vector.broadcast %270 : vector<8x1xf32> to vector<8x8xf32>
    %272 = arith.mulf %267, %271 : vector<8x8xf32>
    %cst_214 = arith.constant dense<0.000000e+00> : vector<8x8xf32>
    %273 = tpu.matmul %272, %258, %cst_214 {dimension_numbers = #tpu.dot_dimension_numbers<[1], [0], [0], [1], [0, 0, 1, 1], [], []>} : vector<8x8xf32>, vector<8x8xf32>, vector<8x8xf32> -> vector<8x8xf32>
    %c8_215 = arith.constant 8 : index
    %c24_216 = arith.constant 24 : index
    %274 = vector.load %arg27[%c8_215, %c24_216] : memref<16x32xf32, #tpu.memory_space<vmem>>, vector<8x8xf32>
    tpu.vector_store %arg27[%c8_215, %c24_216], %273 {strides = array<i32>} : memref<16x32xf32, #tpu.memory_space<vmem>>, vector<8x8xf32>,
    %c0_217 = arith.constant 0 : index
    %c0_218 = arith.constant 0 : index
    %275 = vector.load %arg27[%c0_217, %c0_218] : memref<16x32xf32, #tpu.memory_space<vmem>>, vector<16x32xf32>
    %c0_219 = arith.constant 0 : index
    %c0_220 = arith.constant 0 : index
    %276 = vector.load %arg13[%c0_219, %c0_220] : memref<32x32xf32, #tpu.memory_space<vmem>>, vector<32x32xf32>
    %cst_221 = arith.constant dense<0.000000e+00> : vector<16x32xf32>
    %277 = tpu.matmul %275, %276, %cst_221 {dimension_numbers = #tpu.dot_dimension_numbers<[1], [0], [0], [1], [0, 0, 1, 1], [], []>} : vector<16x32xf32>, vector<32x32xf32>, vector<16x32xf32> -> vector<16x32xf32>
    %c0_222 = arith.constant 0 : index
    %c0_223 = arith.constant 0 : index
    %278 = vector.load %arg14[%c0_222, %c0_223] : memref<1x32xf32, #tpu.memory_space<vmem>>, vector<1x32xf32>
    %279 = vector.broadcast %278 : vector<1x32xf32> to vector<16x32xf32>
    %280 = arith.addf %277, %279 : vector<16x32xf32>
    %281 = arith.addf %22, %280 : vector<16x32xf32>
    %c0_224 = arith.constant 0 : index
    %c0_225 = arith.constant 0 : index
    %282 = vector.load %arg15[%c0_224, %c0_225] : memref<1x32xf32, #tpu.memory_space<vmem>>, vector<1x32xf32>
    %c0_226 = arith.constant 0 : index
    %c0_227 = arith.constant 0 : index
    %283 = vector.load %arg16[%c0_226, %c0_227] : memref<1x32xf32, #tpu.memory_space<vmem>>, vector<1x32xf32>
    %cst_228 = arith.constant dense<0.000000e+00> : vector<16xf32>
    %284 = vector.multi_reduction <add>, %281, %cst_228 [1] : vector<16x32xf32> to vector<16xf32>
    %285 = vector.shape_cast %284 : vector<16xf32> to vector<16x1xf32>
    %cst_229 = arith.constant 3.200000e+01 : f32
    %286 = vector.broadcast %cst_229 : f32 to vector<16x1xf32>
    %287 = arith.divf %285, %286 : vector<16x1xf32>
    %288 = vector.broadcast %287 : vector<16x1xf32> to vector<16x32xf32>
    %289 = arith.subf %281, %288 : vector<16x32xf32>
    %290 = arith.mulf %289, %289 : vector<16x32xf32>
    %cst_230 = arith.constant dense<0.000000e+00> : vector<16xf32>
    %291 = vector.multi_reduction <add>, %290, %cst_230 [1] : vector<16x32xf32> to vector<16xf32>
    %292 = vector.shape_cast %291 : vector<16xf32> to vector<16x1xf32>
    %cst_231 = arith.constant 3.200000e+01 : f32
    %293 = vector.broadcast %cst_231 : f32 to vector<16x1xf32>
    %294 = arith.divf %292, %293 : vector<16x1xf32>
    %295 = vector.broadcast %287 : vector<16x1xf32> to vector<16x32xf32>
    %296 = arith.subf %281, %295 : vector<16x32xf32>
    %cst_232 = arith.constant 9.99999974E-6 : f32
    %297 = vector.broadcast %cst_232 : f32 to vector<16x1xf32>
    %298 = arith.addf %294, %297 : vector<16x1xf32>
    %299 = math.rsqrt %298 : vector<16x1xf32>
    %300 = vector.broadcast %299 : vector<16x1xf32> to vector<16x32xf32>
    %301 = arith.mulf %296, %300 : vector<16x32xf32>
    %302 = vector.broadcast %282 : vector<1x32xf32> to vector<16x32xf32>
    %303 = arith.mulf %301, %302 : vector<16x32xf32>
    %304 = vector.broadcast %283 : vector<1x32xf32> to vector<16x32xf32>
    %305 = arith.addf %303, %304 : vector<16x32xf32>
    %c0_233 = arith.constant 0 : index
    %c0_234 = arith.constant 0 : index
    %306 = vector.load %arg17[%c0_233, %c0_234] : memref<32x32xf32, #tpu.memory_space<vmem>>, vector<32x32xf32>
    %cst_235 = arith.constant dense<0.000000e+00> : vector<16x32xf32>
    %307 = tpu.matmul %305, %306, %cst_235 {dimension_numbers = #tpu.dot_dimension_numbers<[1], [0], [0], [1], [0, 0, 1, 1], [], []>} : vector<16x32xf32>, vector<32x32xf32>, vector<16x32xf32> -> vector<16x32xf32>
    %c0_236 = arith.constant 0 : index
    %c0_237 = arith.constant 0 : index
    %308 = vector.load %arg18[%c0_236, %c0_237] : memref<1x32xf32, #tpu.memory_space<vmem>>, vector<1x32xf32>
    %309 = vector.broadcast %308 : vector<1x32xf32> to vector<16x32xf32>
    %310 = arith.addf %307, %309 : vector<16x32xf32>
    %c0_238 = arith.constant 0 : index
    %c0_239 = arith.constant 0 : index
    %311 = vector.load %arg19[%c0_238, %c0_239] : memref<32x32xf32, #tpu.memory_space<vmem>>, vector<32x32xf32>
    %cst_240 = arith.constant dense<0.000000e+00> : vector<16x32xf32>
    %312 = tpu.matmul %310, %311, %cst_240 {dimension_numbers = #tpu.dot_dimension_numbers<[1], [0], [0], [1], [0, 0, 1, 1], [], []>} : vector<16x32xf32>, vector<32x32xf32>, vector<16x32xf32> -> vector<16x32xf32>
    %c0_241 = arith.constant 0 : index
    %c0_242 = arith.constant 0 : index
    %313 = vector.load %arg20[%c0_241, %c0_242] : memref<1x32xf32, #tpu.memory_space<vmem>>, vector<1x32xf32>
    %314 = vector.broadcast %313 : vector<1x32xf32> to vector<16x32xf32>
    %315 = arith.addf %312, %314 : vector<16x32xf32>
    %cst_243 = arith.constant 0.000000e+00 : f32
    %316 = vector.broadcast %cst_243 : f32 to vector<16x32xf32>
    %317 = arith.cmpf oge, %315, %316 : vector<16x32xf32>
    %cst_244 = arith.constant 0.00999999977 : f32
    %318 = vector.broadcast %cst_244 : f32 to vector<16x32xf32>
    %319 = arith.mulf %318, %315 : vector<16x32xf32>
    %320 = arith.select %317, %315, %319 : vector<16x32xi1>, vector<16x32xf32>
    %c0_245 = arith.constant 0 : index
    %c0_246 = arith.constant 0 : index
    %321 = vector.load %arg21[%c0_245, %c0_246] : memref<32x32xf32, #tpu.memory_space<vmem>>, vector<32x32xf32>
    %cst_247 = arith.constant dense<0.000000e+00> : vector<16x32xf32>
    %322 = tpu.matmul %320, %321, %cst_247 {dimension_numbers = #tpu.dot_dimension_numbers<[1], [0], [0], [1], [0, 0, 1, 1], [], []>} : vector<16x32xf32>, vector<32x32xf32>, vector<16x32xf32> -> vector<16x32xf32>
    %c0_248 = arith.constant 0 : index
    %c0_249 = arith.constant 0 : index
    %323 = vector.load %arg22[%c0_248, %c0_249] : memref<1x32xf32, #tpu.memory_space<vmem>>, vector<1x32xf32>
    %324 = vector.broadcast %323 : vector<1x32xf32> to vector<16x32xf32>
    %325 = arith.addf %322, %324 : vector<16x32xf32>
    %326 = arith.addf %310, %325 : vector<16x32xf32>
    %c0_250 = arith.constant 0 : index
    %c0_251 = arith.constant 0 : index
    %327 = vector.load %arg23[%c0_250, %c0_251] : memref<1x32xf32, #tpu.memory_space<vmem>>, vector<1x32xf32>
    %c0_252 = arith.constant 0 : index
    %c0_253 = arith.constant 0 : index
    %328 = vector.load %arg24[%c0_252, %c0_253] : memref<1x32xf32, #tpu.memory_space<vmem>>, vector<1x32xf32>
    %cst_254 = arith.constant dense<0.000000e+00> : vector<16xf32>
    %329 = vector.multi_reduction <add>, %326, %cst_254 [1] : vector<16x32xf32> to vector<16xf32>
    %330 = vector.shape_cast %329 : vector<16xf32> to vector<16x1xf32>
    %cst_255 = arith.constant 3.200000e+01 : f32
    %331 = vector.broadcast %cst_255 : f32 to vector<16x1xf32>
    %332 = arith.divf %330, %331 : vector<16x1xf32>
    %333 = vector.broadcast %332 : vector<16x1xf32> to vector<16x32xf32>
    %334 = arith.subf %326, %333 : vector<16x32xf32>
    %335 = arith.mulf %334, %334 : vector<16x32xf32>
    %cst_256 = arith.constant dense<0.000000e+00> : vector<16xf32>
    %336 = vector.multi_reduction <add>, %335, %cst_256 [1] : vector<16x32xf32> to vector<16xf32>
    %337 = vector.shape_cast %336 : vector<16xf32> to vector<16x1xf32>
    %cst_257 = arith.constant 3.200000e+01 : f32
    %338 = vector.broadcast %cst_257 : f32 to vector<16x1xf32>
    %339 = arith.divf %337, %338 : vector<16x1xf32>
    %340 = vector.broadcast %332 : vector<16x1xf32> to vector<16x32xf32>
    %341 = arith.subf %326, %340 : vector<16x32xf32>
    %cst_258 = arith.constant 9.99999974E-6 : f32
    %342 = vector.broadcast %cst_258 : f32 to vector<16x1xf32>
    %343 = arith.addf %339, %342 : vector<16x1xf32>
    %344 = math.rsqrt %343 : vector<16x1xf32>
    %345 = vector.broadcast %344 : vector<16x1xf32> to vector<16x32xf32>
    %346 = arith.mulf %341, %345 : vector<16x32xf32>
    %347 = vector.broadcast %327 : vector<1x32xf32> to vector<16x32xf32>
    %348 = arith.mulf %346, %347 : vector<16x32xf32>
    %349 = vector.broadcast %328 : vector<1x32xf32> to vector<16x32xf32>
    %350 = arith.addf %348, %349 : vector<16x32xf32>
    %c0_259 = arith.constant 0 : index
    %c0_260 = arith.constant 0 : index
    %351 = vector.load %arg25[%c0_259, %c0_260] : memref<16x32xf32, #tpu.memory_space<vmem>>, vector<16x32xf32>
    tpu.vector_store %arg25[%c0_259, %c0_260], %350 {strides = array<i32>} : memref<16x32xf32, #tpu.memory_space<vmem>>, vector<16x32xf32>,
    return
  }
}

</mosaic_0001>

<llo_original>
// kernel: pallas_forward.1
$region0: #{pallas_forward.1}
  #allocation0 [shape = 'u32[]', space=smem, size = 0x4, offset = 0x4, fixed_abs, tag = 'smem constant byte address 0x4 - core index']
  #allocation1 [shape = 'u32[144,128]{1,0:T(1,128)}', space=vmem, size = 0x12000, scoped, tag = 'internal scratch']
  #allocation2 [shape = 'f32[3,16,32]{2,1,0:T(8,128)}', space=vmem, size = 0x6000, scoped, tag = 'scratch operand']
  #allocation3 [shape = 'f32[16,32]{1,0:T(8,128)}', space=vmem, size = 0x2000, scoped, tag = 'scratch operand']
  %s0 = inlined_call_operand.vmem [shape: f32[3,2], index: 0, kind: input, shape index: {}]
  %s1 = inlined_call_operand.vmem [shape: f32[16,64], index: 1, kind: input, shape index: {}]
  %s2 = inlined_call_operand.vmem [shape: f32[16,64], index: 2, kind: input, shape index: {}]
  %s3 = inlined_call_operand.vmem [shape: f32[16,64], index: 3, kind: input, shape index: {}]
  %s4 = inlined_call_operand.vmem [shape: f32[16,64], index: 4, kind: input, shape index: {}]
  %s5 = inlined_call_operand.vmem [shape: f32[16,64], index: 5, kind: input, shape index: {}]
  %s6 = inlined_call_operand.vmem [shape: f32[16,64], index: 6, kind: input, shape index: {}]
  %s7 = inlined_call_operand.vmem [shape: f32[3,64,32], index: 7, kind: input, shape index: {}]
  %s8 = inlined_call_operand.vmem [shape: f32[3,1,32], index: 8, kind: input, shape index: {}]
  %s9 = inlined_call_operand.vmem [shape: f32[3,64,32], index: 9, kind: input, shape index: {}]
  %s10 = inlined_call_operand.vmem [shape: f32[3,1,32], index: 10, kind: input, shape index: {}]
  %s11 = inlined_call_operand.vmem [shape: f32[3,32,32], index: 11, kind: input, shape index: {}]
  %s12 = inlined_call_operand.vmem [shape: f32[3,1,32], index: 12, kind: input, shape index: {}]
  %s13 = inlined_call_operand.vmem [shape: f32[32,32], index: 13, kind: input, shape index: {}]
  %s14 = inlined_call_operand.vmem [shape: f32[1,32], index: 14, kind: input, shape index: {}]
  %s15 = inlined_call_operand.vmem [shape: f32[1,32], index: 15, kind: input, shape index: {}]
  %s16 = inlined_call_operand.vmem [shape: f32[1,32], index: 16, kind: input, shape index: {}]
  %s17 = inlined_call_operand.vmem [shape: f32[32,32], index: 17, kind: input, shape index: {}]
  %s18 = inlined_call_operand.vmem [shape: f32[1,32], index: 18, kind: input, shape index: {}]
  %s19 = inlined_call_operand.vmem [shape: f32[32,32], index: 19, kind: input, shape index: {}]
  %s20 = inlined_call_operand.vmem [shape: f32[1,32], index: 20, kind: input, shape index: {}]
  %s21 = inlined_call_operand.vmem [shape: f32[32,32], index: 21, kind: input, shape index: {}]
  %s22 = inlined_call_operand.vmem [shape: f32[1,32], index: 22, kind: input, shape index: {}]
  %s23 = inlined_call_operand.vmem [shape: f32[1,32], index: 23, kind: input, shape index: {}]
  %s24 = inlined_call_operand.vmem [shape: f32[1,32], index: 24, kind: input, shape index: {}]
  %s25 = inlined_call_operand.vmem [shape: f32[16,32], index: 25, kind: output, shape index: {}]
  %s26 = sld [smem:[#allocation0]]
  $region114: #{pallas_forward.1} parent=0
    _
  %s28 = ssub.s32 1, %s26
  %s29 = scalar_select 0, %s28, %s26
  $region1: #{pallas_forward.1} parent=0
    #allocation4 [shape = 'u8[2048]{0}', space=smem, size = 0x800, scoped, tag = 'input window, operand 0, single buffered']
    #allocation5 [shape = 's32[1]{0}', space=sflag, size = 0x4, scoped, tag = 'scoped memory for pallas_forward.1']
    %30 = vsyncpa [#allocation5], 0
    // Predicated region
    $region2: #{pallas_forward.1} parent=1 // pred_check
      _
    $region3: #{pallas_forward.1} parent=1 // pred_check_branch
      %32 = sbr.rel (0) target = $region5
    $region4: #{pallas_forward.1} parent=1 // pred_region
      %s34 = ssub.s32 64, 64
      %35 = vsyncadd [#allocation5], %s34
      %s37 = sshll.u32 %s0, 4
      %s38 = int_to_ptr.vmem [resolvable:$true] %s37
      %40 = dma.vmem_to_smem %s38, 64, [#allocation4], [#allocation5]
    $region5: #{pallas_forward.1} parent=1 // pred_fallthru
      _
    // Predicated region
    $region6: #{pallas_forward.1} parent=1 // pred_check
      _
    $region7: #{pallas_forward.1} parent=1 // pred_check_branch
      %42 = sbr.rel (0) target = $region9
    $region8: #{pallas_forward.1} parent=1 // pred_region
      _
    $region9: #{pallas_forward.1} parent=1 // pred_fallthru
      _
    // Predicated region
    $region10: #{pallas_forward.1} parent=1 // pred_check
      _
    $region11: #{pallas_forward.1} parent=1 // pred_check_branch
      %44 = sbr.rel (0) target = $region13
    $region12: #{pallas_forward.1} parent=1 // pred_region
      _
    $region13: #{pallas_forward.1} parent=1 // pred_fallthru
      _
    // Predicated region
    $region14: #{pallas_forward.1} parent=1 // pred_check
      _
    $region15: #{pallas_forward.1} parent=1 // pred_check_branch
      %46 = sbr.rel (0) target = $region17
    $region16: #{pallas_forward.1} parent=1 // pred_region
      _
    $region17: #{pallas_forward.1} parent=1 // pred_fallthru
      _
    // Predicated region
    $region18: #{pallas_forward.1} parent=1 // pred_check
      _
    $region19: #{pallas_forward.1} parent=1 // pred_check_branch
      %48 = sbr.rel (0) target = $region21
    $region20: #{pallas_forward.1} parent=1 // pred_region
      _
    $region21: #{pallas_forward.1} parent=1 // pred_fallthru
      _
    // Predicated region
    $region22: #{pallas_forward.1} parent=1 // pred_check
      _
    $region23: #{pallas_forward.1} parent=1 // pred_check_branch
      %50 = sbr.rel (0) target = $region25
    $region24: #{pallas_forward.1} parent=1 // pred_region
      _
    $region25: #{pallas_forward.1} parent=1 // pred_fallthru
      _
    // Predicated region
    $region26: #{pallas_forward.1} parent=1 // pred_check
      _
    $region27: #{pallas_forward.1} parent=1 // pred_check_branch
      %52 = sbr.rel (0) target = $region29
    $region28: #{pallas_forward.1} parent=1 // pred_region
      _
    $region29: #{pallas_forward.1} parent=1 // pred_fallthru
      _
    // Predicated region
    $region30: #{pallas_forward.1} parent=1 // pred_check
      _
    $region31: #{pallas_forward.1} parent=1 // pred_check_branch
      %54 = sbr.rel (0) target = $region33
    $region32: #{pallas_forward.1} parent=1 // pred_region
      _
    $region33: #{pallas_forward.1} parent=1 // pred_fallthru
      _
    // Predicated region
    $region34: #{pallas_forward.1} parent=1 // pred_check
      _
    $region35: #{pallas_forward.1} parent=1 // pred_check_branch
      %56 = sbr.rel (0) target = $region37
    $region36: #{pallas_forward.1} parent=1 // pred_region
      _
    $region37: #{pallas_forward.1} parent=1 // pred_fallthru
      _
    // Predicated region
    $region38: #{pallas_forward.1} parent=1 // pred_check
      _
    $region39: #{pallas_forward.1} parent=1 // pred_check_branch
      %58 = sbr.rel (0) target = $region41
    $region40: #{pallas_forward.1} parent=1 // pred_region
      _
    $region41: #{pallas_forward.1} parent=1 // pred_fallthru
      _
    // Predicated region
    $region42: #{pallas_forward.1} parent=1 // pred_check
      _
    $region43: #{pallas_forward.1} parent=1 // pred_check_branch
      %60 = sbr.rel (0) target = $region45
    $region44: #{pallas_forward.1} parent=1 // pred_region
      _
    $region45: #{pallas_forward.1} parent=1 // pred_fallthru
      _
    // Predicated region
    $region46: #{pallas_forward.1} parent=1 // pred_check
      _
    $region47: #{pallas_forward.1} parent=1 // pred_check_branch
      %62 = sbr.rel (0) target = $region49
    $region48: #{pallas_forward.1} parent=1 // pred_region
      _
    $region49: #{pallas_forward.1} parent=1 // pred_fallthru
      _
    // Predicated region
    $region50: #{pallas_forward.1} parent=1 // pred_check
      _
    $region51: #{pallas_forward.1} parent=1 // pred_check_branch
      %64 = sbr.rel (0) target = $region53
    $region52: #{pallas_forward.1} parent=1 // pred_region
      _
    $region53: #{pallas_forward.1} parent=1 // pred_fallthru
      _
    // Predicated region
    $region54: #{pallas_forward.1} parent=1 // pred_check
      _
    $region55: #{pallas_forward.1} parent=1 // pred_check_branch
      %66 = sbr.rel (0) target = $region57
    $region56: #{pallas_forward.1} parent=1 // pred_region
      _
    $region57: #{pallas_forward.1} parent=1 // pred_fallthru
      _
    // Predicated region
    $region58: #{pallas_forward.1} parent=1 // pred_check
      _
    $region59: #{pallas_forward.1} parent=1 // pred_check_branch
      %68 = sbr.rel (0) target = $region61
    $region60: #{pallas_forward.1} parent=1 // pred_region
      _
    $region61: #{pallas_forward.1} parent=1 // pred_fallthru
      _
    // Predicated region
    $region62: #{pallas_forward.1} parent=1 // pred_check
      _
    $region63: #{pallas_forward.1} parent=1 // pred_check_branch
      %70 = sbr.rel (0) target = $region65
    $region64: #{pallas_forward.1} parent=1 // pred_region
      _
    $region65: #{pallas_forward.1} parent=1 // pred_fallthru
      _
    // Predicated region
    $region66: #{pallas_forward.1} parent=1 // pred_check
      _
    $region67: #{pallas_forward.1} parent=1 // pred_check_branch
      %72 = sbr.rel (0) target = $region69
    $region68: #{pallas_forward.1} parent=1 // pred_region
      _
    $region69: #{pallas_forward.1} parent=1 // pred_fallthru
      _
    // Predicated region
    $region70: #{pallas_forward.1} parent=1 // pred_check
      _
    $region71: #{pallas_forward.1} parent=1 // pred_check_branch
      %74 = sbr.rel (0) target = $region73
    $region72: #{pallas_forward.1} parent=1 // pred_region
      _
    $region73: #{pallas_forward.1} parent=1 // pred_fallthru
      _
    // Predicated region
    $region74: #{pallas_forward.1} parent=1 // pred_check
      _
    $region75: #{pallas_forward.1} parent=1 // pred_check_branch
      %76 = sbr.rel (0) target = $region77
    $region76: #{pallas_forward.1} parent=1 // pred_region
      _
    $region77: #{pallas_forward.1} parent=1 // pred_fallthru
      _
    // Predicated region
    $region78: #{pallas_forward.1} parent=1 // pred_check
      _
    $region79: #{pallas_forward.1} parent=1 // pred_check_branch
      %78 = sbr.rel (0) target = $region81
    $region80: #{pallas_forward.1} parent=1 // pred_region
      _
    $region81: #{pallas_forward.1} parent=1 // pred_fallthru
      _
    // Predicated region
    $region82: #{pallas_forward.1} parent=1 // pred_check
      _
    $region83: #{pallas_forward.1} parent=1 // pred_check_branch
      %80 = sbr.rel (0) target = $region85
    $region84: #{pallas_forward.1} parent=1 // pred_region
      _
    $region85: #{pallas_forward.1} parent=1 // pred_fallthru
      _
    // Predicated region
    $region86: #{pallas_forward.1} parent=1 // pred_check
      _
    $region87: #{pallas_forward.1} parent=1 // pred_check_branch
      %82 = sbr.rel (0) target = $region89
    $region88: #{pallas_forward.1} parent=1 // pred_region
      _
    $region89: #{pallas_forward.1} parent=1 // pred_fallthru
      _
    // Predicated region
    $region90: #{pallas_forward.1} parent=1 // pred_check
      _
    $region91: #{pallas_forward.1} parent=1 // pred_check_branch
      %84 = sbr.rel (0) target = $region93
    $region92: #{pallas_forward.1} parent=1 // pred_region
      _
    $region93: #{pallas_forward.1} parent=1 // pred_fallthru
      _
    // Predicated region
    $region94: #{pallas_forward.1} parent=1 // pred_check
      _
    $region95: #{pallas_forward.1} parent=1 // pred_check_branch
      %86 = sbr.rel (0) target = $region97
    $region96: #{pallas_forward.1} parent=1 // pred_region
      _
    $region97: #{pallas_forward.1} parent=1 // pred_fallthru
      _
    // Predicated region
    $region98: #{pallas_forward.1} parent=1 // pred_check
      _
    $region99: #{pallas_forward.1} parent=1 // pred_check_branch
      %88 = sbr.rel (0) target = $region101
    $region100: #{pallas_forward.1} parent=1 // pred_region
      _
    $region101: #{pallas_forward.1} parent=1 // pred_fallthru
      _
    // Predicated region
    $region102: #{pallas_forward.1} parent=1 // pred_check
      _
    $region103: #{pallas_forward.1} parent=1 // pred_check_branch
      %90 = sbr.rel (0) target = $region105
    $region104: #{pallas_forward.1} parent=1 // pred_region
      %91 = dma.done [#allocation5], 64
    $region105: #{pallas_forward.1} parent=1 // pred_fallthru
      _
    %92 = sfence
    %s93 = sld [smem:[#allocation4]]
    %s94 = sld [smem:[#allocation4 + $0x1]]
    %v95 = vld [vmem:[%s1] sm:$0xff]
    %v96 = vld [vmem:[%s1 + $0x8] sm:$0xff]
    %v97 = vld [vmem:[%s7] sm:$0xff]
    %v98 = vld [vmem:[%s7 + $0x8] sm:$0xff]
    %v99 = vld [vmem:[%s7 + $0x10] sm:$0xff]
    %v100 = vld [vmem:[%s7 + $0x18] sm:$0xff]
    %v101 = vld [vmem:[%s7 + $0x20] sm:$0xff]
    %v102 = vld [vmem:[%s7 + $0x28] sm:$0xff]
    %v103 = vld [vmem:[%s7 + $0x30] sm:$0xff]
    %v104 = vld [vmem:[%s7 + $0x38] sm:$0xff]
    %v105 = vld [vmem:[%s8] sm:$0x1]
    %v107 = vlaneseq
    %v108 = vshrl.u32 %v107, 7
    %v109 = vsub.s32 0, %v108
    %v110 = vrot.slane %v105, %v109
    %vm112 = vcmask 523264
    %v114 = vsel %vm112, %v95, 0
    %v117 = vsel %vm112, %v96, 0
    %119 = vmatprep.subr.mxu0 0.0
    %120 = vmatpush1.msra.mxu0 %v97
    %121 = vmatprep.subr.mxu0 0.0
    %122 = vmatpush1.msra.mxu0 %v98
    %123 = vmatprep.subr.mxu0 0.0
    %124 = vmatpush1.msra.mxu0 %v99
    %125 = vmatprep.subr.mxu0 0.0
    %126 = vmatpush1.msra.mxu0 %v100
    %127 = vmatprep.subr.mxu0 0.0
    %128 = vmatpush1.msra.mxu0 %v101
    %129 = vmatprep.subr.mxu0 0.0
    %130 = vmatpush1.msra.mxu0 %v102
    %131 = vmatprep.subr.mxu0 0.0
    %132 = vmatpush1.msra.mxu0 %v103
    %133 = vmatprep.subr.mxu0 0.0
    %134 = vmatpush1.msra.mxu0 %v104
    %135 = vmatprep.subr.mxu0 0.0
    %136 = vmatpush1.msra.mxu0 0.0
    %137 = vmatprep.subr.mxu0 0.0
    %138 = vmatpush1.msra.mxu0 0.0
    %139 = vmatprep.subr.mxu0 0.0
    %140 = vmatpush1.msra.mxu0 0.0
    %141 = vmatprep.subr.mxu0 0.0
    %142 = vmatpush1.msra.mxu0 0.0
    %143 = vmatprep.subr.mxu0 0.0
    %144 = vmatpush1.msra.mxu0 0.0
    %145 = vmatprep.subr.mxu0 0.0
    %146 = vmatpush1.msra.mxu0 0.0
    %147 = vmatprep.subr.mxu0 0.0
    %148 = vmatpush1.msra.mxu0 0.0
    %149 = vmatprep.subr.mxu0 0.0
    %150 = vmatpush1.msra.mxu0 0.0
    %151 = vmatprep.subr.mxu0 0.0
    %152 = vmatpush1.msra.mxu0 0.0
    %153 = vmatprep.subr.mxu0 0.0
    %154 = vmatpush1.msra.mxu0 0.0
    %155 = vmatprep.subr.mxu0 0.0
    %156 = vmatpush1.msra.mxu0 0.0
    %157 = vmatprep.subr.mxu0 0.0
    %158 = vmatpush1.msra.mxu0 0.0
    %159 = vmatprep.subr.mxu0 0.0
    %160 = vmatpush1.msra.mxu0 0.0
    %161 = vmatprep.subr.mxu0 0.0
    %162 = vmatpush1.msra.mxu0 0.0
    %163 = vmatprep.subr.mxu0 0.0
    %164 = vmatpush1.msra.mxu0 0.0
    %165 = vmatprep.subr.mxu0 0.0
    %166 = vmatpush1.msra.mxu0 0.0
    %167 = vmatprep.subr.mxu0 0.0
    %168 = vmatpush1.msra.mxu0 0.0
    %169 = vmatprep.subr.mxu0 0.0
    %170 = vmatpush1.msra.mxu0 0.0
    %171 = vmatprep.subr.mxu0 0.0
    %172 = vmatpush1.msra.mxu0 0.0
    %173 = vmatprep.subr.mxu0 0.0
    %174 = vmatpush1.msra.mxu0 0.0
    %175 = vmatprep.subr.mxu0 0.0
    %176 = vmatpush1.msra.mxu0 0.0
    %177 = vmatprep.subr.mxu0 0.0
    %178 = vmatpush1.msra.mxu0 0.0
    %179 = vmatprep.subr.mxu0 0.0
    %180 = vmatpush1.msra.mxu0 0.0
    %181 = vmatprep.subr.mxu0 0.0
    %182 = vmatpush1.msra.mxu0 0.0
    %183 = vmatprep.mubr.f32.mxu0 0.0
    %184 = vmatmul.mubr.f32.gmra.mrb[0].mxu0 %v114
    %v185 = vpop.f32.mrb[0].mxu0
    %v186 = vadd.f32 %v110, %v185
    %v187 = vpop.f32.mrb[0].mxu0
    %188 = vmatprep.mubr.f32.mxu0 0.0
    %189 = vmatmul.mubr.f32.gmra.mrb[0].mxu0 %v117
    %v190 = vpop.f32.mrb[0].mxu0
    %v191 = vadd.f32 %v110, %v190
    %v192 = vpop.f32.mrb[0].mxu0
    %193 = vdwg.mxu0
    %v194 = vld [vmem:[%s2] sm:$0xff]
    %v195 = vld [vmem:[%s2 + $0x8] sm:$0xff]
    %v196 = vld [vmem:[%s9] sm:$0xff]
    %v197 = vld [vmem:[%s9 + $0x8] sm:$0xff]
    %v198 = vld [vmem:[%s9 + $0x10] sm:$0xff]
    %v199 = vld [vmem:[%s9 + $0x18] sm:$0xff]
    %v200 = vld [vmem:[%s9 + $0x20] sm:$0xff]
    %v201 = vld [vmem:[%s9 + $0x28] sm:$0xff]
    %v202 = vld [vmem:[%s9 + $0x30] sm:$0xff]
    %v203 = vld [vmem:[%s9 + $0x38] sm:$0xff]
    %v204 = vld [vmem:[%s10] sm:$0x1]
    %v206 = vlaneseq
    %v207 = vshrl.u32 %v206, 7
    %v208 = vsub.s32 0, %v207
    %v209 = vrot.slane %v204, %v208
    %v212 = vsel %vm112, %v194, 0
    %v215 = vsel %vm112, %v195, 0
    %217 = vmatprep.subr.mxu0 0.0
    %218 = vmatpush1.msra.mxu0 %v196
    %219 = vmatprep.subr.mxu0 0.0
    %220 = vmatpush1.msra.mxu0 %v197
    %221 = vmatprep.subr.mxu0 0.0
    %222 = vmatpush1.msra.mxu0 %v198
    %223 = vmatprep.subr.mxu0 0.0
    %224 = vmatpush1.msra.mxu0 %v199
    %225 = vmatprep.subr.mxu0 0.0
    %226 = vmatpush1.msra.mxu0 %v200
    %227 = vmatprep.subr.mxu0 0.0
    %228 = vmatpush1.msra.mxu0 %v201
    %229 = vmatprep.subr.mxu0 0.0
    %230 = vmatpush1.msra.mxu0 %v202
    %231 = vmatprep.subr.mxu0 0.0
    %232 = vmatpush1.msra.mxu0 %v203
    %233 = vmatprep.subr.mxu0 0.0
    %234 = vmatpush1.msra.mxu0 0.0
    %235 = vmatprep.subr.mxu0 0.0
    %236 = vmatpush1.msra.mxu0 0.0
    %237 = vmatprep.subr.mxu0 0.0
    %238 = vmatpush1.msra.mxu0 0.0
    %239 = vmatprep.subr.mxu0 0.0
    %240 = vmatpush1.msra.mxu0 0.0
    %241 = vmatprep.subr.mxu0 0.0
    %242 = vmatpush1.msra.mxu0 0.0
    %243 = vmatprep.subr.mxu0 0.0
    %244 = vmatpush1.msra.mxu0 0.0
    %245 = vmatprep.subr.mxu0 0.0
    %246 = vmatpush1.msra.mxu0 0.0
    %247 = vmatprep.subr.mxu0 0.0
    %248 = vmatpush1.msra.mxu0 0.0
    %249 = vmatprep.subr.mxu0 0.0
    %250 = vmatpush1.msra.mxu0 0.0
    %251 = vmatprep.subr.mxu0 0.0
    %252 = vmatpush1.msra.mxu0 0.0
    %253 = vmatprep.subr.mxu0 0.0
    %254 = vmatpush1.msra.mxu0 0.0
    %255 = vmatprep.subr.mxu0 0.0
    %256 = vmatpush1.msra.mxu0 0.0
    %257 = vmatprep.subr.mxu0 0.0
    %258 = vmatpush1.msra.mxu0 0.0
    %259 = vmatprep.subr.mxu0 0.0
    %260 = vmatpush1.msra.mxu0 0.0
    %261 = vmatprep.subr.mxu0 0.0
    %262 = vmatpush1.msra.mxu0 0.0
    %263 = vmatprep.subr.mxu0 0.0
    %264 = vmatpush1.msra.mxu0 0.0
    %265 = vmatprep.subr.mxu0 0.0
    %266 = vmatpush1.msra.mxu0 0.0
    %267 = vmatprep.subr.mxu0 0.0
    %268 = vmatpush1.msra.mxu0 0.0
    %269 = vmatprep.subr.mxu0 0.0
    %270 = vmatpush1.msra.mxu0 0.0
    %271 = vmatprep.subr.mxu0 0.0
    %272 = vmatpush1.msra.mxu0 0.0
    %273 = vmatprep.subr.mxu0 0.0
    %274 = vmatpush1.msra.mxu0 0.0
    %275 = vmatprep.subr.mxu0 0.0
    %276 = vmatpush1.msra.mxu0 0.0
    %277 = vmatprep.subr.mxu0 0.0
    %278 = vmatpush1.msra.mxu0 0.0
    %279 = vmatprep.subr.mxu0 0.0
    %280 = vmatpush1.msra.mxu0 0.0
    %281 = vmatprep.mubr.f32.mxu0 0.0
    %282 = vmatmul.mubr.f32.gmra.mrb[0].mxu0 %v212
    %v283 = vpop.f32.mrb[0].mxu0
    %v284 = vadd.f32 %v209, %v283
    %v285 = vpop.f32.mrb[0].mxu0
    %286 = vmatprep.mubr.f32.mxu0 0.0
    %287 = vmatmul.mubr.f32.gmra.mrb[0].mxu0 %v215
    %v288 = vpop.f32.mrb[0].mxu0
    %v289 = vadd.f32 %v209, %v288
    %v290 = vpop.f32.mrb[0].mxu0
    %291 = vdwg.mxu0
    %v292 = vstv %s93
    %v293 = vmul.f32 %v292, %v186
    %v294 = vmul.f32 %v292, %v191
    %v295 = vstv %s94
    %v296 = vmul.f32 %v295, %v284
    %v297 = vmul.f32 %v295, %v289
    %v298 = vadd.f32 %v293, %v296
    %v299 = vadd.f32 %v294, %v297
    %s300 = sld [smem:[#allocation4 + $0x80]]
    %s301 = sld [smem:[#allocation4 + $0x81]]
    %v302 = vld [vmem:[%s3] sm:$0xff]
    %v303 = vld [vmem:[%s3 + $0x8] sm:$0xff]
    %s304 = scalar_lea.vmem %s7, 64
    %v305 = vld [vmem:[%s304] sm:$0xff]
    %v306 = vld [vmem:[%s304 + $0x8] sm:$0xff]
    %v307 = vld [vmem:[%s304 + $0x10] sm:$0xff]
    %v308 = vld [vmem:[%s304 + $0x18] sm:$0xff]
    %v309 = vld [vmem:[%s304 + $0x20] sm:$0xff]
    %v310 = vld [vmem:[%s304 + $0x28] sm:$0xff]
    %v311 = vld [vmem:[%s304 + $0x30] sm:$0xff]
    %v312 = vld [vmem:[%s304 + $0x38] sm:$0xff]
    %s313 = scalar_lea.vmem %s8, 1
    %v314 = vld [vmem:[%s313] sm:$0x1]
    %v316 = vlaneseq
    %v317 = vshrl.u32 %v316, 7
    %v318 = vsub.s32 0, %v317
    %v319 = vrot.slane %v314, %v318
    %v322 = vsel %vm112, %v302, 0
    %v325 = vsel %vm112, %v303, 0
    %327 = vmatprep.subr.mxu0 0.0
    %328 = vmatpush1.msra.mxu0 %v305
    %329 = vmatprep.subr.mxu0 0.0
    %330 = vmatpush1.msra.mxu0 %v306
    %331 = vmatprep.subr.mxu0 0.0
    %332 = vmatpush1.msra.mxu0 %v307
    %333 = vmatprep.subr.mxu0 0.0
    %334 = vmatpush1.msra.mxu0 %v308
    %335 = vmatprep.subr.mxu0 0.0
    %336 = vmatpush1.msra.mxu0 %v309
    %337 = vmatprep.subr.mxu0 0.0
    %338 = vmatpush1.msra.mxu0 %v310
    %339 = vmatprep.subr.mxu0 0.0
    %340 = vmatpush1.msra.mxu0 %v311
    %341 = vmatprep.subr.mxu0 0.0
    %342 = vmatpush1.msra.mxu0 %v312
    %343 = vmatprep.subr.mxu0 0.0
    %344 = vmatpush1.msra.mxu0 0.0
    %345 = vmatprep.subr.mxu0 0.0
    %346 = vmatpush1.msra.mxu0 0.0
    %347 = vmatprep.subr.mxu0 0.0
    %348 = vmatpush1.msra.mxu0 0.0
    %349 = vmatprep.subr.mxu0 0.0
    %350 = vmatpush1.msra.mxu0 0.0
    %351 = vmatprep.subr.mxu0 0.0
    %352 = vmatpush1.msra.mxu0 0.0
    %353 = vmatprep.subr.mxu0 0.0
    %354 = vmatpush1.msra.mxu0 0.0
    %355 = vmatprep.subr.mxu0 0.0
    %356 = vmatpush1.msra.mxu0 0.0
    %357 = vmatprep.subr.mxu0 0.0
    %358 = vmatpush1.msra.mxu0 0.0
    %359 = vmatprep.subr.mxu0 0.0
    %360 = vmatpush1.msra.mxu0 0.0
    %361 = vmatprep.subr.mxu0 0.0
    %362 = vmatpush1.msra.mxu0 0.0
    %363 = vmatprep.subr.mxu0 0.0
    %364 = vmatpush1.msra.mxu0 0.0
    %365 = vmatprep.subr.mxu0 0.0
    %366 = vmatpush1.msra.mxu0 0.0
    %367 = vmatprep.subr.mxu0 0.0
    %368 = vmatpush1.msra.mxu0 0.0
    %369 = vmatprep.subr.mxu0 0.0
    %370 = vmatpush1.msra.mxu0 0.0
    %371 = vmatprep.subr.mxu0 0.0
    %372 = vmatpush1.msra.mxu0 0.0
    %373 = vmatprep.subr.mxu0 0.0
    %374 = vmatpush1.msra.mxu0 0.0
    %375 = vmatprep.subr.mxu0 0.0
    %376 = vmatpush1.msra.mxu0 0.0
    %377 = vmatprep.subr.mxu0 0.0
    %378 = vmatpush1.msra.mxu0 0.0
    %379 = vmatprep.subr.mxu0 0.0
    %380 = vmatpush1.msra.mxu0 0.0
    %381 = vmatprep.subr.mxu0 0.0
    %382 = vmatpush1.msra.mxu0 0.0
    %383 = vmatprep.subr.mxu0 0.0
    %384 = vmatpush1.msra.mxu0 0.0
    %385 = vmatprep.subr.mxu0 0.0
    %386 = vmatpush1.msra.mxu0 0.0
    %387 = vmatprep.subr.mxu0 0.0
    %388 = vmatpush1.msra.mxu0 0.0
    %389 = vmatprep.subr.mxu0 0.0
    %390 = vmatpush1.msra.mxu0 0.0
    %391 = vmatprep.mubr.f32.mxu0 0.0
    %392 = vmatmul.mubr.f32.gmra.mrb[0].mxu0 %v322
    %v393 = vpop.f32.mrb[0].mxu0
    %v394 = vadd.f32 %v319, %v393
    %v395 = vpop.f32.mrb[0].mxu0
    %396 = vmatprep.mubr.f32.mxu0 0.0
    %397 = vmatmul.mubr.f32.gmra.mrb[0].mxu0 %v325
    %v398 = vpop.f32.mrb[0].mxu0
    %v399 = vadd.f32 %v319, %v398
    %v400 = vpop.f32.mrb[0].mxu0
    %401 = vdwg.mxu0
    %v402 = vld [vmem:[%s4] sm:$0xff]
    %v403 = vld [vmem:[%s4 + $0x8] sm:$0xff]
    %s404 = scalar_lea.vmem %s9, 64
    %v405 = vld [vmem:[%s404] sm:$0xff]
    %v406 = vld [vmem:[%s404 + $0x8] sm:$0xff]
    %v407 = vld [vmem:[%s404 + $0x10] sm:$0xff]
    %v408 = vld [vmem:[%s404 + $0x18] sm:$0xff]
    %v409 = vld [vmem:[%s404 + $0x20] sm:$0xff]
    %v410 = vld [vmem:[%s404 + $0x28] sm:$0xff]
    %v411 = vld [vmem:[%s404 + $0x30] sm:$0xff]
    %v412 = vld [vmem:[%s404 + $0x38] sm:$0xff]
    %s413 = scalar_lea.vmem %s10, 1
    %v414 = vld [vmem:[%s413] sm:$0x1]
    %v416 = vlaneseq
    %v417 = vshrl.u32 %v416, 7
    %v418 = vsub.s32 0, %v417
    %v419 = vrot.slane %v414, %v418
    %v422 = vsel %vm112, %v402, 0
    %v425 = vsel %vm112, %v403, 0
    %427 = vmatprep.subr.mxu0 0.0
    %428 = vmatpush1.msra.mxu0 %v405
    %429 = vmatprep.subr.mxu0 0.0
    %430 = vmatpush1.msra.mxu0 %v406
    %431 = vmatprep.subr.mxu0 0.0
    %432 = vmatpush1.msra.mxu0 %v407
    %433 = vmatprep.subr.mxu0 0.0
    %434 = vmatpush1.msra.mxu0 %v408
    %435 = vmatprep.subr.mxu0 0.0
    %436 = vmatpush1.msra.mxu0 %v409
    %437 = vmatprep.subr.mxu0 0.0
    %438 = vmatpush1.msra.mxu0 %v410
    %439 = vmatprep.subr.mxu0 0.0
    %440 = vmatpush1.msra.mxu0 %v411
    %441 = vmatprep.subr.mxu0 0.0
    %442 = vmatpush1.msra.mxu0 %v412
    %443 = vmatprep.subr.mxu0 0.0
    %444 = vmatpush1.msra.mxu0 0.0
    %445 = vmatprep.subr.mxu0 0.0
    %446 = vmatpush1.msra.mxu0 0.0
    %447 = vmatprep.subr.mxu0 0.0
    %448 = vmatpush1.msra.mxu0 0.0
    %449 = vmatprep.subr.mxu0 0.0
    %450 = vmatpush1.msra.mxu0 0.0
    %451 = vmatprep.subr.mxu0 0.0
    %452 = vmatpush1.msra.mxu0 0.0
    %453 = vmatprep.subr.mxu0 0.0
    %454 = vmatpush1.msra.mxu0 0.0
    %455 = vmatprep.subr.mxu0 0.0
    %456 = vmatpush1.msra.mxu0 0.0
    %457 = vmatprep.subr.mxu0 0.0
    %458 = vmatpush1.msra.mxu0 0.0
    %459 = vmatprep.subr.mxu0 0.0
    %460 = vmatpush1.msra.mxu0 0.0
    %461 = vmatprep.subr.mxu0 0.0
    %462 = vmatpush1.msra.mxu0 0.0
    %463 = vmatprep.subr.mxu0 0.0
    %464 = vmatpush1.msra.mxu0 0.0
    %465 = vmatprep.subr.mxu0 0.0
    %466 = vmatpush1.msra.mxu0 0.0
    %467 = vmatprep.subr.mxu0 0.0
    %468 = vmatpush1.msra.mxu0 0.0
    %469 = vmatprep.subr.mxu0 0.0
    %470 = vmatpush1.msra.mxu0 0.0
    %471 = vmatprep.subr.mxu0 0.0
    %472 = vmatpush1.msra.mxu0 0.0
    %473 = vmatprep.subr.mxu0 0.0
    %474 = vmatpush1.msra.mxu0 0.0
    %475 = vmatprep.subr.mxu0 0.0
    %476 = vmatpush1.msra.mxu0 0.0
    %477 = vmatprep.subr.mxu0 0.0
    %478 = vmatpush1.msra.mxu0 0.0
    %479 = vmatprep.subr.mxu0 0.0
    %480 = vmatpush1.msra.mxu0 0.0
    %481 = vmatprep.subr.mxu0 0.0
    %482 = vmatpush1.msra.mxu0 0.0
    %483 = vmatprep.subr.mxu0 0.0
    %484 = vmatpush1.msra.mxu0 0.0
    %485 = vmatprep.subr.mxu0 0.0
    %486 = vmatpush1.msra.mxu0 0.0
    %487 = vmatprep.subr.mxu0 0.0
    %488 = vmatpush1.msra.mxu0 0.0
    %489 = vmatprep.subr.mxu0 0.0
    %490 = vmatpush1.msra.mxu0 0.0
    %491 = vmatprep.mubr.f32.mxu0 0.0
    %492 = vmatmul.mubr.f32.gmra.mrb[0].mxu0 %v422
    %v493 = vpop.f32.mrb[0].mxu0
    %v494 = vadd.f32 %v419, %v493
    %v495 = vpop.f32.mrb[0].mxu0
    %496 = vmatprep.mubr.f32.mxu0 0.0
    %497 = vmatmul.mubr.f32.gmra.mrb[0].mxu0 %v425
    %v498 = vpop.f32.mrb[0].mxu0
    %v499 = vadd.f32 %v419, %v498
    %v500 = vpop.f32.mrb[0].mxu0
    %501 = vdwg.mxu0
    %v502 = vstv %s300
    %v503 = vmul.f32 %v502, %v394
    %v504 = vmul.f32 %v502, %v399
    %v505 = vstv %s301
    %v506 = vmul.f32 %v505, %v494
    %v507 = vmul.f32 %v505, %v499
    %v508 = vadd.f32 %v503, %v506
    %v509 = vadd.f32 %v504, %v507
    %s510 = sld [smem:[#allocation4 + $0x100]]
    %s511 = sld [smem:[#allocation4 + $0x101]]
    %v512 = vld [vmem:[%s5] sm:$0xff]
    %v513 = vld [vmem:[%s5 + $0x8] sm:$0xff]
    %s514 = scalar_lea.vmem %s7, 128
    %v515 = vld [vmem:[%s514] sm:$0xff]
    %v516 = vld [vmem:[%s514 + $0x8] sm:$0xff]
    %v517 = vld [vmem:[%s514 + $0x10] sm:$0xff]
    %v518 = vld [vmem:[%s514 + $0x18] sm:$0xff]
    %v519 = vld [vmem:[%s514 + $0x20] sm:$0xff]
    %v520 = vld [vmem:[%s514 + $0x28] sm:$0xff]
    %v521 = vld [vmem:[%s514 + $0x30] sm:$0xff]
    %v522 = vld [vmem:[%s514 + $0x38] sm:$0xff]
    %s523 = scalar_lea.vmem %s8, 2
    %v524 = vld [vmem:[%s523] sm:$0x1]
    %v526 = vlaneseq
    %v527 = vshrl.u32 %v526, 7
    %v528 = vsub.s32 0, %v527
    %v529 = vrot.slane %v524, %v528
    %v532 = vsel %vm112, %v512, 0
    %v535 = vsel %vm112, %v513, 0
    %537 = vmatprep.subr.mxu0 0.0
    %538 = vmatpush1.msra.mxu0 %v515
    %539 = vmatprep.subr.mxu0 0.0
    %540 = vmatpush1.msra.mxu0 %v516
    %541 = vmatprep.subr.mxu0 0.0
    %542 = vmatpush1.msra.mxu0 %v517
    %543 = vmatprep.subr.mxu0 0.0
    %544 = vmatpush1.msra.mxu0 %v518
    %545 = vmatprep.subr.mxu0 0.0
    %546 = vmatpush1.msra.mxu0 %v519
    %547 = vmatprep.subr.mxu0 0.0
    %548 = vmatpush1.msra.mxu0 %v520
    %549 = vmatprep.subr.mxu0 0.0
    %550 = vmatpush1.msra.mxu0 %v521
    %551 = vmatprep.subr.mxu0 0.0
    %552 = vmatpush1.msra.mxu0 %v522
    %553 = vmatprep.subr.mxu0 0.0
    %554 = vmatpush1.msra.mxu0 0.0
    %555 = vmatprep.subr.mxu0 0.0
    %556 = vmatpush1.msra.mxu0 0.0
    %557 = vmatprep.subr.mxu0 0.0
    %558 = vmatpush1.msra.mxu0 0.0
    %559 = vmatprep.subr.mxu0 0.0
    %560 = vmatpush1.msra.mxu0 0.0
    %561 = vmatprep.subr.mxu0 0.0
    %562 = vmatpush1.msra.mxu0 0.0
    %563 = vmatprep.subr.mxu0 0.0
    %564 = vmatpush1.msra.mxu0 0.0
    %565 = vmatprep.subr.mxu0 0.0
    %566 = vmatpush1.msra.mxu0 0.0
    %567 = vmatprep.subr.mxu0 0.0
    %568 = vmatpush1.msra.mxu0 0.0
    %569 = vmatprep.subr.mxu0 0.0
    %570 = vmatpush1.msra.mxu0 0.0
    %571 = vmatprep.subr.mxu0 0.0
    %572 = vmatpush1.msra.mxu0 0.0
    %573 = vmatprep.subr.mxu0 0.0
    %574 = vmatpush1.msra.mxu0 0.0
    %575 = vmatprep.subr.mxu0 0.0
    %576 = vmatpush1.msra.mxu0 0.0
    %577 = vmatprep.subr.mxu0 0.0
    %578 = vmatpush1.msra.mxu0 0.0
    %579 = vmatprep.subr.mxu0 0.0
    %580 = vmatpush1.msra.mxu0 0.0
    %581 = vmatprep.subr.mxu0 0.0
    %582 = vmatpush1.msra.mxu0 0.0
    %583 = vmatprep.subr.mxu0 0.0
    %584 = vmatpush1.msra.mxu0 0.0
    %585 = vmatprep.subr.mxu0 0.0
    %586 = vmatpush1.msra.mxu0 0.0
    %587 = vmatprep.subr.mxu0 0.0
    %588 = vmatpush1.msra.mxu0 0.0
    %589 = vmatprep.subr.mxu0 0.0
    %590 = vmatpush1.msra.mxu0 0.0
    %591 = vmatprep.subr.mxu0 0.0
    %592 = vmatpush1.msra.mxu0 0.0
    %593 = vmatprep.subr.mxu0 0.0
    %594 = vmatpush1.msra.mxu0 0.0
    %595 = vmatprep.subr.mxu0 0.0
    %596 = vmatpush1.msra.mxu0 0.0
    %597 = vmatprep.subr.mxu0 0.0
    %598 = vmatpush1.msra.mxu0 0.0
    %599 = vmatprep.subr.mxu0 0.0
    %600 = vmatpush1.msra.mxu0 0.0
    %601 = vmatprep.mubr.f32.mxu0 0.0
    %602 = vmatmul.mubr.f32.gmra.mrb[0].mxu0 %v532
    %v603 = vpop.f32.mrb[0].mxu0
    %v604 = vadd.f32 %v529, %v603
    %v605 = vpop.f32.mrb[0].mxu0
    %606 = vmatprep.mubr.f32.mxu0 0.0
    %607 = vmatmul.mubr.f32.gmra.mrb[0].mxu0 %v535
    %v608 = vpop.f32.mrb[0].mxu0
    %v609 = vadd.f32 %v529, %v608
    %v610 = vpop.f32.mrb[0].mxu0
    %611 = vdwg.mxu0
    %v612 = vld [vmem:[%s6] sm:$0xff]
    %v613 = vld [vmem:[%s6 + $0x8] sm:$0xff]
    %s614 = scalar_lea.vmem %s9, 128
    %v615 = vld [vmem:[%s614] sm:$0xff]
    %v616 = vld [vmem:[%s614 + $0x8] sm:$0xff]
    %v617 = vld [vmem:[%s614 + $0x10] sm:$0xff]
    %v618 = vld [vmem:[%s614 + $0x18] sm:$0xff]
    %v619 = vld [vmem:[%s614 + $0x20] sm:$0xff]
    %v620 = vld [vmem:[%s614 + $0x28] sm:$0xff]
    %v621 = vld [vmem:[%s614 + $0x30] sm:$0xff]
    %v622 = vld [vmem:[%s614 + $0x38] sm:$0xff]
    %s623 = scalar_lea.vmem %s10, 2
    %v624 = vld [vmem:[%s623] sm:$0x1]
    %v626 = vlaneseq
    %v627 = vshrl.u32 %v626, 7
    %v628 = vsub.s32 0, %v627
    %v629 = vrot.slane %v624, %v628
    %v632 = vsel %vm112, %v612, 0
    %v635 = vsel %vm112, %v613, 0
    %637 = vmatprep.subr.mxu0 0.0
    %638 = vmatpush1.msra.mxu0 %v615
    %639 = vmatprep.subr.mxu0 0.0
    %640 = vmatpush1.msra.mxu0 %v616
    %641 = vmatprep.subr.mxu0 0.0
    %642 = vmatpush1.msra.mxu0 %v617
    %643 = vmatprep.subr.mxu0 0.0
    %644 = vmatpush1.msra.mxu0 %v618
    %645 = vmatprep.subr.mxu0 0.0
    %646 = vmatpush1.msra.mxu0 %v619
    %647 = vmatprep.subr.mxu0 0.0
    %648 = vmatpush1.msra.mxu0 %v620
    %649 = vmatprep.subr.mxu0 0.0
    %650 = vmatpush1.msra.mxu0 %v621
    %651 = vmatprep.subr.mxu0 0.0
    %652 = vmatpush1.msra.mxu0 %v622
    %653 = vmatprep.subr.mxu0 0.0
    %654 = vmatpush1.msra.mxu0 0.0
    %655 = vmatprep.subr.mxu0 0.0
    %656 = vmatpush1.msra.mxu0 0.0
    %657 = vmatprep.subr.mxu0 0.0
    %658 = vmatpush1.msra.mxu0 0.0
    %659 = vmatprep.subr.mxu0 0.0
    %660 = vmatpush1.msra.mxu0 0.0
    %661 = vmatprep.subr.mxu0 0.0
    %662 = vmatpush1.msra.mxu0 0.0
    %663 = vmatprep.subr.mxu0 0.0
    %664 = vmatpush1.msra.mxu0 0.0
    %665 = vmatprep.subr.mxu0 0.0
    %666 = vmatpush1.msra.mxu0 0.0
    %667 = vmatprep.subr.mxu0 0.0
    %668 = vmatpush1.msra.mxu0 0.0
    %669 = vmatprep.subr.mxu0 0.0
    %670 = vmatpush1.msra.mxu0 0.0
    %671 = vmatprep.subr.mxu0 0.0
    %672 = vmatpush1.msra.mxu0 0.0
    %673 = vmatprep.subr.mxu0 0.0
    %674 = vmatpush1.msra.mxu0 0.0
    %675 = vmatprep.subr.mxu0 0.0
    %676 = vmatpush1.msra.mxu0 0.0
    %677 = vmatprep.subr.mxu0 0.0
    %678 = vmatpush1.msra.mxu0 0.0
    %679 = vmatprep.subr.mxu0 0.0
    %680 = vmatpush1.msra.mxu0 0.0
    %681 = vmatprep.subr.mxu0 0.0
    %682 = vmatpush1.msra.mxu0 0.0
    %683 = vmatprep.subr.mxu0 0.0
    %684 = vmatpush1.msra.mxu0 0.0
    %685 = vmatprep.subr.mxu0 0.0
    %686 = vmatpush1.msra.mxu0 0.0
    %687 = vmatprep.subr.mxu0 0.0
    %688 = vmatpush1.msra.mxu0 0.0
    %689 = vmatprep.subr.mxu0 0.0
    %690 = vmatpush1.msra.mxu0 0.0
    %691 = vmatprep.subr.mxu0 0.0
    %692 = vmatpush1.msra.mxu0 0.0
    %693 = vmatprep.subr.mxu0 0.0
    %694 = vmatpush1.msra.mxu0 0.0
    %695 = vmatprep.subr.mxu0 0.0
    %696 = vmatpush1.msra.mxu0 0.0
    %697 = vmatprep.subr.mxu0 0.0
    %698 = vmatpush1.msra.mxu0 0.0
    %699 = vmatprep.subr.mxu0 0.0
    %700 = vmatpush1.msra.mxu0 0.0
    %701 = vmatprep.mubr.f32.mxu0 0.0
    %702 = vmatmul.mubr.f32.gmra.mrb[0].mxu0 %v632
    %v703 = vpop.f32.mrb[0].mxu0
    %v704 = vadd.f32 %v629, %v703
    %v705 = vpop.f32.mrb[0].mxu0
    %706 = vmatprep.mubr.f32.mxu0 0.0
    %707 = vmatmul.mubr.f32.gmra.mrb[0].mxu0 %v635
    %v708 = vpop.f32.mrb[0].mxu0
    %v709 = vadd.f32 %v629, %v708
    %v710 = vpop.f32.mrb[0].mxu0
    %711 = vdwg.mxu0
    %v712 = vstv %s510
    %v713 = vmul.f32 %v712, %v604
    %v714 = vmul.f32 %v712, %v609
    %v715 = vstv %s511
    %v716 = vmul.f32 %v715, %v704
    %v717 = vmul.f32 %v715, %v709
    %v718 = vadd.f32 %v713, %v716
    %v719 = vadd.f32 %v714, %v717
    %v720 = vld [vmem:[%s11] sm:$0xff]
    %v721 = vld [vmem:[%s11 + $0x8] sm:$0xff]
    %v722 = vld [vmem:[%s11 + $0x10] sm:$0xff]
    %v723 = vld [vmem:[%s11 + $0x18] sm:$0xff]
    %v724 = vld [vmem:[%s12] sm:$0x1]
    %v726 = vlaneseq
    %v727 = vshrl.u32 %v726, 7
    %v728 = vsub.s32 0, %v727
    %v729 = vrot.slane %v724, %v728
    %vm731 = vcmask 261120
    %v733 = vsel %vm731, %v298, 0
    %v736 = vsel %vm731, %v299, 0
    %738 = vmatprep.subr.mxu0 0.0
    %739 = vmatpush1.msra.mxu0 %v720
    %740 = vmatprep.subr.mxu0 0.0
    %741 = vmatpush1.msra.mxu0 %v721
    %742 = vmatprep.subr.mxu0 0.0
    %743 = vmatpush1.msra.mxu0 %v722
    %744 = vmatprep.subr.mxu0 0.0
    %745 = vmatpush1.msra.mxu0 %v723
    %746 = vmatprep.subr.mxu0 0.0
    %747 = vmatpush1.msra.mxu0 0.0
    %748 = vmatprep.subr.mxu0 0.0
    %749 = vmatpush1.msra.mxu0 0.0
    %750 = vmatprep.subr.mxu0 0.0
    %751 = vmatpush1.msra.mxu0 0.0
    %752 = vmatprep.subr.mxu0 0.0
    %753 = vmatpush1.msra.mxu0 0.0
    %754 = vmatprep.subr.mxu0 0.0
    %755 = vmatpush1.msra.mxu0 0.0
    %756 = vmatprep.subr.mxu0 0.0
    %757 = vmatpush1.msra.mxu0 0.0
    %758 = vmatprep.subr.mxu0 0.0
    %759 = vmatpush1.msra.mxu0 0.0
    %760 = vmatprep.subr.mxu0 0.0
    %761 = vmatpush1.msra.mxu0 0.0
    %762 = vmatprep.subr.mxu0 0.0
    %763 = vmatpush1.msra.mxu0 0.0
    %764 = vmatprep.subr.mxu0 0.0
    %765 = vmatpush1.msra.mxu0 0.0
    %766 = vmatprep.subr.mxu0 0.0
    %767 = vmatpush1.msra.mxu0 0.0
    %768 = vmatprep.subr.mxu0 0.0
    %769 = vmatpush1.msra.mxu0 0.0
    %770 = vmatprep.subr.mxu0 0.0
    %771 = vmatpush1.msra.mxu0 0.0
    %772 = vmatprep.subr.mxu0 0.0
    %773 = vmatpush1.msra.mxu0 0.0
    %774 = vmatprep.subr.mxu0 0.0
    %775 = vmatpush1.msra.mxu0 0.0
    %776 = vmatprep.subr.mxu0 0.0
    %777 = vmatpush1.msra.mxu0 0.0
    %778 = vmatprep.subr.mxu0 0.0
    %779 = vmatpush1.msra.mxu0 0.0
    %780 = vmatprep.subr.mxu0 0.0
    %781 = vmatpush1.msra.mxu0 0.0
    %782 = vmatprep.subr.mxu0 0.0
    %783 = vmatpush1.msra.mxu0 0.0
    %784 = vmatprep.subr.mxu0 0.0
    %785 = vmatpush1.msra.mxu0 0.0
    %786 = vmatprep.subr.mxu0 0.0
    %787 = vmatpush1.msra.mxu0 0.0
    %788 = vmatprep.subr.mxu0 0.0
    %789 = vmatpush1.msra.mxu0 0.0
    %790 = vmatprep.subr.mxu0 0.0
    %791 = vmatpush1.msra.mxu0 0.0
    %792 = vmatprep.subr.mxu0 0.0
    %793 = vmatpush1.msra.mxu0 0.0
    %794 = vmatprep.subr.mxu0 0.0
    %795 = vmatpush1.msra.mxu0 0.0
    %796 = vmatprep.subr.mxu0 0.0
    %797 = vmatpush1.msra.mxu0 0.0
    %798 = vmatprep.subr.mxu0 0.0
    %799 = vmatpush1.msra.mxu0 0.0
    %800 = vmatprep.subr.mxu0 0.0
    %801 = vmatpush1.msra.mxu0 0.0
    %802 = vmatprep.mubr.f32.mxu0 0.0
    %803 = vmatmul.mubr.f32.gmra.mrb[0].mxu0 %v733
    %v804 = vpop.f32.mrb[0].mxu0
    %v805 = vadd.f32 %v729, %v804
    %v806 = vpop.f32.mrb[0].mxu0
    %807 = vmatprep.mubr.f32.mxu0 0.0
    %808 = vmatmul.mubr.f32.gmra.mrb[0].mxu0 %v736
    %v809 = vpop.f32.mrb[0].mxu0
    %v810 = vadd.f32 %v729, %v809
    %v811 = vpop.f32.mrb[0].mxu0
    %812 = vdwg.mxu0
    %813 = vst.msk [vmem:[#allocation2] sm:$0xff] %vm731, %v805
    %814 = vst.msk [vmem:[#allocation2 + $0x8] sm:$0xff] %vm731, %v810
    %s815 = scalar_lea.vmem %s11, 32
    %v816 = vld [vmem:[%s815] sm:$0xff]
    %v817 = vld [vmem:[%s815 + $0x8] sm:$0xff]
    %v818 = vld [vmem:[%s815 + $0x10] sm:$0xff]
    %v819 = vld [vmem:[%s815 + $0x18] sm:$0xff]
    %s820 = scalar_lea.vmem %s12, 1
    %v821 = vld [vmem:[%s820] sm:$0x1]
    %v823 = vlaneseq
    %v824 = vshrl.u32 %v823, 7
    %v825 = vsub.s32 0, %v824
    %v826 = vrot.slane %v821, %v825
    %v829 = vsel %vm731, %v508, 0
    %v832 = vsel %vm731, %v509, 0
    %834 = vmatprep.subr.mxu0 0.0
    %835 = vmatpush1.msra.mxu0 %v816
    %836 = vmatprep.subr.mxu0 0.0
    %837 = vmatpush1.msra.mxu0 %v817
    %838 = vmatprep.subr.mxu0 0.0
    %839 = vmatpush1.msra.mxu0 %v818
    %840 = vmatprep.subr.mxu0 0.0
    %841 = vmatpush1.msra.mxu0 %v819
    %842 = vmatprep.subr.mxu0 0.0
    %843 = vmatpush1.msra.mxu0 0.0
    %844 = vmatprep.subr.mxu0 0.0
    %845 = vmatpush1.msra.mxu0 0.0
    %846 = vmatprep.subr.mxu0 0.0
    %847 = vmatpush1.msra.mxu0 0.0
    %848 = vmatprep.subr.mxu0 0.0
    %849 = vmatpush1.msra.mxu0 0.0
    %850 = vmatprep.subr.mxu0 0.0
    %851 = vmatpush1.msra.mxu0 0.0
    %852 = vmatprep.subr.mxu0 0.0
    %853 = vmatpush1.msra.mxu0 0.0
    %854 = vmatprep.subr.mxu0 0.0
    %855 = vmatpush1.msra.mxu0 0.0
    %856 = vmatprep.subr.mxu0 0.0
    %857 = vmatpush1.msra.mxu0 0.0
    %858 = vmatprep.subr.mxu0 0.0
    %859 = vmatpush1.msra.mxu0 0.0
    %860 = vmatprep.subr.mxu0 0.0
    %861 = vmatpush1.msra.mxu0 0.0
    %862 = vmatprep.subr.mxu0 0.0
    %863 = vmatpush1.msra.mxu0 0.0
    %864 = vmatprep.subr.mxu0 0.0
    %865 = vmatpush1.msra.mxu0 0.0
    %866 = vmatprep.subr.mxu0 0.0
    %867 = vmatpush1.msra.mxu0 0.0
    %868 = vmatprep.subr.mxu0 0.0
    %869 = vmatpush1.msra.mxu0 0.0
    %870 = vmatprep.subr.mxu0 0.0
    %871 = vmatpush1.msra.mxu0 0.0
    %872 = vmatprep.subr.mxu0 0.0
    %873 = vmatpush1.msra.mxu0 0.0
    %874 = vmatprep.subr.mxu0 0.0
    %875 = vmatpush1.msra.mxu0 0.0
    %876 = vmatprep.subr.mxu0 0.0
    %877 = vmatpush1.msra.mxu0 0.0
    %878 = vmatprep.subr.mxu0 0.0
    %879 = vmatpush1.msra.mxu0 0.0
    %880 = vmatprep.subr.mxu0 0.0
    %881 = vmatpush1.msra.mxu0 0.0
    %882 = vmatprep.subr.mxu0 0.0
    %883 = vmatpush1.msra.mxu0 0.0
    %884 = vmatprep.subr.mxu0 0.0
    %885 = vmatpush1.msra.mxu0 0.0
    %886 = vmatprep.subr.mxu0 0.0
    %887 = vmatpush1.msra.mxu0 0.0
    %888 = vmatprep.subr.mxu0 0.0
    %889 = vmatpush1.msra.mxu0 0.0
    %890 = vmatprep.subr.mxu0 0.0
    %891 = vmatpush1.msra.mxu0 0.0
    %892 = vmatprep.subr.mxu0 0.0
    %893 = vmatpush1.msra.mxu0 0.0
    %894 = vmatprep.subr.mxu0 0.0
    %895 = vmatpush1.msra.mxu0 0.0
    %896 = vmatprep.subr.mxu0 0.0
    %897 = vmatpush1.msra.mxu0 0.0
    %898 = vmatprep.mubr.f32.mxu0 0.0
    %899 = vmatmul.mubr.f32.gmra.mrb[0].mxu0 %v829
    %v900 = vpop.f32.mrb[0].mxu0
    %v901 = vadd.f32 %v826, %v900
    %v902 = vpop.f32.mrb[0].mxu0
    %903 = vmatprep.mubr.f32.mxu0 0.0
    %904 = vmatmul.mubr.f32.gmra.mrb[0].mxu0 %v832
    %v905 = vpop.f32.mrb[0].mxu0
    %v906 = vadd.f32 %v826, %v905
    %v907 = vpop.f32.mrb[0].mxu0
    %908 = vdwg.mxu0
    %s909 = scalar_lea.vmem [#allocation2], 16
    %910 = vst.msk [vmem:[%s909] sm:$0xff] %vm731, %v901
    %911 = vst.msk [vmem:[%s909 + $0x8] sm:$0xff] %vm731, %v906
    %s912 = scalar_lea.vmem %s11, 64
    %v913 = vld [vmem:[%s912] sm:$0xff]
    %v914 = vld [vmem:[%s912 + $0x8] sm:$0xff]
    %v915 = vld [vmem:[%s912 + $0x10] sm:$0xff]
    %v916 = vld [vmem:[%s912 + $0x18] sm:$0xff]
    %s917 = scalar_lea.vmem %s12, 2
    %v918 = vld [vmem:[%s917] sm:$0x1]
    %v920 = vlaneseq
    %v921 = vshrl.u32 %v920, 7
    %v922 = vsub.s32 0, %v921
    %v923 = vrot.slane %v918, %v922
    %v926 = vsel %vm731, %v718, 0
    %v929 = vsel %vm731, %v719, 0
    %931 = vmatprep.subr.mxu0 0.0
    %932 = vmatpush1.msra.mxu0 %v913
    %933 = vmatprep.subr.mxu0 0.0
    %934 = vmatpush1.msra.mxu0 %v914
    %935 = vmatprep.subr.mxu0 0.0
    %936 = vmatpush1.msra.mxu0 %v915
    %937 = vmatprep.subr.mxu0 0.0
    %938 = vmatpush1.msra.mxu0 %v916
    %939 = vmatprep.subr.mxu0 0.0
    %940 = vmatpush1.msra.mxu0 0.0
    %941 = vmatprep.subr.mxu0 0.0
    %942 = vmatpush1.msra.mxu0 0.0
    %943 = vmatprep.subr.mxu0 0.0
    %944 = vmatpush1.msra.mxu0 0.0
    %945 = vmatprep.subr.mxu0 0.0
    %946 = vmatpush1.msra.mxu0 0.0
    %947 = vmatprep.subr.mxu0 0.0
    %948 = vmatpush1.msra.mxu0 0.0
    %949 = vmatprep.subr.mxu0 0.0
    %950 = vmatpush1.msra.mxu0 0.0
    %951 = vmatprep.subr.mxu0 0.0
    %952 = vmatpush1.msra.mxu0 0.0
    %953 = vmatprep.subr.mxu0 0.0
    %954 = vmatpush1.msra.mxu0 0.0
    %955 = vmatprep.subr.mxu0 0.0
    %956 = vmatpush1.msra.mxu0 0.0
    %957 = vmatprep.subr.mxu0 0.0
    %958 = vmatpush1.msra.mxu0 0.0
    %959 = vmatprep.subr.mxu0 0.0
    %960 = vmatpush1.msra.mxu0 0.0
    %961 = vmatprep.subr.mxu0 0.0
    %962 = vmatpush1.msra.mxu0 0.0
    %963 = vmatprep.subr.mxu0 0.0
    %964 = vmatpush1.msra.mxu0 0.0
    %965 = vmatprep.subr.mxu0 0.0
    %966 = vmatpush1.msra.mxu0 0.0
    %967 = vmatprep.subr.mxu0 0.0
    %968 = vmatpush1.msra.mxu0 0.0
    %969 = vmatprep.subr.mxu0 0.0
    %970 = vmatpush1.msra.mxu0 0.0
    %971 = vmatprep.subr.mxu0 0.0
    %972 = vmatpush1.msra.mxu0 0.0
    %973 = vmatprep.subr.mxu0 0.0
    %974 = vmatpush1.msra.mxu0 0.0
    %975 = vmatprep.subr.mxu0 0.0
    %976 = vmatpush1.msra.mxu0 0.0
    %977 = vmatprep.subr.mxu0 0.0
    %978 = vmatpush1.msra.mxu0 0.0
    %979 = vmatprep.subr.mxu0 0.0
    %980 = vmatpush1.msra.mxu0 0.0
    %981 = vmatprep.subr.mxu0 0.0
    %982 = vmatpush1.msra.mxu0 0.0
    %983 = vmatprep.subr.mxu0 0.0
    %984 = vmatpush1.msra.mxu0 0.0
    %985 = vmatprep.subr.mxu0 0.0
    %986 = vmatpush1.msra.mxu0 0.0
    %987 = vmatprep.subr.mxu0 0.0
    %988 = vmatpush1.msra.mxu0 0.0
    %989 = vmatprep.subr.mxu0 0.0
    %990 = vmatpush1.msra.mxu0 0.0
    %991 = vmatprep.subr.mxu0 0.0
    %992 = vmatpush1.msra.mxu0 0.0
    %993 = vmatprep.subr.mxu0 0.0
    %994 = vmatpush1.msra.mxu0 0.0
    %995 = vmatprep.mubr.f32.mxu0 0.0
    %996 = vmatmul.mubr.f32.gmra.mrb[0].mxu0 %v926
    %v997 = vpop.f32.mrb[0].mxu0
    %v998 = vadd.f32 %v923, %v997
    %v999 = vpop.f32.mrb[0].mxu0
    %1000 = vmatprep.mubr.f32.mxu0 0.0
    %1001 = vmatmul.mubr.f32.gmra.mrb[0].mxu0 %v929
    %v1002 = vpop.f32.mrb[0].mxu0
    %v1003 = vadd.f32 %v923, %v1002
    %v1004 = vpop.f32.mrb[0].mxu0
    %1005 = vdwg.mxu0
    %s1006 = scalar_lea.vmem [#allocation2], 32
    %1007 = vst.msk [vmem:[%s1006] sm:$0xff] %vm731, %v998
    %1008 = vst.msk [vmem:[%s1006 + $0x8] sm:$0xff] %vm731, %v1003
    %v1009 = vld [vmem:[#allocation2] sm:$0xff]
    %v1010 = vld [vmem:[%s909] sm:$0xff]
    %v1011 = vld [vmem:[%s1006] sm:$0xff]
    %vm1012 = vcmask 64512
    %v1014 = vsel %vm1012, %v1009, 0
    %v1017 = vsel %vm1012, %v1010, 0
    %1019 = vmatprep.subr.mxu0 0.0
    %1020 = vmatpush1.xpose.msra.mxu0 %v1017
    %1021 = vmatprep.subr.mxu0 0.0
    %1022 = vmatpush1.xpose.msra.mxu0 0.0
    %1023 = vmatprep.subr.mxu0 0.0
    %1024 = vmatpush1.xpose.msra.mxu0 0.0
    %1025 = vmatprep.subr.mxu0 0.0
    %1026 = vmatpush1.xpose.msra.mxu0 0.0
    %1027 = vmatprep.subr.mxu0 0.0
    %1028 = vmatpush1.xpose.msra.mxu0 0.0
    %1029 = vmatprep.subr.mxu0 0.0
    %1030 = vmatpush1.xpose.msra.mxu0 0.0
    %1031 = vmatprep.subr.mxu0 0.0
    %1032 = vmatpush1.xpose.msra.mxu0 0.0
    %1033 = vmatprep.subr.mxu0 0.0
    %1034 = vmatpush1.xpose.msra.mxu0 0.0
    %1035 = vmatprep.subr.mxu0 0.0
    %1036 = vmatpush1.xpose.msra.mxu0 0.0
    %1037 = vmatprep.subr.mxu0 0.0
    %1038 = vmatpush1.xpose.msra.mxu0 0.0
    %1039 = vmatprep.subr.mxu0 0.0
    %1040 = vmatpush1.xpose.msra.mxu0 0.0
    %1041 = vmatprep.subr.mxu0 0.0
    %1042 = vmatpush1.xpose.msra.mxu0 0.0
    %1043 = vmatprep.subr.mxu0 0.0
    %1044 = vmatpush1.xpose.msra.mxu0 0.0
    %1045 = vmatprep.subr.mxu0 0.0
    %1046 = vmatpush1.xpose.msra.mxu0 0.0
    %1047 = vmatprep.subr.mxu0 0.0
    %1048 = vmatpush1.xpose.msra.mxu0 0.0
    %1049 = vmatprep.subr.mxu0 0.0
    %1050 = vmatpush1.xpose.msra.mxu0 0.0
    %1051 = vmatprep.subr.mxu0 0.0
    %1052 = vmatpush1.xpose.msra.mxu0 0.0
    %1053 = vmatprep.subr.mxu0 0.0
    %1054 = vmatpush1.xpose.msra.mxu0 0.0
    %1055 = vmatprep.subr.mxu0 0.0
    %1056 = vmatpush1.xpose.msra.mxu0 0.0
    %1057 = vmatprep.subr.mxu0 0.0
    %1058 = vmatpush1.xpose.msra.mxu0 0.0
    %1059 = vmatprep.subr.mxu0 0.0
    %1060 = vmatpush1.xpose.msra.mxu0 0.0
    %1061 = vmatprep.subr.mxu0 0.0
    %1062 = vmatpush1.xpose.msra.mxu0 0.0
    %1063 = vmatprep.subr.mxu0 0.0
    %1064 = vmatpush1.xpose.msra.mxu0 0.0
    %1065 = vmatprep.subr.mxu0 0.0
    %1066 = vmatpush1.xpose.msra.mxu0 0.0
    %1067 = vmatprep.subr.mxu0 0.0
    %1068 = vmatpush1.xpose.msra.mxu0 0.0
    %1069 = vmatprep.subr.mxu0 0.0
    %1070 = vmatpush1.xpose.msra.mxu0 0.0
    %1071 = vmatprep.subr.mxu0 0.0
    %1072 = vmatpush1.xpose.msra.mxu0 0.0
    %1073 = vmatprep.subr.mxu0 0.0
    %1074 = vmatpush1.xpose.msra.mxu0 0.0
    %1075 = vmatprep.subr.mxu0 0.0
    %1076 = vmatpush1.xpose.msra.mxu0 0.0
    %1077 = vmatprep.subr.mxu0 0.0
    %1078 = vmatpush1.xpose.msra.mxu0 0.0
    %1079 = vmatprep.subr.mxu0 0.0
    %1080 = vmatpush1.xpose.msra.mxu0 0.0
    %1081 = vmatprep.subr.mxu0 0.0
    %1082 = vmatpush1.xpose.msra.mxu0 0.0
    %1083 = vmatprep.mubr.f32.mxu0 0.0
    %1084 = vmatmul.mubr.f32.gmra.mrb[0].mxu0 %v1014
    %v1085 = vpop.f32.mrb[0].mxu0
    %v1086 = vadd.f32 0.0, %v1085
    %v1087 = vpop.f32.mrb[0].mxu0
    %1088 = vdwg.mxu0
    %v1089 = vmul.f32 %v1086, 0.35355338
    %v1090 = vsel %vm1012, %v1089, -inf
    %1091 = vmax.xlane.f32.xlu0 %v1090
    %v1092 = vpop.xlane.xlu0 %1091
    %v1093 = vsub.f32 %v1089, %v1092
    %v1094 = vmul.f32 %v1093, 1.442695
    %v1095 = vpow.pop %v1094
    %v1096 = vsel %vm1012, %v1095, 0.0
    %1097 = vadd.xlane.f32.xlu0 %v1096
    %v1098 = vpop.xlane.xlu0 %1097
    %v1099 = vrcp.pop %v1098
    %v1100 = vmul.f32 %v1095, %v1099
    %v1102 = vsel %vm1012, %v1100, 0
    %1104 = vmatprep.subr.mxu0 0.0
    %1105 = vmatpush1.msra.mxu0 %v1011
    %1106 = vmatprep.subr.mxu0 0.0
    %1107 = vmatpush1.msra.mxu0 0.0
    %1108 = vmatprep.subr.mxu0 0.0
    %1109 = vmatpush1.msra.mxu0 0.0
    %1110 = vmatprep.subr.mxu0 0.0
    %1111 = vmatpush1.msra.mxu0 0.0
    %1112 = vmatprep.subr.mxu0 0.0
    %1113 = vmatpush1.msra.mxu0 0.0
    %1114 = vmatprep.subr.mxu0 0.0
    %1115 = vmatpush1.msra.mxu0 0.0
    %1116 = vmatprep.subr.mxu0 0.0
    %1117 = vmatpush1.msra.mxu0 0.0
    %1118 = vmatprep.subr.mxu0 0.0
    %1119 = vmatpush1.msra.mxu0 0.0
    %1120 = vmatprep.subr.mxu0 0.0
    %1121 = vmatpush1.msra.mxu0 0.0
    %1122 = vmatprep.subr.mxu0 0.0
    %1123 = vmatpush1.msra.mxu0 0.0
    %1124 = vmatprep.subr.mxu0 0.0
    %1125 = vmatpush1.msra.mxu0 0.0
    %1126 = vmatprep.subr.mxu0 0.0
    %1127 = vmatpush1.msra.mxu0 0.0
    %1128 = vmatprep.subr.mxu0 0.0
    %1129 = vmatpush1.msra.mxu0 0.0
    %1130 = vmatprep.subr.mxu0 0.0
    %1131 = vmatpush1.msra.mxu0 0.0
    %1132 = vmatprep.subr.mxu0 0.0
    %1133 = vmatpush1.msra.mxu0 0.0
    %1134 = vmatprep.subr.mxu0 0.0
    %1135 = vmatpush1.msra.mxu0 0.0
    %1136 = vmatprep.subr.mxu0 0.0
    %1137 = vmatpush1.msra.mxu0 0.0
    %1138 = vmatprep.subr.mxu0 0.0
    %1139 = vmatpush1.msra.mxu0 0.0
    %1140 = vmatprep.subr.mxu0 0.0
    %1141 = vmatpush1.msra.mxu0 0.0
    %1142 = vmatprep.subr.mxu0 0.0
    %1143 = vmatpush1.msra.mxu0 0.0
    %1144 = vmatprep.subr.mxu0 0.0
    %1145 = vmatpush1.msra.mxu0 0.0
    %1146 = vmatprep.subr.mxu0 0.0
    %1147 = vmatpush1.msra.mxu0 0.0
    %1148 = vmatprep.subr.mxu0 0.0
    %1149 = vmatpush1.msra.mxu0 0.0
    %1150 = vmatprep.subr.mxu0 0.0
    %1151 = vmatpush1.msra.mxu0 0.0
    %1152 = vmatprep.subr.mxu0 0.0
    %1153 = vmatpush1.msra.mxu0 0.0
    %1154 = vmatprep.subr.mxu0 0.0
    %1155 = vmatpush1.msra.mxu0 0.0
    %1156 = vmatprep.subr.mxu0 0.0
    %1157 = vmatpush1.msra.mxu0 0.0
    %1158 = vmatprep.subr.mxu0 0.0
    %1159 = vmatpush1.msra.mxu0 0.0
    %1160 = vmatprep.subr.mxu0 0.0
    %1161 = vmatpush1.msra.mxu0 0.0
    %1162 = vmatprep.subr.mxu0 0.0
    %1163 = vmatpush1.msra.mxu0 0.0
    %1164 = vmatprep.subr.mxu0 0.0
    %1165 = vmatpush1.msra.mxu0 0.0
    %1166 = vmatprep.subr.mxu0 0.0
    %1167 = vmatpush1.msra.mxu0 0.0
    %1168 = vmatprep.mubr.f32.mxu0 0.0
    %1169 = vmatmul.mubr.f32.gmra.mrb[0].mxu0 %v1102
    %v1170 = vpop.f32.mrb[0].mxu0
    %v1171 = vadd.f32 0.0, %v1170
    %v1172 = vpop.f32.mrb[0].mxu0
    %1173 = vdwg.mxu0
    %1174 = vst.msk [vmem:[#allocation3] sm:$0xff] %vm1012, %v1171
    %v1175 = vld [vmem:[#allocation2] sm:$0xff]
    %v1176 = vld [vmem:[%s909] sm:$0xff]
    %v1177 = vld [vmem:[%s1006] sm:$0xff]
    %1179 = vrot.lane.b32.xlu0 %v1175, 120
    %v1180 = vpop.permute.xlu0 %1179
    %1182 = vrot.lane.b32.xlu0 %v1176, 120
    %v1183 = vpop.permute.xlu0 %1182
    %v1184 = vsel %vm1012, %v1180, 0
    %v1186 = vsel %vm1012, %v1183, 0
    %1188 = vmatprep.subr.mxu0 0.0
    %1189 = vmatpush1.xpose.msra.mxu0 %v1186
    %1190 = vmatprep.subr.mxu0 0.0
    %1191 = vmatpush1.xpose.msra.mxu0 0.0
    %1192 = vmatprep.subr.mxu0 0.0
    %1193 = vmatpush1.xpose.msra.mxu0 0.0
    %1194 = vmatprep.subr.mxu0 0.0
    %1195 = vmatpush1.xpose.msra.mxu0 0.0
    %1196 = vmatprep.subr.mxu0 0.0
    %1197 = vmatpush1.xpose.msra.mxu0 0.0
    %1198 = vmatprep.subr.mxu0 0.0
    %1199 = vmatpush1.xpose.msra.mxu0 0.0
    %1200 = vmatprep.subr.mxu0 0.0
    %1201 = vmatpush1.xpose.msra.mxu0 0.0
    %1202 = vmatprep.subr.mxu0 0.0
    %1203 = vmatpush1.xpose.msra.mxu0 0.0
    %1204 = vmatprep.subr.mxu0 0.0
    %1205 = vmatpush1.xpose.msra.mxu0 0.0
    %1206 = vmatprep.subr.mxu0 0.0
    %1207 = vmatpush1.xpose.msra.mxu0 0.0
    %1208 = vmatprep.subr.mxu0 0.0
    %1209 = vmatpush1.xpose.msra.mxu0 0.0
    %1210 = vmatprep.subr.mxu0 0.0
    %1211 = vmatpush1.xpose.msra.mxu0 0.0
    %1212 = vmatprep.subr.mxu0 0.0
    %1213 = vmatpush1.xpose.msra.mxu0 0.0
    %1214 = vmatprep.subr.mxu0 0.0
    %1215 = vmatpush1.xpose.msra.mxu0 0.0
    %1216 = vmatprep.subr.mxu0 0.0
    %1217 = vmatpush1.xpose.msra.mxu0 0.0
    %1218 = vmatprep.subr.mxu0 0.0
    %1219 = vmatpush1.xpose.msra.mxu0 0.0
    %1220 = vmatprep.subr.mxu0 0.0
    %1221 = vmatpush1.xpose.msra.mxu0 0.0
    %1222 = vmatprep.subr.mxu0 0.0
    %1223 = vmatpush1.xpose.msra.mxu0 0.0
    %1224 = vmatprep.subr.mxu0 0.0
    %1225 = vmatpush1.xpose.msra.mxu0 0.0
    %1226 = vmatprep.subr.mxu0 0.0
    %1227 = vmatpush1.xpose.msra.mxu0 0.0
    %1228 = vmatprep.subr.mxu0 0.0
    %1229 = vmatpush1.xpose.msra.mxu0 0.0
    %1230 = vmatprep.subr.mxu0 0.0
    %1231 = vmatpush1.xpose.msra.mxu0 0.0
    %1232 = vmatprep.subr.mxu0 0.0
    %1233 = vmatpush1.xpose.msra.mxu0 0.0
    %1234 = vmatprep.subr.mxu0 0.0
    %1235 = vmatpush1.xpose.msra.mxu0 0.0
    %1236 = vmatprep.subr.mxu0 0.0
    %1237 = vmatpush1.xpose.msra.mxu0 0.0
    %1238 = vmatprep.subr.mxu0 0.0
    %1239 = vmatpush1.xpose.msra.mxu0 0.0
    %1240 = vmatprep.subr.mxu0 0.0
    %1241 = vmatpush1.xpose.msra.mxu0 0.0
    %1242 = vmatprep.subr.mxu0 0.0
    %1243 = vmatpush1.xpose.msra.mxu0 0.0
    %1244 = vmatprep.subr.mxu0 0.0
    %1245 = vmatpush1.xpose.msra.mxu0 0.0
    %1246 = vmatprep.subr.mxu0 0.0
    %1247 = vmatpush1.xpose.msra.mxu0 0.0
    %1248 = vmatprep.subr.mxu0 0.0
    %1249 = vmatpush1.xpose.msra.mxu0 0.0
    %1250 = vmatprep.subr.mxu0 0.0
    %1251 = vmatpush1.xpose.msra.mxu0 0.0
    %1252 = vmatprep.mubr.f32.mxu0 0.0
    %1253 = vmatmul.mubr.f32.gmra.mrb[0].mxu0 %v1184
    %v1254 = vpop.f32.mrb[0].mxu0
    %v1255 = vadd.f32 0.0, %v1254
    %v1256 = vpop.f32.mrb[0].mxu0
    %1257 = vdwg.mxu0
    %v1258 = vmul.f32 %v1255, 0.35355338
    %v1259 = vsel %vm1012, %v1258, -inf
    %1260 = vmax.xlane.f32.xlu0 %v1259
    %v1261 = vpop.xlane.xlu0 %1260
    %v1262 = vsub.f32 %v1258, %v1261
    %v1263 = vmul.f32 %v1262, 1.442695
    %v1264 = vpow.pop %v1263
    %v1265 = vsel %vm1012, %v1264, 0.0
    %1266 = vadd.xlane.f32.xlu0 %v1265
    %v1267 = vpop.xlane.xlu0 %1266
    %v1268 = vrcp.pop %v1267
    %v1269 = vmul.f32 %v1264, %v1268
    %1271 = vrot.lane.b32.xlu0 %v1177, 120
    %v1272 = vpop.permute.xlu0 %1271
    %v1275 = vsel %vm1012, %v1269, 0
    %1277 = vmatprep.subr.mxu0 0.0
    %1278 = vmatpush1.msra.mxu0 %v1272
    %1279 = vmatprep.subr.mxu0 0.0
    %1280 = vmatpush1.msra.mxu0 0.0
    %1281 = vmatprep.subr.mxu0 0.0
    %1282 = vmatpush1.msra.mxu0 0.0
    %1283 = vmatprep.subr.mxu0 0.0
    %1284 = vmatpush1.msra.mxu0 0.0
    %1285 = vmatprep.subr.mxu0 0.0
    %1286 = vmatpush1.msra.mxu0 0.0
    %1287 = vmatprep.subr.mxu0 0.0
    %1288 = vmatpush1.msra.mxu0 0.0
    %1289 = vmatprep.subr.mxu0 0.0
    %1290 = vmatpush1.msra.mxu0 0.0
    %1291 = vmatprep.subr.mxu0 0.0
    %1292 = vmatpush1.msra.mxu0 0.0
    %1293 = vmatprep.subr.mxu0 0.0
    %1294 = vmatpush1.msra.mxu0 0.0
    %1295 = vmatprep.subr.mxu0 0.0
    %1296 = vmatpush1.msra.mxu0 0.0
    %1297 = vmatprep.subr.mxu0 0.0
    %1298 = vmatpush1.msra.mxu0 0.0
    %1299 = vmatprep.subr.mxu0 0.0
    %1300 = vmatpush1.msra.mxu0 0.0
    %1301 = vmatprep.subr.mxu0 0.0
    %1302 = vmatpush1.msra.mxu0 0.0
    %1303 = vmatprep.subr.mxu0 0.0
    %1304 = vmatpush1.msra.mxu0 0.0
    %1305 = vmatprep.subr.mxu0 0.0
    %1306 = vmatpush1.msra.mxu0 0.0
    %1307 = vmatprep.subr.mxu0 0.0
    %1308 = vmatpush1.msra.mxu0 0.0
    %1309 = vmatprep.subr.mxu0 0.0
    %1310 = vmatpush1.msra.mxu0 0.0
    %1311 = vmatprep.subr.mxu0 0.0
    %1312 = vmatpush1.msra.mxu0 0.0
    %1313 = vmatprep.subr.mxu0 0.0
    %1314 = vmatpush1.msra.mxu0 0.0
    %1315 = vmatprep.subr.mxu0 0.0
    %1316 = vmatpush1.msra.mxu0 0.0
    %1317 = vmatprep.subr.mxu0 0.0
    %1318 = vmatpush1.msra.mxu0 0.0
    %1319 = vmatprep.subr.mxu0 0.0
    %1320 = vmatpush1.msra.mxu0 0.0
    %1321 = vmatprep.subr.mxu0 0.0
    %1322 = vmatpush1.msra.mxu0 0.0
    %1323 = vmatprep.subr.mxu0 0.0
    %1324 = vmatpush1.msra.mxu0 0.0
    %1325 = vmatprep.subr.mxu0 0.0
    %1326 = vmatpush1.msra.mxu0 0.0
    %1327 = vmatprep.subr.mxu0 0.0
    %1328 = vmatpush1.msra.mxu0 0.0
    %1329 = vmatprep.subr.mxu0 0.0
    %1330 = vmatpush1.msra.mxu0 0.0
    %1331 = vmatprep.subr.mxu0 0.0
    %1332 = vmatpush1.msra.mxu0 0.0
    %1333 = vmatprep.subr.mxu0 0.0
    %1334 = vmatpush1.msra.mxu0 0.0
    %1335 = vmatprep.subr.mxu0 0.0
    %1336 = vmatpush1.msra.mxu0 0.0
    %1337 = vmatprep.subr.mxu0 0.0
    %1338 = vmatpush1.msra.mxu0 0.0
    %1339 = vmatprep.subr.mxu0 0.0
    %1340 = vmatpush1.msra.mxu0 0.0
    %1341 = vmatprep.mubr.f32.mxu0 0.0
    %1342 = vmatmul.mubr.f32.gmra.mrb[0].mxu0 %v1275
    %v1343 = vpop.f32.mrb[0].mxu0
    %v1344 = vadd.f32 0.0, %v1343
    %v1345 = vpop.f32.mrb[0].mxu0
    %1346 = vdwg.mxu0
    %1348 = vrot.lane.b32.xlu0 %v1344, 8
    %v1349 = vpop.permute.xlu0 %1348
    %vm1351 = vcmask 130112
    %1352 = vst.msk [vmem:[#allocation3] sm:$0xff] %vm1351, %v1349
    %v1353 = vld [vmem:[#allocation2] sm:$0xff]
    %v1354 = vld [vmem:[%s909] sm:$0xff]
    %v1355 = vld [vmem:[%s1006] sm:$0xff]
    %1357 = vrot.lane.b32.xlu0 %v1353, 112
    %v1358 = vpop.permute.xlu0 %1357
    %1360 = vrot.lane.b32.xlu0 %v1354, 112
    %v1361 = vpop.permute.xlu0 %1360
    %v1362 = vsel %vm1012, %v1358, 0
    %v1364 = vsel %vm1012, %v1361, 0
    %1366 = vmatprep.subr.mxu0 0.0
    %1367 = vmatpush1.xpose.msra.mxu0 %v1364
    %1368 = vmatprep.subr.mxu0 0.0
    %1369 = vmatpush1.xpose.msra.mxu0 0.0
    %1370 = vmatprep.subr.mxu0 0.0
    %1371 = vmatpush1.xpose.msra.mxu0 0.0
    %1372 = vmatprep.subr.mxu0 0.0
    %1373 = vmatpush1.xpose.msra.mxu0 0.0
    %1374 = vmatprep.subr.mxu0 0.0
    %1375 = vmatpush1.xpose.msra.mxu0 0.0
    %1376 = vmatprep.subr.mxu0 0.0
    %1377 = vmatpush1.xpose.msra.mxu0 0.0
    %1378 = vmatprep.subr.mxu0 0.0
    %1379 = vmatpush1.xpose.msra.mxu0 0.0
    %1380 = vmatprep.subr.mxu0 0.0
    %1381 = vmatpush1.xpose.msra.mxu0 0.0
    %1382 = vmatprep.subr.mxu0 0.0
    %1383 = vmatpush1.xpose.msra.mxu0 0.0
    %1384 = vmatprep.subr.mxu0 0.0
    %1385 = vmatpush1.xpose.msra.mxu0 0.0
    %1386 = vmatprep.subr.mxu0 0.0
    %1387 = vmatpush1.xpose.msra.mxu0 0.0
    %1388 = vmatprep.subr.mxu0 0.0
    %1389 = vmatpush1.xpose.msra.mxu0 0.0
    %1390 = vmatprep.subr.mxu0 0.0
    %1391 = vmatpush1.xpose.msra.mxu0 0.0
    %1392 = vmatprep.subr.mxu0 0.0
    %1393 = vmatpush1.xpose.msra.mxu0 0.0
    %1394 = vmatprep.subr.mxu0 0.0
    %1395 = vmatpush1.xpose.msra.mxu0 0.0
    %1396 = vmatprep.subr.mxu0 0.0
    %1397 = vmatpush1.xpose.msra.mxu0 0.0
    %1398 = vmatprep.subr.mxu0 0.0
    %1399 = vmatpush1.xpose.msra.mxu0 0.0
    %1400 = vmatprep.subr.mxu0 0.0
    %1401 = vmatpush1.xpose.msra.mxu0 0.0
    %1402 = vmatprep.subr.mxu0 0.0
    %1403 = vmatpush1.xpose.msra.mxu0 0.0
    %1404 = vmatprep.subr.mxu0 0.0
    %1405 = vmatpush1.xpose.msra.mxu0 0.0
    %1406 = vmatprep.subr.mxu0 0.0
    %1407 = vmatpush1.xpose.msra.mxu0 0.0
    %1408 = vmatprep.subr.mxu0 0.0
    %1409 = vmatpush1.xpose.msra.mxu0 0.0
    %1410 = vmatprep.subr.mxu0 0.0
    %1411 = vmatpush1.xpose.msra.mxu0 0.0
    %1412 = vmatprep.subr.mxu0 0.0
    %1413 = vmatpush1.xpose.msra.mxu0 0.0
    %1414 = vmatprep.subr.mxu0 0.0
    %1415 = vmatpush1.xpose.msra.mxu0 0.0
    %1416 = vmatprep.subr.mxu0 0.0
    %1417 = vmatpush1.xpose.msra.mxu0 0.0
    %1418 = vmatprep.subr.mxu0 0.0
    %1419 = vmatpush1.xpose.msra.mxu0 0.0
    %1420 = vmatprep.subr.mxu0 0.0
    %1421 = vmatpush1.xpose.msra.mxu0 0.0
    %1422 = vmatprep.subr.mxu0 0.0
    %1423 = vmatpush1.xpose.msra.mxu0 0.0
    %1424 = vmatprep.subr.mxu0 0.0
    %1425 = vmatpush1.xpose.msra.mxu0 0.0
    %1426 = vmatprep.subr.mxu0 0.0
    %1427 = vmatpush1.xpose.msra.mxu0 0.0
    %1428 = vmatprep.subr.mxu0 0.0
    %1429 = vmatpush1.xpose.msra.mxu0 0.0
    %1430 = vmatprep.mubr.f32.mxu0 0.0
    %1431 = vmatmul.mubr.f32.gmra.mrb[0].mxu0 %v1362
    %v1432 = vpop.f32.mrb[0].mxu0
    %v1433 = vadd.f32 0.0, %v1432
    %v1434 = vpop.f32.mrb[0].mxu0
    %1435 = vdwg.mxu0
    %v1436 = vmul.f32 %v1433, 0.35355338
    %v1437 = vsel %vm1012, %v1436, -inf
    %1438 = vmax.xlane.f32.xlu0 %v1437
    %v1439 = vpop.xlane.xlu0 %1438
    %v1440 = vsub.f32 %v1436, %v1439
    %v1441 = vmul.f32 %v1440, 1.442695
    %v1442 = vpow.pop %v1441
    %v1443 = vsel %vm1012, %v1442, 0.0
    %1444 = vadd.xlane.f32.xlu0 %v1443
    %v1445 = vpop.xlane.xlu0 %1444
    %v1446 = vrcp.pop %v1445
    %v1447 = vmul.f32 %v1442, %v1446
    %1449 = vrot.lane.b32.xlu0 %v1355, 112
    %v1450 = vpop.permute.xlu0 %1449
    %v1453 = vsel %vm1012, %v1447, 0
    %1455 = vmatprep.subr.mxu0 0.0
    %1456 = vmatpush1.msra.mxu0 %v1450
    %1457 = vmatprep.subr.mxu0 0.0
    %1458 = vmatpush1.msra.mxu0 0.0
    %1459 = vmatprep.subr.mxu0 0.0
    %1460 = vmatpush1.msra.mxu0 0.0
    %1461 = vmatprep.subr.mxu0 0.0
    %1462 = vmatpush1.msra.mxu0 0.0
    %1463 = vmatprep.subr.mxu0 0.0
    %1464 = vmatpush1.msra.mxu0 0.0
    %1465 = vmatprep.subr.mxu0 0.0
    %1466 = vmatpush1.msra.mxu0 0.0
    %1467 = vmatprep.subr.mxu0 0.0
    %1468 = vmatpush1.msra.mxu0 0.0
    %1469 = vmatprep.subr.mxu0 0.0
    %1470 = vmatpush1.msra.mxu0 0.0
    %1471 = vmatprep.subr.mxu0 0.0
    %1472 = vmatpush1.msra.mxu0 0.0
    %1473 = vmatprep.subr.mxu0 0.0
    %1474 = vmatpush1.msra.mxu0 0.0
    %1475 = vmatprep.subr.mxu0 0.0
    %1476 = vmatpush1.msra.mxu0 0.0
    %1477 = vmatprep.subr.mxu0 0.0
    %1478 = vmatpush1.msra.mxu0 0.0
    %1479 = vmatprep.subr.mxu0 0.0
    %1480 = vmatpush1.msra.mxu0 0.0
    %1481 = vmatprep.subr.mxu0 0.0
    %1482 = vmatpush1.msra.mxu0 0.0
    %1483 = vmatprep.subr.mxu0 0.0
    %1484 = vmatpush1.msra.mxu0 0.0
    %1485 = vmatprep.subr.mxu0 0.0
    %1486 = vmatpush1.msra.mxu0 0.0
    %1487 = vmatprep.subr.mxu0 0.0
    %1488 = vmatpush1.msra.mxu0 0.0
    %1489 = vmatprep.subr.mxu0 0.0
    %1490 = vmatpush1.msra.mxu0 0.0
    %1491 = vmatprep.subr.mxu0 0.0
    %1492 = vmatpush1.msra.mxu0 0.0
    %1493 = vmatprep.subr.mxu0 0.0
    %1494 = vmatpush1.msra.mxu0 0.0
    %1495 = vmatprep.subr.mxu0 0.0
    %1496 = vmatpush1.msra.mxu0 0.0
    %1497 = vmatprep.subr.mxu0 0.0
    %1498 = vmatpush1.msra.mxu0 0.0
    %1499 = vmatprep.subr.mxu0 0.0
    %1500 = vmatpush1.msra.mxu0 0.0
    %1501 = vmatprep.subr.mxu0 0.0
    %1502 = vmatpush1.msra.mxu0 0.0
    %1503 = vmatprep.subr.mxu0 0.0
    %1504 = vmatpush1.msra.mxu0 0.0
    %1505 = vmatprep.subr.mxu0 0.0
    %1506 = vmatpush1.msra.mxu0 0.0
    %1507 = vmatprep.subr.mxu0 0.0
    %1508 = vmatpush1.msra.mxu0 0.0
    %1509 = vmatprep.subr.mxu0 0.0
    %1510 = vmatpush1.msra.mxu0 0.0
    %1511 = vmatprep.subr.mxu0 0.0
    %1512 = vmatpush1.msra.mxu0 0.0
    %1513 = vmatprep.subr.mxu0 0.0
    %1514 = vmatpush1.msra.mxu0 0.0
    %1515 = vmatprep.subr.mxu0 0.0
    %1516 = vmatpush1.msra.mxu0 0.0
    %1517 = vmatprep.subr.mxu0 0.0
    %1518 = vmatpush1.msra.mxu0 0.0
    %1519 = vmatprep.mubr.f32.mxu0 0.0
    %1520 = vmatmul.mubr.f32.gmra.mrb[0].mxu0 %v1453
    %v1521 = vpop.f32.mrb[0].mxu0
    %v1522 = vadd.f32 0.0, %v1521
    %v1523 = vpop.f32.mrb[0].mxu0
    %1524 = vdwg.mxu0
    %1526 = vrot.lane.b32.xlu0 %v1522, 16
    %v1527 = vpop.permute.xlu0 %1526
    %vm1529 = vcmask 195712
    %1530 = vst.msk [vmem:[#allocation3] sm:$0xff] %vm1529, %v1527
    %v1531 = vld [vmem:[#allocation2] sm:$0xff]
    %v1532 = vld [vmem:[%s909] sm:$0xff]
    %v1533 = vld [vmem:[%s1006] sm:$0xff]
    %1535 = vrot.lane.b32.xlu0 %v1531, 104
    %v1536 = vpop.permute.xlu0 %1535
    %1538 = vrot.lane.b32.xlu0 %v1532, 104
    %v1539 = vpop.permute.xlu0 %1538
    %v1540 = vsel %vm1012, %v1536, 0
    %v1542 = vsel %vm1012, %v1539, 0
    %1544 = vmatprep.subr.mxu0 0.0
    %1545 = vmatpush1.xpose.msra.mxu0 %v1542
    %1546 = vmatprep.subr.mxu0 0.0
    %1547 = vmatpush1.xpose.msra.mxu0 0.0
    %1548 = vmatprep.subr.mxu0 0.0
    %1549 = vmatpush1.xpose.msra.mxu0 0.0
    %1550 = vmatprep.subr.mxu0 0.0
    %1551 = vmatpush1.xpose.msra.mxu0 0.0
    %1552 = vmatprep.subr.mxu0 0.0
    %1553 = vmatpush1.xpose.msra.mxu0 0.0
    %1554 = vmatprep.subr.mxu0 0.0
    %1555 = vmatpush1.xpose.msra.mxu0 0.0
    %1556 = vmatprep.subr.mxu0 0.0
    %1557 = vmatpush1.xpose.msra.mxu0 0.0
    %1558 = vmatprep.subr.mxu0 0.0
    %1559 = vmatpush1.xpose.msra.mxu0 0.0
    %1560 = vmatprep.subr.mxu0 0.0
    %1561 = vmatpush1.xpose.msra.mxu0 0.0
    %1562 = vmatprep.subr.mxu0 0.0
    %1563 = vmatpush1.xpose.msra.mxu0 0.0
    %1564 = vmatprep.subr.mxu0 0.0
    %1565 = vmatpush1.xpose.msra.mxu0 0.0
    %1566 = vmatprep.subr.mxu0 0.0
    %1567 = vmatpush1.xpose.msra.mxu0 0.0
    %1568 = vmatprep.subr.mxu0 0.0
    %1569 = vmatpush1.xpose.msra.mxu0 0.0
    %1570 = vmatprep.subr.mxu0 0.0
    %1571 = vmatpush1.xpose.msra.mxu0 0.0
    %1572 = vmatprep.subr.mxu0 0.0
    %1573 = vmatpush1.xpose.msra.mxu0 0.0
    %1574 = vmatprep.subr.mxu0 0.0
    %1575 = vmatpush1.xpose.msra.mxu0 0.0
    %1576 = vmatprep.subr.mxu0 0.0
    %1577 = vmatpush1.xpose.msra.mxu0 0.0
    %1578 = vmatprep.subr.mxu0 0.0
    %1579 = vmatpush1.xpose.msra.mxu0 0.0
    %1580 = vmatprep.subr.mxu0 0.0
    %1581 = vmatpush1.xpose.msra.mxu0 0.0
    %1582 = vmatprep.subr.mxu0 0.0
    %1583 = vmatpush1.xpose.msra.mxu0 0.0
    %1584 = vmatprep.subr.mxu0 0.0
    %1585 = vmatpush1.xpose.msra.mxu0 0.0
    %1586 = vmatprep.subr.mxu0 0.0
    %1587 = vmatpush1.xpose.msra.mxu0 0.0
    %1588 = vmatprep.subr.mxu0 0.0
    %1589 = vmatpush1.xpose.msra.mxu0 0.0
    %1590 = vmatprep.subr.mxu0 0.0
    %1591 = vmatpush1.xpose.msra.mxu0 0.0
    %1592 = vmatprep.subr.mxu0 0.0
    %1593 = vmatpush1.xpose.msra.mxu0 0.0
    %1594 = vmatprep.subr.mxu0 0.0
    %1595 = vmatpush1.xpose.msra.mxu0 0.0
    %1596 = vmatprep.subr.mxu0 0.0
    %1597 = vmatpush1.xpose.msra.mxu0 0.0
    %1598 = vmatprep.subr.mxu0 0.0
    %1599 = vmatpush1.xpose.msra.mxu0 0.0
    %1600 = vmatprep.subr.mxu0 0.0
    %1601 = vmatpush1.xpose.msra.mxu0 0.0
    %1602 = vmatprep.subr.mxu0 0.0
    %1603 = vmatpush1.xpose.msra.mxu0 0.0
    %1604 = vmatprep.subr.mxu0 0.0
    %1605 = vmatpush1.xpose.msra.mxu0 0.0
    %1606 = vmatprep.subr.mxu0 0.0
    %1607 = vmatpush1.xpose.msra.mxu0 0.0
    %1608 = vmatprep.mubr.f32.mxu0 0.0
    %1609 = vmatmul.mubr.f32.gmra.mrb[0].mxu0 %v1540
    %v1610 = vpop.f32.mrb[0].mxu0
    %v1611 = vadd.f32 0.0, %v1610
    %v1612 = vpop.f32.mrb[0].mxu0
    %1613 = vdwg.mxu0
    %v1614 = vmul.f32 %v1611, 0.35355338
    %v1615 = vsel %vm1012, %v1614, -inf
    %1616 = vmax.xlane.f32.xlu0 %v1615
    %v1617 = vpop.xlane.xlu0 %1616
    %v1618 = vsub.f32 %v1614, %v1617
    %v1619 = vmul.f32 %v1618, 1.442695
    %v1620 = vpow.pop %v1619
    %v1621 = vsel %vm1012, %v1620, 0.0
    %1622 = vadd.xlane.f32.xlu0 %v1621
    %v1623 = vpop.xlane.xlu0 %1622
    %v1624 = vrcp.pop %v1623
    %v1625 = vmul.f32 %v1620, %v1624
    %1627 = vrot.lane.b32.xlu0 %v1533, 104
    %v1628 = vpop.permute.xlu0 %1627
    %v1631 = vsel %vm1012, %v1625, 0
    %1633 = vmatprep.subr.mxu0 0.0
    %1634 = vmatpush1.msra.mxu0 %v1628
    %1635 = vmatprep.subr.mxu0 0.0
    %1636 = vmatpush1.msra.mxu0 0.0
    %1637 = vmatprep.subr.mxu0 0.0
    %1638 = vmatpush1.msra.mxu0 0.0
    %1639 = vmatprep.subr.mxu0 0.0
    %1640 = vmatpush1.msra.mxu0 0.0
    %1641 = vmatprep.subr.mxu0 0.0
    %1642 = vmatpush1.msra.mxu0 0.0
    %1643 = vmatprep.subr.mxu0 0.0
    %1644 = vmatpush1.msra.mxu0 0.0
    %1645 = vmatprep.subr.mxu0 0.0
    %1646 = vmatpush1.msra.mxu0 0.0
    %1647 = vmatprep.subr.mxu0 0.0
    %1648 = vmatpush1.msra.mxu0 0.0
    %1649 = vmatprep.subr.mxu0 0.0
    %1650 = vmatpush1.msra.mxu0 0.0
    %1651 = vmatprep.subr.mxu0 0.0
    %1652 = vmatpush1.msra.mxu0 0.0
    %1653 = vmatprep.subr.mxu0 0.0
    %1654 = vmatpush1.msra.mxu0 0.0
    %1655 = vmatprep.subr.mxu0 0.0
    %1656 = vmatpush1.msra.mxu0 0.0
    %1657 = vmatprep.subr.mxu0 0.0
    %1658 = vmatpush1.msra.mxu0 0.0
    %1659 = vmatprep.subr.mxu0 0.0
    %1660 = vmatpush1.msra.mxu0 0.0
    %1661 = vmatprep.subr.mxu0 0.0
    %1662 = vmatpush1.msra.mxu0 0.0
    %1663 = vmatprep.subr.mxu0 0.0
    %1664 = vmatpush1.msra.mxu0 0.0
    %1665 = vmatprep.subr.mxu0 0.0
    %1666 = vmatpush1.msra.mxu0 0.0
    %1667 = vmatprep.subr.mxu0 0.0
    %1668 = vmatpush1.msra.mxu0 0.0
    %1669 = vmatprep.subr.mxu0 0.0
    %1670 = vmatpush1.msra.mxu0 0.0
    %1671 = vmatprep.subr.mxu0 0.0
    %1672 = vmatpush1.msra.mxu0 0.0
    %1673 = vmatprep.subr.mxu0 0.0
    %1674 = vmatpush1.msra.mxu0 0.0
    %1675 = vmatprep.subr.mxu0 0.0
    %1676 = vmatpush1.msra.mxu0 0.0
    %1677 = vmatprep.subr.mxu0 0.0
    %1678 = vmatpush1.msra.mxu0 0.0
    %1679 = vmatprep.subr.mxu0 0.0
    %1680 = vmatpush1.msra.mxu0 0.0
    %1681 = vmatprep.subr.mxu0 0.0
    %1682 = vmatpush1.msra.mxu0 0.0
    %1683 = vmatprep.subr.mxu0 0.0
    %1684 = vmatpush1.msra.mxu0 0.0
    %1685 = vmatprep.subr.mxu0 0.0
    %1686 = vmatpush1.msra.mxu0 0.0
    %1687 = vmatprep.subr.mxu0 0.0
    %1688 = vmatpush1.msra.mxu0 0.0
    %1689 = vmatprep.subr.mxu0 0.0
    %1690 = vmatpush1.msra.mxu0 0.0
    %1691 = vmatprep.subr.mxu0 0.0
    %1692 = vmatpush1.msra.mxu0 0.0
    %1693 = vmatprep.subr.mxu0 0.0
    %1694 = vmatpush1.msra.mxu0 0.0
    %1695 = vmatprep.subr.mxu0 0.0
    %1696 = vmatpush1.msra.mxu0 0.0
    %1697 = vmatprep.mubr.f32.mxu0 0.0
    %1698 = vmatmul.mubr.f32.gmra.mrb[0].mxu0 %v1631
    %v1699 = vpop.f32.mrb[0].mxu0
    %v1700 = vadd.f32 0.0, %v1699
    %v1701 = vpop.f32.mrb[0].mxu0
    %1702 = vdwg.mxu0
    %1704 = vrot.lane.b32.xlu0 %v1700, 24
    %v1705 = vpop.permute.xlu0 %1704
    %vm1707 = vcmask 261312
    %1708 = vst.msk [vmem:[#allocation3] sm:$0xff] %vm1707, %v1705
    %v1709 = vld [vmem:[#allocation2 + $0x8] sm:$0xff]
    %v1710 = vld [vmem:[%s909 + $0x8] sm:$0xff]
    %v1711 = vld [vmem:[%s1006 + $0x8] sm:$0xff]
    %v1713 = vsel %vm1012, %v1709, 0
    %v1716 = vsel %vm1012, %v1710, 0
    %1718 = vmatprep.subr.mxu0 0.0
    %1719 = vmatpush1.xpose.msra.mxu0 %v1716
    %1720 = vmatprep.subr.mxu0 0.0
    %1721 = vmatpush1.xpose.msra.mxu0 0.0
    %1722 = vmatprep.subr.mxu0 0.0
    %1723 = vmatpush1.xpose.msra.mxu0 0.0
    %1724 = vmatprep.subr.mxu0 0.0
    %1725 = vmatpush1.xpose.msra.mxu0 0.0
    %1726 = vmatprep.subr.mxu0 0.0
    %1727 = vmatpush1.xpose.msra.mxu0 0.0
    %1728 = vmatprep.subr.mxu0 0.0
    %1729 = vmatpush1.xpose.msra.mxu0 0.0
    %1730 = vmatprep.subr.mxu0 0.0
    %1731 = vmatpush1.xpose.msra.mxu0 0.0
    %1732 = vmatprep.subr.mxu0 0.0
    %1733 = vmatpush1.xpose.msra.mxu0 0.0
    %1734 = vmatprep.subr.mxu0 0.0
    %1735 = vmatpush1.xpose.msra.mxu0 0.0
    %1736 = vmatprep.subr.mxu0 0.0
    %1737 = vmatpush1.xpose.msra.mxu0 0.0
    %1738 = vmatprep.subr.mxu0 0.0
    %1739 = vmatpush1.xpose.msra.mxu0 0.0
    %1740 = vmatprep.subr.mxu0 0.0
    %1741 = vmatpush1.xpose.msra.mxu0 0.0
    %1742 = vmatprep.subr.mxu0 0.0
    %1743 = vmatpush1.xpose.msra.mxu0 0.0
    %1744 = vmatprep.subr.mxu0 0.0
    %1745 = vmatpush1.xpose.msra.mxu0 0.0
    %1746 = vmatprep.subr.mxu0 0.0
    %1747 = vmatpush1.xpose.msra.mxu0 0.0
    %1748 = vmatprep.subr.mxu0 0.0
    %1749 = vmatpush1.xpose.msra.mxu0 0.0
    %1750 = vmatprep.subr.mxu0 0.0
    %1751 = vmatpush1.xpose.msra.mxu0 0.0
    %1752 = vmatprep.subr.mxu0 0.0
    %1753 = vmatpush1.xpose.msra.mxu0 0.0
    %1754 = vmatprep.subr.mxu0 0.0
    %1755 = vmatpush1.xpose.msra.mxu0 0.0
    %1756 = vmatprep.subr.mxu0 0.0
    %1757 = vmatpush1.xpose.msra.mxu0 0.0
    %1758 = vmatprep.subr.mxu0 0.0
    %1759 = vmatpush1.xpose.msra.mxu0 0.0
    %1760 = vmatprep.subr.mxu0 0.0
    %1761 = vmatpush1.xpose.msra.mxu0 0.0
    %1762 = vmatprep.subr.mxu0 0.0
    %1763 = vmatpush1.xpose.msra.mxu0 0.0
    %1764 = vmatprep.subr.mxu0 0.0
    %1765 = vmatpush1.xpose.msra.mxu0 0.0
    %1766 = vmatprep.subr.mxu0 0.0
    %1767 = vmatpush1.xpose.msra.mxu0 0.0
    %1768 = vmatprep.subr.mxu0 0.0
    %1769 = vmatpush1.xpose.msra.mxu0 0.0
    %1770 = vmatprep.subr.mxu0 0.0
    %1771 = vmatpush1.xpose.msra.mxu0 0.0
    %1772 = vmatprep.subr.mxu0 0.0
    %1773 = vmatpush1.xpose.msra.mxu0 0.0
    %1774 = vmatprep.subr.mxu0 0.0
    %1775 = vmatpush1.xpose.msra.mxu0 0.0
    %1776 = vmatprep.subr.mxu0 0.0
    %1777 = vmatpush1.xpose.msra.mxu0 0.0
    %1778 = vmatprep.subr.mxu0 0.0
    %1779 = vmatpush1.xpose.msra.mxu0 0.0
    %1780 = vmatprep.subr.mxu0 0.0
    %1781 = vmatpush1.xpose.msra.mxu0 0.0
    %1782 = vmatprep.mubr.f32.mxu0 0.0
    %1783 = vmatmul.mubr.f32.gmra.mrb[0].mxu0 %v1713
    %v1784 = vpop.f32.mrb[0].mxu0
    %v1785 = vadd.f32 0.0, %v1784
    %v1786 = vpop.f32.mrb[0].mxu0
    %1787 = vdwg.mxu0
    %v1788 = vmul.f32 %v1785, 0.35355338
    %v1789 = vsel %vm1012, %v1788, -inf
    %1790 = vmax.xlane.f32.xlu0 %v1789
    %v1791 = vpop.xlane.xlu0 %1790
    %v1792 = vsub.f32 %v1788, %v1791
    %v1793 = vmul.f32 %v1792, 1.442695
    %v1794 = vpow.pop %v1793
    %v1795 = vsel %vm1012, %v1794, 0.0
    %1796 = vadd.xlane.f32.xlu0 %v1795
    %v1797 = vpop.xlane.xlu0 %1796
    %v1798 = vrcp.pop %v1797
    %v1799 = vmul.f32 %v1794, %v1798
    %v1801 = vsel %vm1012, %v1799, 0
    %1803 = vmatprep.subr.mxu0 0.0
    %1804 = vmatpush1.msra.mxu0 %v1711
    %1805 = vmatprep.subr.mxu0 0.0
    %1806 = vmatpush1.msra.mxu0 0.0
    %1807 = vmatprep.subr.mxu0 0.0
    %1808 = vmatpush1.msra.mxu0 0.0
    %1809 = vmatprep.subr.mxu0 0.0
    %1810 = vmatpush1.msra.mxu0 0.0
    %1811 = vmatprep.subr.mxu0 0.0
    %1812 = vmatpush1.msra.mxu0 0.0
    %1813 = vmatprep.subr.mxu0 0.0
    %1814 = vmatpush1.msra.mxu0 0.0
    %1815 = vmatprep.subr.mxu0 0.0
    %1816 = vmatpush1.msra.mxu0 0.0
    %1817 = vmatprep.subr.mxu0 0.0
    %1818 = vmatpush1.msra.mxu0 0.0
    %1819 = vmatprep.subr.mxu0 0.0
    %1820 = vmatpush1.msra.mxu0 0.0
    %1821 = vmatprep.subr.mxu0 0.0
    %1822 = vmatpush1.msra.mxu0 0.0
    %1823 = vmatprep.subr.mxu0 0.0
    %1824 = vmatpush1.msra.mxu0 0.0
    %1825 = vmatprep.subr.mxu0 0.0
    %1826 = vmatpush1.msra.mxu0 0.0
    %1827 = vmatprep.subr.mxu0 0.0
    %1828 = vmatpush1.msra.mxu0 0.0
    %1829 = vmatprep.subr.mxu0 0.0
    %1830 = vmatpush1.msra.mxu0 0.0
    %1831 = vmatprep.subr.mxu0 0.0
    %1832 = vmatpush1.msra.mxu0 0.0
    %1833 = vmatprep.subr.mxu0 0.0
    %1834 = vmatpush1.msra.mxu0 0.0
    %1835 = vmatprep.subr.mxu0 0.0
    %1836 = vmatpush1.msra.mxu0 0.0
    %1837 = vmatprep.subr.mxu0 0.0
    %1838 = vmatpush1.msra.mxu0 0.0
    %1839 = vmatprep.subr.mxu0 0.0
    %1840 = vmatpush1.msra.mxu0 0.0
    %1841 = vmatprep.subr.mxu0 0.0
    %1842 = vmatpush1.msra.mxu0 0.0
    %1843 = vmatprep.subr.mxu0 0.0
    %1844 = vmatpush1.msra.mxu0 0.0
    %1845 = vmatprep.subr.mxu0 0.0
    %1846 = vmatpush1.msra.mxu0 0.0
    %1847 = vmatprep.subr.mxu0 0.0
    %1848 = vmatpush1.msra.mxu0 0.0
    %1849 = vmatprep.subr.mxu0 0.0
    %1850 = vmatpush1.msra.mxu0 0.0
    %1851 = vmatprep.subr.mxu0 0.0
    %1852 = vmatpush1.msra.mxu0 0.0
    %1853 = vmatprep.subr.mxu0 0.0
    %1854 = vmatpush1.msra.mxu0 0.0
    %1855 = vmatprep.subr.mxu0 0.0
    %1856 = vmatpush1.msra.mxu0 0.0
    %1857 = vmatprep.subr.mxu0 0.0
    %1858 = vmatpush1.msra.mxu0 0.0
    %1859 = vmatprep.subr.mxu0 0.0
    %1860 = vmatpush1.msra.mxu0 0.0
    %1861 = vmatprep.subr.mxu0 0.0
    %1862 = vmatpush1.msra.mxu0 0.0
    %1863 = vmatprep.subr.mxu0 0.0
    %1864 = vmatpush1.msra.mxu0 0.0
    %1865 = vmatprep.subr.mxu0 0.0
    %1866 = vmatpush1.msra.mxu0 0.0
    %1867 = vmatprep.mubr.f32.mxu0 0.0
    %1868 = vmatmul.mubr.f32.gmra.mrb[0].mxu0 %v1801
    %v1869 = vpop.f32.mrb[0].mxu0
    %v1870 = vadd.f32 0.0, %v1869
    %v1871 = vpop.f32.mrb[0].mxu0
    %1872 = vdwg.mxu0
    %1873 = vst.msk [vmem:[#allocation3 + $0x8] sm:$0xff] %vm1012, %v1870
    %v1874 = vld [vmem:[#allocation2 + $0x8] sm:$0xff]
    %v1875 = vld [vmem:[%s909 + $0x8] sm:$0xff]
    %v1876 = vld [vmem:[%s1006 + $0x8] sm:$0xff]
    %1878 = vrot.lane.b32.xlu0 %v1874, 120
    %v1879 = vpop.permute.xlu0 %1878
    %1881 = vrot.lane.b32.xlu0 %v1875, 120
    %v1882 = vpop.permute.xlu0 %1881
    %v1883 = vsel %vm1012, %v1879, 0
    %v1885 = vsel %vm1012, %v1882, 0
    %1887 = vmatprep.subr.mxu0 0.0
    %1888 = vmatpush1.xpose.msra.mxu0 %v1885
    %1889 = vmatprep.subr.mxu0 0.0
    %1890 = vmatpush1.xpose.msra.mxu0 0.0
    %1891 = vmatprep.subr.mxu0 0.0
    %1892 = vmatpush1.xpose.msra.mxu0 0.0
    %1893 = vmatprep.subr.mxu0 0.0
    %1894 = vmatpush1.xpose.msra.mxu0 0.0
    %1895 = vmatprep.subr.mxu0 0.0
    %1896 = vmatpush1.xpose.msra.mxu0 0.0
    %1897 = vmatprep.subr.mxu0 0.0
    %1898 = vmatpush1.xpose.msra.mxu0 0.0
    %1899 = vmatprep.subr.mxu0 0.0
    %1900 = vmatpush1.xpose.msra.mxu0 0.0
    %1901 = vmatprep.subr.mxu0 0.0
    %1902 = vmatpush1.xpose.msra.mxu0 0.0
    %1903 = vmatprep.subr.mxu0 0.0
    %1904 = vmatpush1.xpose.msra.mxu0 0.0
    %1905 = vmatprep.subr.mxu0 0.0
    %1906 = vmatpush1.xpose.msra.mxu0 0.0
    %1907 = vmatprep.subr.mxu0 0.0
    %1908 = vmatpush1.xpose.msra.mxu0 0.0
    %1909 = vmatprep.subr.mxu0 0.0
    %1910 = vmatpush1.xpose.msra.mxu0 0.0
    %1911 = vmatprep.subr.mxu0 0.0
    %1912 = vmatpush1.xpose.msra.mxu0 0.0
    %1913 = vmatprep.subr.mxu0 0.0
    %1914 = vmatpush1.xpose.msra.mxu0 0.0
    %1915 = vmatprep.subr.mxu0 0.0
    %1916 = vmatpush1.xpose.msra.mxu0 0.0
    %1917 = vmatprep.subr.mxu0 0.0
    %1918 = vmatpush1.xpose.msra.mxu0 0.0
    %1919 = vmatprep.subr.mxu0 0.0
    %1920 = vmatpush1.xpose.msra.mxu0 0.0
    %1921 = vmatprep.subr.mxu0 0.0
    %1922 = vmatpush1.xpose.msra.mxu0 0.0
    %1923 = vmatprep.subr.mxu0 0.0
    %1924 = vmatpush1.xpose.msra.mxu0 0.0
    %1925 = vmatprep.subr.mxu0 0.0
    %1926 = vmatpush1.xpose.msra.mxu0 0.0
    %1927 = vmatprep.subr.mxu0 0.0
    %1928 = vmatpush1.xpose.msra.mxu0 0.0
    %1929 = vmatprep.subr.mxu0 0.0
    %1930 = vmatpush1.xpose.msra.mxu0 0.0
    %1931 = vmatprep.subr.mxu0 0.0
    %1932 = vmatpush1.xpose.msra.mxu0 0.0
    %1933 = vmatprep.subr.mxu0 0.0
    %1934 = vmatpush1.xpose.msra.mxu0 0.0
    %1935 = vmatprep.subr.mxu0 0.0
    %1936 = vmatpush1.xpose.msra.mxu0 0.0
    %1937 = vmatprep.subr.mxu0 0.0
    %1938 = vmatpush1.xpose.msra.mxu0 0.0
    %1939 = vmatprep.subr.mxu0 0.0
    %1940 = vmatpush1.xpose.msra.mxu0 0.0
    %1941 = vmatprep.subr.mxu0 0.0
    %1942 = vmatpush1.xpose.msra.mxu0 0.0
    %1943 = vmatprep.subr.mxu0 0.0
    %1944 = vmatpush1.xpose.msra.mxu0 0.0
    %1945 = vmatprep.subr.mxu0 0.0
    %1946 = vmatpush1.xpose.msra.mxu0 0.0
    %1947 = vmatprep.subr.mxu0 0.0
    %1948 = vmatpush1.xpose.msra.mxu0 0.0
    %1949 = vmatprep.subr.mxu0 0.0
    %1950 = vmatpush1.xpose.msra.mxu0 0.0
    %1951 = vmatprep.mubr.f32.mxu0 0.0
    %1952 = vmatmul.mubr.f32.gmra.mrb[0].mxu0 %v1883
    %v1953 = vpop.f32.mrb[0].mxu0
    %v1954 = vadd.f32 0.0, %v1953
    %v1955 = vpop.f32.mrb[0].mxu0
    %1956 = vdwg.mxu0
    %v1957 = vmul.f32 %v1954, 0.35355338
    %v1958 = vsel %vm1012, %v1957, -inf
    %1959 = vmax.xlane.f32.xlu0 %v1958
    %v1960 = vpop.xlane.xlu0 %1959
    %v1961 = vsub.f32 %v1957, %v1960
    %v1962 = vmul.f32 %v1961, 1.442695
    %v1963 = vpow.pop %v1962
    %v1964 = vsel %vm1012, %v1963, 0.0
    %1965 = vadd.xlane.f32.xlu0 %v1964
    %v1966 = vpop.xlane.xlu0 %1965
    %v1967 = vrcp.pop %v1966
    %v1968 = vmul.f32 %v1963, %v1967
    %1970 = vrot.lane.b32.xlu0 %v1876, 120
    %v1971 = vpop.permute.xlu0 %1970
    %v1974 = vsel %vm1012, %v1968, 0
    %1976 = vmatprep.subr.mxu0 0.0
    %1977 = vmatpush1.msra.mxu0 %v1971
    %1978 = vmatprep.subr.mxu0 0.0
    %1979 = vmatpush1.msra.mxu0 0.0
    %1980 = vmatprep.subr.mxu0 0.0
    %1981 = vmatpush1.msra.mxu0 0.0
    %1982 = vmatprep.subr.mxu0 0.0
    %1983 = vmatpush1.msra.mxu0 0.0
    %1984 = vmatprep.subr.mxu0 0.0
    %1985 = vmatpush1.msra.mxu0 0.0
    %1986 = vmatprep.subr.mxu0 0.0
    %1987 = vmatpush1.msra.mxu0 0.0
    %1988 = vmatprep.subr.mxu0 0.0
    %1989 = vmatpush1.msra.mxu0 0.0
    %1990 = vmatprep.subr.mxu0 0.0
    %1991 = vmatpush1.msra.mxu0 0.0
    %1992 = vmatprep.subr.mxu0 0.0
    %1993 = vmatpush1.msra.mxu0 0.0
    %1994 = vmatprep.subr.mxu0 0.0
    %1995 = vmatpush1.msra.mxu0 0.0
    %1996 = vmatprep.subr.mxu0 0.0
    %1997 = vmatpush1.msra.mxu0 0.0
    %1998 = vmatprep.subr.mxu0 0.0
    %1999 = vmatpush1.msra.mxu0 0.0
    %2000 = vmatprep.subr.mxu0 0.0
    %2001 = vmatpush1.msra.mxu0 0.0
    %2002 = vmatprep.subr.mxu0 0.0
    %2003 = vmatpush1.msra.mxu0 0.0
    %2004 = vmatprep.subr.mxu0 0.0
    %2005 = vmatpush1.msra.mxu0 0.0
    %2006 = vmatprep.subr.mxu0 0.0
    %2007 = vmatpush1.msra.mxu0 0.0
    %2008 = vmatprep.subr.mxu0 0.0
    %2009 = vmatpush1.msra.mxu0 0.0
    %2010 = vmatprep.subr.mxu0 0.0
    %2011 = vmatpush1.msra.mxu0 0.0
    %2012 = vmatprep.subr.mxu0 0.0
    %2013 = vmatpush1.msra.mxu0 0.0
    %2014 = vmatprep.subr.mxu0 0.0
    %2015 = vmatpush1.msra.mxu0 0.0
    %2016 = vmatprep.subr.mxu0 0.0
    %2017 = vmatpush1.msra.mxu0 0.0
    %2018 = vmatprep.subr.mxu0 0.0
    %2019 = vmatpush1.msra.mxu0 0.0
    %2020 = vmatprep.subr.mxu0 0.0
    %2021 = vmatpush1.msra.mxu0 0.0
    %2022 = vmatprep.subr.mxu0 0.0
    %2023 = vmatpush1.msra.mxu0 0.0
    %2024 = vmatprep.subr.mxu0 0.0
    %2025 = vmatpush1.msra.mxu0 0.0
    %2026 = vmatprep.subr.mxu0 0.0
    %2027 = vmatpush1.msra.mxu0 0.0
    %2028 = vmatprep.subr.mxu0 0.0
    %2029 = vmatpush1.msra.mxu0 0.0
    %2030 = vmatprep.subr.mxu0 0.0
    %2031 = vmatpush1.msra.mxu0 0.0
    %2032 = vmatprep.subr.mxu0 0.0
    %2033 = vmatpush1.msra.mxu0 0.0
    %2034 = vmatprep.subr.mxu0 0.0
    %2035 = vmatpush1.msra.mxu0 0.0
    %2036 = vmatprep.subr.mxu0 0.0
    %2037 = vmatpush1.msra.mxu0 0.0
    %2038 = vmatprep.subr.mxu0 0.0
    %2039 = vmatpush1.msra.mxu0 0.0
    %2040 = vmatprep.mubr.f32.mxu0 0.0
    %2041 = vmatmul.mubr.f32.gmra.mrb[0].mxu0 %v1974
    %v2042 = vpop.f32.mrb[0].mxu0
    %v2043 = vadd.f32 0.0, %v2042
    %v2044 = vpop.f32.mrb[0].mxu0
    %2045 = vdwg.mxu0
    %2047 = vrot.lane.b32.xlu0 %v2043, 8
    %v2048 = vpop.permute.xlu0 %2047
    %2050 = vst.msk [vmem:[#allocation3 + $0x8] sm:$0xff] %vm1351, %v2048
    %v2051 = vld [vmem:[#allocation2 + $0x8] sm:$0xff]
    %v2052 = vld [vmem:[%s909 + $0x8] sm:$0xff]
    %v2053 = vld [vmem:[%s1006 + $0x8] sm:$0xff]
    %2055 = vrot.lane.b32.xlu0 %v2051, 112
    %v2056 = vpop.permute.xlu0 %2055
    %2058 = vrot.lane.b32.xlu0 %v2052, 112
    %v2059 = vpop.permute.xlu0 %2058
    %v2060 = vsel %vm1012, %v2056, 0
    %v2062 = vsel %vm1012, %v2059, 0
    %2064 = vmatprep.subr.mxu0 0.0
    %2065 = vmatpush1.xpose.msra.mxu0 %v2062
    %2066 = vmatprep.subr.mxu0 0.0
    %2067 = vmatpush1.xpose.msra.mxu0 0.0
    %2068 = vmatprep.subr.mxu0 0.0
    %2069 = vmatpush1.xpose.msra.mxu0 0.0
    %2070 = vmatprep.subr.mxu0 0.0
    %2071 = vmatpush1.xpose.msra.mxu0 0.0
    %2072 = vmatprep.subr.mxu0 0.0
    %2073 = vmatpush1.xpose.msra.mxu0 0.0
    %2074 = vmatprep.subr.mxu0 0.0
    %2075 = vmatpush1.xpose.msra.mxu0 0.0
    %2076 = vmatprep.subr.mxu0 0.0
    %2077 = vmatpush1.xpose.msra.mxu0 0.0
    %2078 = vmatprep.subr.mxu0 0.0
    %2079 = vmatpush1.xpose.msra.mxu0 0.0
    %2080 = vmatprep.subr.mxu0 0.0
    %2081 = vmatpush1.xpose.msra.mxu0 0.0
    %2082 = vmatprep.subr.mxu0 0.0
    %2083 = vmatpush1.xpose.msra.mxu0 0.0
    %2084 = vmatprep.subr.mxu0 0.0
    %2085 = vmatpush1.xpose.msra.mxu0 0.0
    %2086 = vmatprep.subr.mxu0 0.0
    %2087 = vmatpush1.xpose.msra.mxu0 0.0
    %2088 = vmatprep.subr.mxu0 0.0
    %2089 = vmatpush1.xpose.msra.mxu0 0.0
    %2090 = vmatprep.subr.mxu0 0.0
    %2091 = vmatpush1.xpose.msra.mxu0 0.0
    %2092 = vmatprep.subr.mxu0 0.0
    %2093 = vmatpush1.xpose.msra.mxu0 0.0
    %2094 = vmatprep.subr.mxu0 0.0
    %2095 = vmatpush1.xpose.msra.mxu0 0.0
    %2096 = vmatprep.subr.mxu0 0.0
    %2097 = vmatpush1.xpose.msra.mxu0 0.0
    %2098 = vmatprep.subr.mxu0 0.0
    %2099 = vmatpush1.xpose.msra.mxu0 0.0
    %2100 = vmatprep.subr.mxu0 0.0
    %2101 = vmatpush1.xpose.msra.mxu0 0.0
    %2102 = vmatprep.subr.mxu0 0.0
    %2103 = vmatpush1.xpose.msra.mxu0 0.0
    %2104 = vmatprep.subr.mxu0 0.0
    %2105 = vmatpush1.xpose.msra.mxu0 0.0
    %2106 = vmatprep.subr.mxu0 0.0
    %2107 = vmatpush1.xpose.msra.mxu0 0.0
    %2108 = vmatprep.subr.mxu0 0.0
    %2109 = vmatpush1.xpose.msra.mxu0 0.0
    %2110 = vmatprep.subr.mxu0 0.0
    %2111 = vmatpush1.xpose.msra.mxu0 0.0
    %2112 = vmatprep.subr.mxu0 0.0
    %2113 = vmatpush1.xpose.msra.mxu0 0.0
    %2114 = vmatprep.subr.mxu0 0.0
    %2115 = vmatpush1.xpose.msra.mxu0 0.0
    %2116 = vmatprep.subr.mxu0 0.0
    %2117 = vmatpush1.xpose.msra.mxu0 0.0
    %2118 = vmatprep.subr.mxu0 0.0
    %2119 = vmatpush1.xpose.msra.mxu0 0.0
    %2120 = vmatprep.subr.mxu0 0.0
    %2121 = vmatpush1.xpose.msra.mxu0 0.0
    %2122 = vmatprep.subr.mxu0 0.0
    %2123 = vmatpush1.xpose.msra.mxu0 0.0
    %2124 = vmatprep.subr.mxu0 0.0
    %2125 = vmatpush1.xpose.msra.mxu0 0.0
    %2126 = vmatprep.subr.mxu0 0.0
    %2127 = vmatpush1.xpose.msra.mxu0 0.0
    %2128 = vmatprep.mubr.f32.mxu0 0.0
    %2129 = vmatmul.mubr.f32.gmra.mrb[0].mxu0 %v2060
    %v2130 = vpop.f32.mrb[0].mxu0
    %v2131 = vadd.f32 0.0, %v2130
    %v2132 = vpop.f32.mrb[0].mxu0
    %2133 = vdwg.mxu0
    %v2134 = vmul.f32 %v2131, 0.35355338
    %v2135 = vsel %vm1012, %v2134, -inf
    %2136 = vmax.xlane.f32.xlu0 %v2135
    %v2137 = vpop.xlane.xlu0 %2136
    %v2138 = vsub.f32 %v2134, %v2137
    %v2139 = vmul.f32 %v2138, 1.442695
    %v2140 = vpow.pop %v2139
    %v2141 = vsel %vm1012, %v2140, 0.0
    %2142 = vadd.xlane.f32.xlu0 %v2141
    %v2143 = vpop.xlane.xlu0 %2142
    %v2144 = vrcp.pop %v2143
    %v2145 = vmul.f32 %v2140, %v2144
    %2147 = vrot.lane.b32.xlu0 %v2053, 112
    %v2148 = vpop.permute.xlu0 %2147
    %v2151 = vsel %vm1012, %v2145, 0
    %2153 = vmatprep.subr.mxu0 0.0
    %2154 = vmatpush1.msra.mxu0 %v2148
    %2155 = vmatprep.subr.mxu0 0.0
    %2156 = vmatpush1.msra.mxu0 0.0
    %2157 = vmatprep.subr.mxu0 0.0
    %2158 = vmatpush1.msra.mxu0 0.0
    %2159 = vmatprep.subr.mxu0 0.0
    %2160 = vmatpush1.msra.mxu0 0.0
    %2161 = vmatprep.subr.mxu0 0.0
    %2162 = vmatpush1.msra.mxu0 0.0
    %2163 = vmatprep.subr.mxu0 0.0
    %2164 = vmatpush1.msra.mxu0 0.0
    %2165 = vmatprep.subr.mxu0 0.0
    %2166 = vmatpush1.msra.mxu0 0.0
    %2167 = vmatprep.subr.mxu0 0.0
    %2168 = vmatpush1.msra.mxu0 0.0
    %2169 = vmatprep.subr.mxu0 0.0
    %2170 = vmatpush1.msra.mxu0 0.0
    %2171 = vmatprep.subr.mxu0 0.0
    %2172 = vmatpush1.msra.mxu0 0.0
    %2173 = vmatprep.subr.mxu0 0.0
    %2174 = vmatpush1.msra.mxu0 0.0
    %2175 = vmatprep.subr.mxu0 0.0
    %2176 = vmatpush1.msra.mxu0 0.0
    %2177 = vmatprep.subr.mxu0 0.0
    %2178 = vmatpush1.msra.mxu0 0.0
    %2179 = vmatprep.subr.mxu0 0.0
    %2180 = vmatpush1.msra.mxu0 0.0
    %2181 = vmatprep.subr.mxu0 0.0
    %2182 = vmatpush1.msra.mxu0 0.0
    %2183 = vmatprep.subr.mxu0 0.0
    %2184 = vmatpush1.msra.mxu0 0.0
    %2185 = vmatprep.subr.mxu0 0.0
    %2186 = vmatpush1.msra.mxu0 0.0
    %2187 = vmatprep.subr.mxu0 0.0
    %2188 = vmatpush1.msra.mxu0 0.0
    %2189 = vmatprep.subr.mxu0 0.0
    %2190 = vmatpush1.msra.mxu0 0.0
    %2191 = vmatprep.subr.mxu0 0.0
    %2192 = vmatpush1.msra.mxu0 0.0
    %2193 = vmatprep.subr.mxu0 0.0
    %2194 = vmatpush1.msra.mxu0 0.0
    %2195 = vmatprep.subr.mxu0 0.0
    %2196 = vmatpush1.msra.mxu0 0.0
    %2197 = vmatprep.subr.mxu0 0.0
    %2198 = vmatpush1.msra.mxu0 0.0
    %2199 = vmatprep.subr.mxu0 0.0
    %2200 = vmatpush1.msra.mxu0 0.0
    %2201 = vmatprep.subr.mxu0 0.0
    %2202 = vmatpush1.msra.mxu0 0.0
    %2203 = vmatprep.subr.mxu0 0.0
    %2204 = vmatpush1.msra.mxu0 0.0
    %2205 = vmatprep.subr.mxu0 0.0
    %2206 = vmatpush1.msra.mxu0 0.0
    %2207 = vmatprep.subr.mxu0 0.0
    %2208 = vmatpush1.msra.mxu0 0.0
    %2209 = vmatprep.subr.mxu0 0.0
    %2210 = vmatpush1.msra.mxu0 0.0
    %2211 = vmatprep.subr.mxu0 0.0
    %2212 = vmatpush1.msra.mxu0 0.0
    %2213 = vmatprep.subr.mxu0 0.0
    %2214 = vmatpush1.msra.mxu0 0.0
    %2215 = vmatprep.subr.mxu0 0.0
    %2216 = vmatpush1.msra.mxu0 0.0
    %2217 = vmatprep.mubr.f32.mxu0 0.0
    %2218 = vmatmul.mubr.f32.gmra.mrb[0].mxu0 %v2151
    %v2219 = vpop.f32.mrb[0].mxu0
    %v2220 = vadd.f32 0.0, %v2219
    %v2221 = vpop.f32.mrb[0].mxu0
    %2222 = vdwg.mxu0
    %2224 = vrot.lane.b32.xlu0 %v2220, 16
    %v2225 = vpop.permute.xlu0 %2224
    %2227 = vst.msk [vmem:[#allocation3 + $0x8] sm:$0xff] %vm1529, %v2225
    %v2228 = vld [vmem:[#allocation2 + $0x8] sm:$0xff]
    %v2229 = vld [vmem:[%s909 + $0x8] sm:$0xff]
    %v2230 = vld [vmem:[%s1006 + $0x8] sm:$0xff]
    %2232 = vrot.lane.b32.xlu0 %v2228, 104
    %v2233 = vpop.permute.xlu0 %2232
    %2235 = vrot.lane.b32.xlu0 %v2229, 104
    %v2236 = vpop.permute.xlu0 %2235
    %v2237 = vsel %vm1012, %v2233, 0
    %v2239 = vsel %vm1012, %v2236, 0
    %2241 = vmatprep.subr.mxu0 0.0
    %2242 = vmatpush1.xpose.msra.mxu0 %v2239
    %2243 = vmatprep.subr.mxu0 0.0
    %2244 = vmatpush1.xpose.msra.mxu0 0.0
    %2245 = vmatprep.subr.mxu0 0.0
    %2246 = vmatpush1.xpose.msra.mxu0 0.0
    %2247 = vmatprep.subr.mxu0 0.0
    %2248 = vmatpush1.xpose.msra.mxu0 0.0
    %2249 = vmatprep.subr.mxu0 0.0
    %2250 = vmatpush1.xpose.msra.mxu0 0.0
    %2251 = vmatprep.subr.mxu0 0.0
    %2252 = vmatpush1.xpose.msra.mxu0 0.0
    %2253 = vmatprep.subr.mxu0 0.0
    %2254 = vmatpush1.xpose.msra.mxu0 0.0
    %2255 = vmatprep.subr.mxu0 0.0
    %2256 = vmatpush1.xpose.msra.mxu0 0.0
    %2257 = vmatprep.subr.mxu0 0.0
    %2258 = vmatpush1.xpose.msra.mxu0 0.0
    %2259 = vmatprep.subr.mxu0 0.0
    %2260 = vmatpush1.xpose.msra.mxu0 0.0
    %2261 = vmatprep.subr.mxu0 0.0
    %2262 = vmatpush1.xpose.msra.mxu0 0.0
    %2263 = vmatprep.subr.mxu0 0.0
    %2264 = vmatpush1.xpose.msra.mxu0 0.0
    %2265 = vmatprep.subr.mxu0 0.0
    %2266 = vmatpush1.xpose.msra.mxu0 0.0
    %2267 = vmatprep.subr.mxu0 0.0
    %2268 = vmatpush1.xpose.msra.mxu0 0.0
    %2269 = vmatprep.subr.mxu0 0.0
    %2270 = vmatpush1.xpose.msra.mxu0 0.0
    %2271 = vmatprep.subr.mxu0 0.0
    %2272 = vmatpush1.xpose.msra.mxu0 0.0
    %2273 = vmatprep.subr.mxu0 0.0
    %2274 = vmatpush1.xpose.msra.mxu0 0.0
    %2275 = vmatprep.subr.mxu0 0.0
    %2276 = vmatpush1.xpose.msra.mxu0 0.0
    %2277 = vmatprep.subr.mxu0 0.0
    %2278 = vmatpush1.xpose.msra.mxu0 0.0
    %2279 = vmatprep.subr.mxu0 0.0
    %2280 = vmatpush1.xpose.msra.mxu0 0.0
    %2281 = vmatprep.subr.mxu0 0.0
    %2282 = vmatpush1.xpose.msra.mxu0 0.0
    %2283 = vmatprep.subr.mxu0 0.0
    %2284 = vmatpush1.xpose.msra.mxu0 0.0
    %2285 = vmatprep.subr.mxu0 0.0
    %2286 = vmatpush1.xpose.msra.mxu0 0.0
    %2287 = vmatprep.subr.mxu0 0.0
    %2288 = vmatpush1.xpose.msra.mxu0 0.0
    %2289 = vmatprep.subr.mxu0 0.0
    %2290 = vmatpush1.xpose.msra.mxu0 0.0
    %2291 = vmatprep.subr.mxu0 0.0
    %2292 = vmatpush1.xpose.msra.mxu0 0.0
    %2293 = vmatprep.subr.mxu0 0.0
    %2294 = vmatpush1.xpose.msra.mxu0 0.0
    %2295 = vmatprep.subr.mxu0 0.0
    %2296 = vmatpush1.xpose.msra.mxu0 0.0
    %2297 = vmatprep.subr.mxu0 0.0
    %2298 = vmatpush1.xpose.msra.mxu0 0.0
    %2299 = vmatprep.subr.mxu0 0.0
    %2300 = vmatpush1.xpose.msra.mxu0 0.0
    %2301 = vmatprep.subr.mxu0 0.0
    %2302 = vmatpush1.xpose.msra.mxu0 0.0
    %2303 = vmatprep.subr.mxu0 0.0
    %2304 = vmatpush1.xpose.msra.mxu0 0.0
    %2305 = vmatprep.mubr.f32.mxu0 0.0
    %2306 = vmatmul.mubr.f32.gmra.mrb[0].mxu0 %v2237
    %v2307 = vpop.f32.mrb[0].mxu0
    %v2308 = vadd.f32 0.0, %v2307
    %v2309 = vpop.f32.mrb[0].mxu0
    %2310 = vdwg.mxu0
    %v2311 = vmul.f32 %v2308, 0.35355338
    %v2312 = vsel %vm1012, %v2311, -inf
    %2313 = vmax.xlane.f32.xlu0 %v2312
    %v2314 = vpop.xlane.xlu0 %2313
    %v2315 = vsub.f32 %v2311, %v2314
    %v2316 = vmul.f32 %v2315, 1.442695
    %v2317 = vpow.pop %v2316
    %v2318 = vsel %vm1012, %v2317, 0.0
    %2319 = vadd.xlane.f32.xlu0 %v2318
    %v2320 = vpop.xlane.xlu0 %2319
    %v2321 = vrcp.pop %v2320
    %v2322 = vmul.f32 %v2317, %v2321
    %2324 = vrot.lane.b32.xlu0 %v2230, 104
    %v2325 = vpop.permute.xlu0 %2324
    %v2328 = vsel %vm1012, %v2322, 0
    %2330 = vmatprep.subr.mxu0 0.0
    %2331 = vmatpush1.msra.mxu0 %v2325
    %2332 = vmatprep.subr.mxu0 0.0
    %2333 = vmatpush1.msra.mxu0 0.0
    %2334 = vmatprep.subr.mxu0 0.0
    %2335 = vmatpush1.msra.mxu0 0.0
    %2336 = vmatprep.subr.mxu0 0.0
    %2337 = vmatpush1.msra.mxu0 0.0
    %2338 = vmatprep.subr.mxu0 0.0
    %2339 = vmatpush1.msra.mxu0 0.0
    %2340 = vmatprep.subr.mxu0 0.0
    %2341 = vmatpush1.msra.mxu0 0.0
    %2342 = vmatprep.subr.mxu0 0.0
    %2343 = vmatpush1.msra.mxu0 0.0
    %2344 = vmatprep.subr.mxu0 0.0
    %2345 = vmatpush1.msra.mxu0 0.0
    %2346 = vmatprep.subr.mxu0 0.0
    %2347 = vmatpush1.msra.mxu0 0.0
    %2348 = vmatprep.subr.mxu0 0.0
    %2349 = vmatpush1.msra.mxu0 0.0
    %2350 = vmatprep.subr.mxu0 0.0
    %2351 = vmatpush1.msra.mxu0 0.0
    %2352 = vmatprep.subr.mxu0 0.0
    %2353 = vmatpush1.msra.mxu0 0.0
    %2354 = vmatprep.subr.mxu0 0.0
    %2355 = vmatpush1.msra.mxu0 0.0
    %2356 = vmatprep.subr.mxu0 0.0
    %2357 = vmatpush1.msra.mxu0 0.0
    %2358 = vmatprep.subr.mxu0 0.0
    %2359 = vmatpush1.msra.mxu0 0.0
    %2360 = vmatprep.subr.mxu0 0.0
    %2361 = vmatpush1.msra.mxu0 0.0
    %2362 = vmatprep.subr.mxu0 0.0
    %2363 = vmatpush1.msra.mxu0 0.0
    %2364 = vmatprep.subr.mxu0 0.0
    %2365 = vmatpush1.msra.mxu0 0.0
    %2366 = vmatprep.subr.mxu0 0.0
    %2367 = vmatpush1.msra.mxu0 0.0
    %2368 = vmatprep.subr.mxu0 0.0
    %2369 = vmatpush1.msra.mxu0 0.0
    %2370 = vmatprep.subr.mxu0 0.0
    %2371 = vmatpush1.msra.mxu0 0.0
    %2372 = vmatprep.subr.mxu0 0.0
    %2373 = vmatpush1.msra.mxu0 0.0
    %2374 = vmatprep.subr.mxu0 0.0
    %2375 = vmatpush1.msra.mxu0 0.0
    %2376 = vmatprep.subr.mxu0 0.0
    %2377 = vmatpush1.msra.mxu0 0.0
    %2378 = vmatprep.subr.mxu0 0.0
    %2379 = vmatpush1.msra.mxu0 0.0
    %2380 = vmatprep.subr.mxu0 0.0
    %2381 = vmatpush1.msra.mxu0 0.0
    %2382 = vmatprep.subr.mxu0 0.0
    %2383 = vmatpush1.msra.mxu0 0.0
    %2384 = vmatprep.subr.mxu0 0.0
    %2385 = vmatpush1.msra.mxu0 0.0
    %2386 = vmatprep.subr.mxu0 0.0
    %2387 = vmatpush1.msra.mxu0 0.0
    %2388 = vmatprep.subr.mxu0 0.0
    %2389 = vmatpush1.msra.mxu0 0.0
    %2390 = vmatprep.subr.mxu0 0.0
    %2391 = vmatpush1.msra.mxu0 0.0
    %2392 = vmatprep.subr.mxu0 0.0
    %2393 = vmatpush1.msra.mxu0 0.0
    %2394 = vmatprep.mubr.f32.mxu0 0.0
    %2395 = vmatmul.mubr.f32.gmra.mrb[0].mxu0 %v2328
    %v2396 = vpop.f32.mrb[0].mxu0
    %v2397 = vadd.f32 0.0, %v2396
    %v2398 = vpop.f32.mrb[0].mxu0
    %2399 = vdwg.mxu0
    %2401 = vrot.lane.b32.xlu0 %v2397, 24
    %v2402 = vpop.permute.xlu0 %2401
    %2404 = vst.msk [vmem:[#allocation3 + $0x8] sm:$0xff] %vm1707, %v2402
    %v2405 = vld [vmem:[#allocation3] sm:$0xff]
    %v2406 = vld [vmem:[#allocation3 + $0x8] sm:$0xff]
    %v2407 = vld [vmem:[%s13] sm:$0xff]
    %v2408 = vld [vmem:[%s13 + $0x8] sm:$0xff]
    %v2409 = vld [vmem:[%s13 + $0x10] sm:$0xff]
    %v2410 = vld [vmem:[%s13 + $0x18] sm:$0xff]
    %v2411 = vld [vmem:[%s14] sm:$0x1]
    %v2413 = vlaneseq
    %v2414 = vshrl.u32 %v2413, 7
    %v2415 = vsub.s32 0, %v2414
    %v2416 = vrot.slane %v2411, %v2415
    %v2419 = vsel %vm731, %v2405, 0
    %v2422 = vsel %vm731, %v2406, 0
    %2424 = vmatprep.subr.mxu0 0.0
    %2425 = vmatpush1.msra.mxu0 %v2407
    %2426 = vmatprep.subr.mxu0 0.0
    %2427 = vmatpush1.msra.mxu0 %v2408
    %2428 = vmatprep.subr.mxu0 0.0
    %2429 = vmatpush1.msra.mxu0 %v2409
    %2430 = vmatprep.subr.mxu0 0.0
    %2431 = vmatpush1.msra.mxu0 %v2410
    %2432 = vmatprep.subr.mxu0 0.0
    %2433 = vmatpush1.msra.mxu0 0.0
    %2434 = vmatprep.subr.mxu0 0.0
    %2435 = vmatpush1.msra.mxu0 0.0
    %2436 = vmatprep.subr.mxu0 0.0
    %2437 = vmatpush1.msra.mxu0 0.0
    %2438 = vmatprep.subr.mxu0 0.0
    %2439 = vmatpush1.msra.mxu0 0.0
    %2440 = vmatprep.subr.mxu0 0.0
    %2441 = vmatpush1.msra.mxu0 0.0
    %2442 = vmatprep.subr.mxu0 0.0
    %2443 = vmatpush1.msra.mxu0 0.0
    %2444 = vmatprep.subr.mxu0 0.0
    %2445 = vmatpush1.msra.mxu0 0.0
    %2446 = vmatprep.subr.mxu0 0.0
    %2447 = vmatpush1.msra.mxu0 0.0
    %2448 = vmatprep.subr.mxu0 0.0
    %2449 = vmatpush1.msra.mxu0 0.0
    %2450 = vmatprep.subr.mxu0 0.0
    %2451 = vmatpush1.msra.mxu0 0.0
    %2452 = vmatprep.subr.mxu0 0.0
    %2453 = vmatpush1.msra.mxu0 0.0
    %2454 = vmatprep.subr.mxu0 0.0
    %2455 = vmatpush1.msra.mxu0 0.0
    %2456 = vmatprep.subr.mxu0 0.0
    %2457 = vmatpush1.msra.mxu0 0.0
    %2458 = vmatprep.subr.mxu0 0.0
    %2459 = vmatpush1.msra.mxu0 0.0
    %2460 = vmatprep.subr.mxu0 0.0
    %2461 = vmatpush1.msra.mxu0 0.0
    %2462 = vmatprep.subr.mxu0 0.0
    %2463 = vmatpush1.msra.mxu0 0.0
    %2464 = vmatprep.subr.mxu0 0.0
    %2465 = vmatpush1.msra.mxu0 0.0
    %2466 = vmatprep.subr.mxu0 0.0
    %2467 = vmatpush1.msra.mxu0 0.0
    %2468 = vmatprep.subr.mxu0 0.0
    %2469 = vmatpush1.msra.mxu0 0.0
    %2470 = vmatprep.subr.mxu0 0.0
    %2471 = vmatpush1.msra.mxu0 0.0
    %2472 = vmatprep.subr.mxu0 0.0
    %2473 = vmatpush1.msra.mxu0 0.0
    %2474 = vmatprep.subr.mxu0 0.0
    %2475 = vmatpush1.msra.mxu0 0.0
    %2476 = vmatprep.subr.mxu0 0.0
    %2477 = vmatpush1.msra.mxu0 0.0
    %2478 = vmatprep.subr.mxu0 0.0
    %2479 = vmatpush1.msra.mxu0 0.0
    %2480 = vmatprep.subr.mxu0 0.0
    %2481 = vmatpush1.msra.mxu0 0.0
    %2482 = vmatprep.subr.mxu0 0.0
    %2483 = vmatpush1.msra.mxu0 0.0
    %2484 = vmatprep.subr.mxu0 0.0
    %2485 = vmatpush1.msra.mxu0 0.0
    %2486 = vmatprep.subr.mxu0 0.0
    %2487 = vmatpush1.msra.mxu0 0.0
    %2488 = vmatprep.mubr.f32.mxu0 0.0
    %2489 = vmatmul.mubr.f32.gmra.mrb[0].mxu0 %v2419
    %v2490 = vpop.f32.mrb[0].mxu0
    %v2491 = vadd.f32 %v2416, %v2490
    %v2492 = vpop.f32.mrb[0].mxu0
    %2493 = vmatprep.mubr.f32.mxu0 0.0
    %2494 = vmatmul.mubr.f32.gmra.mrb[0].mxu0 %v2422
    %v2495 = vpop.f32.mrb[0].mxu0
    %v2496 = vadd.f32 %v2416, %v2495
    %v2497 = vpop.f32.mrb[0].mxu0
    %2498 = vdwg.mxu0
    %v2499 = vadd.f32 %v298, %v2491
    %v2500 = vadd.f32 %v299, %v2496
    %v2501 = vld [vmem:[%s15] sm:$0x1]
    %v2502 = vld [vmem:[%s16] sm:$0x1]
    %v2503 = vsel %vm731, %v2499, 0.0
    %2504 = vadd.xlane.f32.xlu0 %v2503
    %v2505 = vpop.xlane.xlu0 %2504
    %v2506 = vsel %vm731, %v2500, 0.0
    %2507 = vadd.xlane.f32.xlu0 %v2506
    %v2508 = vpop.xlane.xlu0 %2507
    %v2509 = vrcp.pop 32.0
    %v2510 = vmul.f32 %v2505, %v2509
    %v2511 = vmul.f32 %v2508, %v2509
    %v2512 = vsub.f32 %v2499, %v2510
    %v2513 = vsub.f32 %v2500, %v2511
    %v2514 = vmul.f32 %v2512, %v2512
    %v2515 = vmul.f32 %v2513, %v2513
    %v2516 = vsel %vm731, %v2514, 0.0
    %2517 = vadd.xlane.f32.xlu0 %v2516
    %v2518 = vpop.xlane.xlu0 %2517
    %v2519 = vsel %vm731, %v2515, 0.0
    %2520 = vadd.xlane.f32.xlu0 %v2519
    %v2521 = vpop.xlane.xlu0 %2520
    %v2522 = vmul.f32 %v2518, %v2509
    %v2523 = vmul.f32 %v2521, %v2509
    %v2524 = vadd.f32 %v2522, 1e-05
    %v2525 = vadd.f32 %v2523, 1e-05
    %v2526 = vrsqrt.pop %v2524
    %v2527 = vrsqrt.pop %v2525
    %v2528 = vmul.f32 %v2512, %v2526
    %v2529 = vmul.f32 %v2513, %v2527
    %v2531 = vlaneseq
    %v2532 = vshrl.u32 %v2531, 7
    %v2533 = vsub.s32 0, %v2532
    %v2534 = vrot.slane %v2501, %v2533
    %v2536 = vmul.f32 %v2528, %v2534
    %v2537 = vmul.f32 %v2529, %v2534
    %v2539 = vlaneseq
    %v2540 = vshrl.u32 %v2539, 7
    %v2541 = vsub.s32 0, %v2540
    %v2542 = vrot.slane %v2502, %v2541
    %v2544 = vadd.f32 %v2536, %v2542
    %v2545 = vadd.f32 %v2537, %v2542
    %v2546 = vld [vmem:[%s17] sm:$0xff]
    %v2547 = vld [vmem:[%s17 + $0x8] sm:$0xff]
    %v2548 = vld [vmem:[%s17 + $0x10] sm:$0xff]
    %v2549 = vld [vmem:[%s17 + $0x18] sm:$0xff]
    %v2550 = vld [vmem:[%s18] sm:$0x1]
    %v2552 = vlaneseq
    %v2553 = vshrl.u32 %v2552, 7
    %v2554 = vsub.s32 0, %v2553
    %v2555 = vrot.slane %v2550, %v2554
    %v2558 = vsel %vm731, %v2544, 0
    %v2561 = vsel %vm731, %v2545, 0
    %2563 = vmatprep.subr.mxu0 0.0
    %2564 = vmatpush1.msra.mxu0 %v2546
    %2565 = vmatprep.subr.mxu0 0.0
    %2566 = vmatpush1.msra.mxu0 %v2547
    %2567 = vmatprep.subr.mxu0 0.0
    %2568 = vmatpush1.msra.mxu0 %v2548
    %2569 = vmatprep.subr.mxu0 0.0
    %2570 = vmatpush1.msra.mxu0 %v2549
    %2571 = vmatprep.subr.mxu0 0.0
    %2572 = vmatpush1.msra.mxu0 0.0
    %2573 = vmatprep.subr.mxu0 0.0
    %2574 = vmatpush1.msra.mxu0 0.0
    %2575 = vmatprep.subr.mxu0 0.0
    %2576 = vmatpush1.msra.mxu0 0.0
    %2577 = vmatprep.subr.mxu0 0.0
    %2578 = vmatpush1.msra.mxu0 0.0
    %2579 = vmatprep.subr.mxu0 0.0
    %2580 = vmatpush1.msra.mxu0 0.0
    %2581 = vmatprep.subr.mxu0 0.0
    %2582 = vmatpush1.msra.mxu0 0.0
    %2583 = vmatprep.subr.mxu0 0.0
    %2584 = vmatpush1.msra.mxu0 0.0
    %2585 = vmatprep.subr.mxu0 0.0
    %2586 = vmatpush1.msra.mxu0 0.0
    %2587 = vmatprep.subr.mxu0 0.0
    %2588 = vmatpush1.msra.mxu0 0.0
    %2589 = vmatprep.subr.mxu0 0.0
    %2590 = vmatpush1.msra.mxu0 0.0
    %2591 = vmatprep.subr.mxu0 0.0
    %2592 = vmatpush1.msra.mxu0 0.0
    %2593 = vmatprep.subr.mxu0 0.0
    %2594 = vmatpush1.msra.mxu0 0.0
    %2595 = vmatprep.subr.mxu0 0.0
    %2596 = vmatpush1.msra.mxu0 0.0
    %2597 = vmatprep.subr.mxu0 0.0
    %2598 = vmatpush1.msra.mxu0 0.0
    %2599 = vmatprep.subr.mxu0 0.0
    %2600 = vmatpush1.msra.mxu0 0.0
    %2601 = vmatprep.subr.mxu0 0.0
    %2602 = vmatpush1.msra.mxu0 0.0
    %2603 = vmatprep.subr.mxu0 0.0
    %2604 = vmatpush1.msra.mxu0 0.0
    %2605 = vmatprep.subr.mxu0 0.0
    %2606 = vmatpush1.msra.mxu0 0.0
    %2607 = vmatprep.subr.mxu0 0.0
    %2608 = vmatpush1.msra.mxu0 0.0
    %2609 = vmatprep.subr.mxu0 0.0
    %2610 = vmatpush1.msra.mxu0 0.0
    %2611 = vmatprep.subr.mxu0 0.0
    %2612 = vmatpush1.msra.mxu0 0.0
    %2613 = vmatprep.subr.mxu0 0.0
    %2614 = vmatpush1.msra.mxu0 0.0
    %2615 = vmatprep.subr.mxu0 0.0
    %2616 = vmatpush1.msra.mxu0 0.0
    %2617 = vmatprep.subr.mxu0 0.0
    %2618 = vmatpush1.msra.mxu0 0.0
    %2619 = vmatprep.subr.mxu0 0.0
    %2620 = vmatpush1.msra.mxu0 0.0
    %2621 = vmatprep.subr.mxu0 0.0
    %2622 = vmatpush1.msra.mxu0 0.0
    %2623 = vmatprep.subr.mxu0 0.0
    %2624 = vmatpush1.msra.mxu0 0.0
    %2625 = vmatprep.subr.mxu0 0.0
    %2626 = vmatpush1.msra.mxu0 0.0
    %2627 = vmatprep.mubr.f32.mxu0 0.0
    %2628 = vmatmul.mubr.f32.gmra.mrb[0].mxu0 %v2558
    %v2629 = vpop.f32.mrb[0].mxu0
    %v2630 = vadd.f32 %v2555, %v2629
    %v2631 = vpop.f32.mrb[0].mxu0
    %2632 = vmatprep.mubr.f32.mxu0 0.0
    %2633 = vmatmul.mubr.f32.gmra.mrb[0].mxu0 %v2561
    %v2634 = vpop.f32.mrb[0].mxu0
    %v2635 = vadd.f32 %v2555, %v2634
    %v2636 = vpop.f32.mrb[0].mxu0
    %2637 = vdwg.mxu0
    %v2638 = vld [vmem:[%s19] sm:$0xff]
    %v2639 = vld [vmem:[%s19 + $0x8] sm:$0xff]
    %v2640 = vld [vmem:[%s19 + $0x10] sm:$0xff]
    %v2641 = vld [vmem:[%s19 + $0x18] sm:$0xff]
    %v2642 = vld [vmem:[%s20] sm:$0x1]
    %v2644 = vlaneseq
    %v2645 = vshrl.u32 %v2644, 7
    %v2646 = vsub.s32 0, %v2645
    %v2647 = vrot.slane %v2642, %v2646
    %v2650 = vsel %vm731, %v2630, 0
    %v2653 = vsel %vm731, %v2635, 0
    %2655 = vmatprep.subr.mxu0 0.0
    %2656 = vmatpush1.msra.mxu0 %v2638
    %2657 = vmatprep.subr.mxu0 0.0
    %2658 = vmatpush1.msra.mxu0 %v2639
    %2659 = vmatprep.subr.mxu0 0.0
    %2660 = vmatpush1.msra.mxu0 %v2640
    %2661 = vmatprep.subr.mxu0 0.0
    %2662 = vmatpush1.msra.mxu0 %v2641
    %2663 = vmatprep.subr.mxu0 0.0
    %2664 = vmatpush1.msra.mxu0 0.0
    %2665 = vmatprep.subr.mxu0 0.0
    %2666 = vmatpush1.msra.mxu0 0.0
    %2667 = vmatprep.subr.mxu0 0.0
    %2668 = vmatpush1.msra.mxu0 0.0
    %2669 = vmatprep.subr.mxu0 0.0
    %2670 = vmatpush1.msra.mxu0 0.0
    %2671 = vmatprep.subr.mxu0 0.0
    %2672 = vmatpush1.msra.mxu0 0.0
    %2673 = vmatprep.subr.mxu0 0.0
    %2674 = vmatpush1.msra.mxu0 0.0
    %2675 = vmatprep.subr.mxu0 0.0
    %2676 = vmatpush1.msra.mxu0 0.0
    %2677 = vmatprep.subr.mxu0 0.0
    %2678 = vmatpush1.msra.mxu0 0.0
    %2679 = vmatprep.subr.mxu0 0.0
    %2680 = vmatpush1.msra.mxu0 0.0
    %2681 = vmatprep.subr.mxu0 0.0
    %2682 = vmatpush1.msra.mxu0 0.0
    %2683 = vmatprep.subr.mxu0 0.0
    %2684 = vmatpush1.msra.mxu0 0.0
    %2685 = vmatprep.subr.mxu0 0.0
    %2686 = vmatpush1.msra.mxu0 0.0
    %2687 = vmatprep.subr.mxu0 0.0
    %2688 = vmatpush1.msra.mxu0 0.0
    %2689 = vmatprep.subr.mxu0 0.0
    %2690 = vmatpush1.msra.mxu0 0.0
    %2691 = vmatprep.subr.mxu0 0.0
    %2692 = vmatpush1.msra.mxu0 0.0
    %2693 = vmatprep.subr.mxu0 0.0
    %2694 = vmatpush1.msra.mxu0 0.0
    %2695 = vmatprep.subr.mxu0 0.0
    %2696 = vmatpush1.msra.mxu0 0.0
    %2697 = vmatprep.subr.mxu0 0.0
    %2698 = vmatpush1.msra.mxu0 0.0
    %2699 = vmatprep.subr.mxu0 0.0
    %2700 = vmatpush1.msra.mxu0 0.0
    %2701 = vmatprep.subr.mxu0 0.0
    %2702 = vmatpush1.msra.mxu0 0.0
    %2703 = vmatprep.subr.mxu0 0.0
    %2704 = vmatpush1.msra.mxu0 0.0
    %2705 = vmatprep.subr.mxu0 0.0
    %2706 = vmatpush1.msra.mxu0 0.0
    %2707 = vmatprep.subr.mxu0 0.0
    %2708 = vmatpush1.msra.mxu0 0.0
    %2709 = vmatprep.subr.mxu0 0.0
    %2710 = vmatpush1.msra.mxu0 0.0
    %2711 = vmatprep.subr.mxu0 0.0
    %2712 = vmatpush1.msra.mxu0 0.0
    %2713 = vmatprep.subr.mxu0 0.0
    %2714 = vmatpush1.msra.mxu0 0.0
    %2715 = vmatprep.subr.mxu0 0.0
    %2716 = vmatpush1.msra.mxu0 0.0
    %2717 = vmatprep.subr.mxu0 0.0
    %2718 = vmatpush1.msra.mxu0 0.0
    %2719 = vmatprep.mubr.f32.mxu0 0.0
    %2720 = vmatmul.mubr.f32.gmra.mrb[0].mxu0 %v2650
    %v2721 = vpop.f32.mrb[0].mxu0
    %v2722 = vadd.f32 %v2647, %v2721
    %v2723 = vpop.f32.mrb[0].mxu0
    %2724 = vmatprep.mubr.f32.mxu0 0.0
    %2725 = vmatmul.mubr.f32.gmra.mrb[0].mxu0 %v2653
    %v2726 = vpop.f32.mrb[0].mxu0
    %v2727 = vadd.f32 %v2647, %v2726
    %v2728 = vpop.f32.mrb[0].mxu0
    %2729 = vdwg.mxu0
    %vm2730 = vcmp.ge.f32.partialorder %v2722, 0.0
    %vm2731 = vcmp.ge.f32.partialorder %v2727, 0.0
    %v2732 = vmul.f32 %v2722, 0.01
    %v2733 = vmul.f32 %v2727, 0.01
    %v2734 = vsel %vm2730, %v2722, %v2732
    %v2735 = vsel %vm2731, %v2727, %v2733
    %v2736 = vld [vmem:[%s21] sm:$0xff]
    %v2737 = vld [vmem:[%s21 + $0x8] sm:$0xff]
    %v2738 = vld [vmem:[%s21 + $0x10] sm:$0xff]
    %v2739 = vld [vmem:[%s21 + $0x18] sm:$0xff]
    %v2740 = vld [vmem:[%s22] sm:$0x1]
    %v2742 = vlaneseq
    %v2743 = vshrl.u32 %v2742, 7
    %v2744 = vsub.s32 0, %v2743
    %v2745 = vrot.slane %v2740, %v2744
    %v2748 = vsel %vm731, %v2734, 0
    %v2751 = vsel %vm731, %v2735, 0
    %2753 = vmatprep.subr.mxu0 0.0
    %2754 = vmatpush1.msra.mxu0 %v2736
    %2755 = vmatprep.subr.mxu0 0.0
    %2756 = vmatpush1.msra.mxu0 %v2737
    %2757 = vmatprep.subr.mxu0 0.0
    %2758 = vmatpush1.msra.mxu0 %v2738
    %2759 = vmatprep.subr.mxu0 0.0
    %2760 = vmatpush1.msra.mxu0 %v2739
    %2761 = vmatprep.subr.mxu0 0.0
    %2762 = vmatpush1.msra.mxu0 0.0
    %2763 = vmatprep.subr.mxu0 0.0
    %2764 = vmatpush1.msra.mxu0 0.0
    %2765 = vmatprep.subr.mxu0 0.0
    %2766 = vmatpush1.msra.mxu0 0.0
    %2767 = vmatprep.subr.mxu0 0.0
    %2768 = vmatpush1.msra.mxu0 0.0
    %2769 = vmatprep.subr.mxu0 0.0
    %2770 = vmatpush1.msra.mxu0 0.0
    %2771 = vmatprep.subr.mxu0 0.0
    %2772 = vmatpush1.msra.mxu0 0.0
    %2773 = vmatprep.subr.mxu0 0.0
    %2774 = vmatpush1.msra.mxu0 0.0
    %2775 = vmatprep.subr.mxu0 0.0
    %2776 = vmatpush1.msra.mxu0 0.0
    %2777 = vmatprep.subr.mxu0 0.0
    %2778 = vmatpush1.msra.mxu0 0.0
    %2779 = vmatprep.subr.mxu0 0.0
    %2780 = vmatpush1.msra.mxu0 0.0
    %2781 = vmatprep.subr.mxu0 0.0
    %2782 = vmatpush1.msra.mxu0 0.0
    %2783 = vmatprep.subr.mxu0 0.0
    %2784 = vmatpush1.msra.mxu0 0.0
    %2785 = vmatprep.subr.mxu0 0.0
    %2786 = vmatpush1.msra.mxu0 0.0
    %2787 = vmatprep.subr.mxu0 0.0
    %2788 = vmatpush1.msra.mxu0 0.0
    %2789 = vmatprep.subr.mxu0 0.0
    %2790 = vmatpush1.msra.mxu0 0.0
    %2791 = vmatprep.subr.mxu0 0.0
    %2792 = vmatpush1.msra.mxu0 0.0
    %2793 = vmatprep.subr.mxu0 0.0
    %2794 = vmatpush1.msra.mxu0 0.0
    %2795 = vmatprep.subr.mxu0 0.0
    %2796 = vmatpush1.msra.mxu0 0.0
    %2797 = vmatprep.subr.mxu0 0.0
    %2798 = vmatpush1.msra.mxu0 0.0
    %2799 = vmatprep.subr.mxu0 0.0
    %2800 = vmatpush1.msra.mxu0 0.0
    %2801 = vmatprep.subr.mxu0 0.0
    %2802 = vmatpush1.msra.mxu0 0.0
    %2803 = vmatprep.subr.mxu0 0.0
    %2804 = vmatpush1.msra.mxu0 0.0
    %2805 = vmatprep.subr.mxu0 0.0
    %2806 = vmatpush1.msra.mxu0 0.0
    %2807 = vmatprep.subr.mxu0 0.0
    %2808 = vmatpush1.msra.mxu0 0.0
    %2809 = vmatprep.subr.mxu0 0.0
    %2810 = vmatpush1.msra.mxu0 0.0
    %2811 = vmatprep.subr.mxu0 0.0
    %2812 = vmatpush1.msra.mxu0 0.0
    %2813 = vmatprep.subr.mxu0 0.0
    %2814 = vmatpush1.msra.mxu0 0.0
    %2815 = vmatprep.subr.mxu0 0.0
    %2816 = vmatpush1.msra.mxu0 0.0
    %2817 = vmatprep.mubr.f32.mxu0 0.0
    %2818 = vmatmul.mubr.f32.gmra.mrb[0].mxu0 %v2748
    %v2819 = vpop.f32.mrb[0].mxu0
    %v2820 = vadd.f32 %v2745, %v2819
    %v2821 = vpop.f32.mrb[0].mxu0
    %2822 = vmatprep.mubr.f32.mxu0 0.0
    %2823 = vmatmul.mubr.f32.gmra.mrb[0].mxu0 %v2751
    %v2824 = vpop.f32.mrb[0].mxu0
    %v2825 = vadd.f32 %v2745, %v2824
    %v2826 = vpop.f32.mrb[0].mxu0
    %2827 = vdwg.mxu0
    %v2828 = vadd.f32 %v2630, %v2820
    %v2829 = vadd.f32 %v2635, %v2825
    %v2830 = vld [vmem:[%s23] sm:$0x1]
    %v2831 = vld [vmem:[%s24] sm:$0x1]
    %v2832 = vsel %vm731, %v2828, 0.0
    %2833 = vadd.xlane.f32.xlu0 %v2832
    %v2834 = vpop.xlane.xlu0 %2833
    %v2835 = vsel %vm731, %v2829, 0.0
    %2836 = vadd.xlane.f32.xlu0 %v2835
    %v2837 = vpop.xlane.xlu0 %2836
    %v2838 = vmul.f32 %v2834, %v2509
    %v2839 = vmul.f32 %v2837, %v2509
    %v2840 = vsub.f32 %v2828, %v2838
    %v2841 = vsub.f32 %v2829, %v2839
    %v2842 = vmul.f32 %v2840, %v2840
    %v2843 = vmul.f32 %v2841, %v2841
    %v2844 = vsel %vm731, %v2842, 0.0
    %2845 = vadd.xlane.f32.xlu0 %v2844
    %v2846 = vpop.xlane.xlu0 %2845
    %v2847 = vsel %vm731, %v2843, 0.0
    %2848 = vadd.xlane.f32.xlu0 %v2847
    %v2849 = vpop.xlane.xlu0 %2848
    %v2850 = vmul.f32 %v2846, %v2509
    %v2851 = vmul.f32 %v2849, %v2509
    %v2852 = vadd.f32 %v2850, 1e-05
    %v2853 = vadd.f32 %v2851, 1e-05
    %v2854 = vrsqrt.pop %v2852
    %v2855 = vrsqrt.pop %v2853
    %v2856 = vmul.f32 %v2840, %v2854
    %v2857 = vmul.f32 %v2841, %v2855
    %v2859 = vlaneseq
    %v2860 = vshrl.u32 %v2859, 7
    %v2861 = vsub.s32 0, %v2860
    %v2862 = vrot.slane %v2830, %v2861
    %v2864 = vmul.f32 %v2856, %v2862
    %v2865 = vmul.f32 %v2857, %v2862
    %v2867 = vlaneseq
    %v2868 = vshrl.u32 %v2867, 7
    %v2869 = vsub.s32 0, %v2868
    %v2870 = vrot.slane %v2831, %v2869
    %v2872 = vadd.f32 %v2864, %v2870
    %v2873 = vadd.f32 %v2865, %v2870
    %2874 = vst.msk [vmem:[%s25] sm:$0xff] %vm731, %v2872
    %2875 = vst.msk [vmem:[%s25 + $0x8] sm:$0xff] %vm731, %v2873
    // Predicated region
    $region106: #{pallas_forward.1} parent=1 // pred_check
      _
    $region107: #{pallas_forward.1} parent=1 // pred_check_branch
      %2877 = sbr.rel (0) target = $region109
    $region108: #{pallas_forward.1} parent=1 // pred_region
      _
    $region109: #{pallas_forward.1} parent=1 // pred_fallthru
      _
    // Predicated region
    $region110: #{pallas_forward.1} parent=1 // pred_check
      _
    $region111: #{pallas_forward.1} parent=1 // pred_check_branch
      %2879 = sbr.rel (0) target = $region113
    $region112: #{pallas_forward.1} parent=1 // pred_region
      _
    $region113: #{pallas_forward.1} parent=1 // pred_fallthru
      _
    %2880 = vsyncpa [#allocation5], 1

</llo_original>
